<compile_context>
chip_gen: v7x
topology: tpu7x:2x2x1
jax: 0.10.0
libtpu: 0.0.40
codegen_flags: <defaults>
</compile_context>

<pallas_src>
import functools

import jax
import jax.numpy as jnp
import numpy as np
from jax import lax
from jax.experimental import pallas as pl
from jax.experimental.pallas import tpu as pltpu


# ---------------------------------------------------------------------------
# host-side (trace-time, shape-only) constants
# ---------------------------------------------------------------------------
def _bilinear_matrix_np(out_size, in_size):
    """1-D interpolation matrix matching F.interpolate(mode='bilinear',
    align_corners=False)."""
    scale = in_size / out_size
    dst = np.arange(out_size, dtype=np.float64)
    src = np.maximum((dst + 0.5) * scale - 0.5, 0.0)
    i0 = np.minimum(np.floor(src).astype(np.int64), in_size - 1)
    i1 = np.minimum(i0 + 1, in_size - 1)
    frac = src - i0
    m = np.zeros((out_size, in_size), dtype=np.float32)
    m[np.arange(out_size), i0] += (1.0 - frac).astype(np.float32)
    m[np.arange(out_size), i1] += frac.astype(np.float32)
    return m


def _pool_select_np(H, W, hp, wp):
    """(H*W, hp*wp) selector: top-left anchor of every max-pool window in the
    flat stride-1 conv2 domain (conv stride 2 * pool stride 3 = 6)."""
    sel = np.zeros((H * W, hp * wp), np.float32)
    for oh in range(hp):
        for ow in range(wp):
            sel[(6 * oh) * W + 6 * ow, oh * wp + ow] = 1.0
    return sel


def _shift_mats_np(hp, wp):
    """Zero-padded spatial shift matrices S_k (hp*wp, hp*wp) for a 3x3 pad-1
    conv on an (hp, wp) map: S_k[q, p] = 1 iff output position q reads input
    position p under tap k = (dy, dx)."""
    mats = []
    for dy in range(3):
        for dx in range(3):
            s = np.zeros((hp * wp, hp * wp), np.float32)
            for y in range(hp):
                for x in range(wp):
                    py, px = y + dy - 1, x + dx - 1
                    if 0 <= py < hp and 0 <= px < wp:
                        s[y * wp + x, py * wp + px] = 1.0
            mats.append(s)
    return mats


def _conv3x3_p1_operator(w_hwio, b_vec, shift_mats):
    """Fused (f*hp*wp, f*hp*wp) matmul operator (transposed for row-vector
    right-multiply) + bias row for one 3x3 pad-1 conv on the pooled map."""
    a = None
    for k in range(9):
        dy, dx = divmod(k, 3)
        term = jnp.kron(w_hwio[dy, dx].T, jnp.asarray(shift_mats[k]))
        a = term if a is None else a + term
    n_sp = shift_mats[0].shape[0]
    return a.T, jnp.repeat(b_vec, n_sp)[None, :]


# ---------------------------------------------------------------------------
# fused ESA kernel (one batch element per grid step)
# ---------------------------------------------------------------------------
def _esa_fused_kernel(
    x_ref, w1t_ref, b1_ref, wft_ref, bf_ref, w4t_ref, b4_ref,
    w2_ref, b2_ref, psel_ref, a1_ref, ab1_ref, a2_ref, ab2_ref,
    a3_ref, ab3_ref, u_ref, o_ref, *, f, W, HW, hp, wp):

    # ---- conv1 (1x1, C->f): lane-dense MXU matmul ---------------------------
    c1f = jnp.dot(w1t_ref[...], x_ref[...],
                  preferred_element_type=jnp.float32) + b1_ref[...]     # (f, HW)

    # ---- conv2 (3x3 VALID, stride 2): 9 tap matmuls + lane rolls ------------
    acc = jnp.dot(w2_ref[0], c1f, preferred_element_type=jnp.float32)   # tap (0,0)
    for k in range(1, 9):
        kh, kw = divmod(k, 3)
        t = jnp.dot(w2_ref[k], c1f, preferred_element_type=jnp.float32)
        acc = acc + pltpu.roll(t, HW - (kh * W + kw), 1)                # left shift

    # ---- conv_f (1x1, f->f) --------------------------------------------------
    cf = jnp.dot(wft_ref[...], c1f,
                 preferred_element_type=jnp.float32) + bf_ref[...]      # (f, HW)

    # ---- max_pool2d(7, stride 3): separable roll+max directly on acc --------
    # (pool window samples sit at stride-2 positions of the stride-1 conv map;
    #  per-channel bias is added after the max, which is equivalent)
    rowm = acc
    for r in range(1, 7):
        rowm = jnp.maximum(rowm, pltpu.roll(acc, HW - 2 * r * W, 1))
    colm = rowm
    for s in range(1, 7):
        colm = jnp.maximum(colm, pltpu.roll(rowm, HW - 2 * s, 1))
    vmax = jnp.dot(colm, psel_ref[...],
                   preferred_element_type=jnp.float32) + b2_ref[...]    # (f, hp*wp)

    # ---- conv_max / conv3 / conv3_ as fused (f*hp*wp)^2 operators ------------
    npx = hp * wp
    v = jnp.concatenate([vmax[c:c + 1, :] for c in range(f)], axis=1)   # (1, f*npx)
    v = jnp.maximum(jnp.dot(v, a1_ref[...],
                            preferred_element_type=jnp.float32) + ab1_ref[...], 0.0)
    v = jnp.maximum(jnp.dot(v, a2_ref[...],
                            preferred_element_type=jnp.float32) + ab2_ref[...], 0.0)
    v = jnp.dot(v, a3_ref[...],
                preferred_element_type=jnp.float32) + ab3_ref[...]
    c3 = jnp.concatenate([v[:, c * npx:(c + 1) * npx] for c in range(f)],
                         axis=0)                                        # (f, npx)

    # ---- bilinear upsample (one matmul) + conv4 + sigmoid + gate -------------
    c3up = jnp.dot(c3, u_ref[...], preferred_element_type=jnp.float32)  # (f, HW)
    c4 = jnp.dot(w4t_ref[...], c3up + cf,
                 preferred_element_type=jnp.float32) + b4_ref[...]      # (C, HW)
    o_ref[...] = (x_ref[...] * jax.nn.sigmoid(c4)).astype(o_ref.dtype)


# ---------------------------------------------------------------------------
# public wrapper: NCHW in / NCHW out, like the PyTorch module
# ---------------------------------------------------------------------------
@jax.jit
def esa_forward_pallas(x_nchw, params):
    n, C, H, W = x_nchw.shape
    f = C // 4
    HW = H * W
    hs2, ws2 = (H - 3) // 2 + 1, (W - 3) // 2 + 1          # conv2 (stride 2) output
    hp, wp = (hs2 - 7) // 3 + 1, (ws2 - 7) // 3 + 1        # max_pool(7, 3) output
    npx = hp * wp

    # trace-time constants (shape-only)
    psel = jnp.asarray(_pool_select_np(H, W, hp, wp))
    shift_mats = _shift_mats_np(hp, wp)
    wh = _bilinear_matrix_np(H, hp)                        # (H, hp)
    ww = _bilinear_matrix_np(W, wp)                        # (W, wp)
    u = jnp.asarray(np.einsum("hi,wj->ijhw", wh, ww)
                    .reshape(npx, HW).astype(np.float32))  # (hp*wp, H*W)

    # parameter re-layouts / operator assembly (tiny, folded into the jit)
    w1t = params["w1"].T                                   # (f, C)
    b1c = params["b1"].reshape(f, 1)
    wft = params["wf"].T                                   # (f, f)
    bfc = params["bf"].reshape(f, 1)
    w4t = params["w4"].T                                   # (C, f)
    b4c = params["b4"].reshape(C, 1)
    w2taps = jnp.transpose(params["w2"], (0, 1, 3, 2)).reshape(9, f, f)  # (k, co, ci)
    b2c = params["b2"].reshape(f, 1)
    a1t, ab1 = _conv3x3_p1_operator(params["wmax"], params["bmax"].reshape(-1), shift_mats)
    a2t, ab2 = _conv3x3_p1_operator(params["w3"], params["b3"].reshape(-1), shift_mats)
    a3t, ab3 = _conv3x3_p1_operator(params["w3_"], params["b3_"].reshape(-1), shift_mats)

    x_flat = x_nchw.astype(jnp.float32).reshape(n, C, HW)

    kernel = functools.partial(_esa_fused_kernel, f=f, W=W, HW=HW, hp=hp, wp=wp)

    def full2d(shape):                                     # whole 2-D constant in VMEM
        return pl.BlockSpec(shape, lambda b: (0, 0))

    out = pl.pallas_call(
        kernel,
        out_shape=jax.ShapeDtypeStruct((n, C, HW), jnp.float32),
        grid=(n,),
        in_specs=[
            pl.BlockSpec((None, C, HW), lambda b: (b, 0, 0)),   # x (one batch slab)
            full2d((f, C)), full2d((f, 1)),                     # conv1
            full2d((f, f)), full2d((f, 1)),                     # conv_f
            full2d((C, f)), full2d((C, 1)),                     # conv4
            pl.BlockSpec((9, f, f), lambda b: (0, 0, 0)),       # conv2 taps (co, ci)
            full2d((f, 1)),                                     # conv2 bias
            full2d((HW, npx)),                                  # pool anchor selector
            full2d((f * npx, f * npx)), full2d((1, f * npx)),   # conv_max operator
            full2d((f * npx, f * npx)), full2d((1, f * npx)),   # conv3 operator
            full2d((f * npx, f * npx)), full2d((1, f * npx)),   # conv3_ operator
            full2d((npx, HW)),                                  # bilinear upsample
        ],
        out_specs=pl.BlockSpec((None, C, HW), lambda b: (b, 0, 0)),
        compiler_params=pltpu.CompilerParams(
            dimension_semantics=("parallel",)),
    )(x_flat, w1t, b1c, wft, bfc, w4t, b4c, w2taps, b2c, psel,
      a1t, ab1, a2t, ab2, a3t, ab3, u)

    return out.reshape(n, C, H, W)


# ---------------------------------------------------------------------------
# pure-JAX reference (numerical validation)
# ---------------------------------------------------------------------------
def esa_forward_ref(x_nchw, p):
    x = jnp.transpose(x_nchw, (0, 2, 3, 1)).astype(jnp.float32)
    h, w = x.shape[1], x.shape[2]
    dn = ("NHWC", "HWIO", "NHWC")

    def conv1x1(v, wgt, b):
        return jnp.einsum("nhwc,cf->nhwf", v, wgt) + b

    def conv3x3(v, wgt, b, stride=1, pad=0):
        return lax.conv_general_dilated(v, wgt, (stride, stride),
                                        [(pad, pad), (pad, pad)],
                                        dimension_numbers=dn) + b

    c1_ = conv1x1(x, p["w1"], p["b1"])
    c1 = conv3x3(c1_, p["w2"], p["b2"], stride=2, pad=0)
    v_max = lax.reduce_window(c1, -jnp.inf, lax.max, (1, 7, 7, 1), (1, 3, 3, 1), "VALID")
    v_range = jax.nn.relu(conv3x3(v_max, p["wmax"], p["bmax"], pad=1))
    c3 = jax.nn.relu(conv3x3(v_range, p["w3"], p["b3"], pad=1))
    c3 = conv3x3(c3, p["w3_"], p["b3_"], pad=1)
    wh = jnp.asarray(_bilinear_matrix_np(h, c3.shape[1]))
    ww = jnp.asarray(_bilinear_matrix_np(w, c3.shape[2]))
    c3 = jnp.einsum("Hh,nhwc->nHwc", wh, c3)
    c3 = jnp.einsum("Ww,nhwc->nhWc", ww, c3)
    cf = conv1x1(c1_, p["wf"], p["bf"])
    c4 = conv1x1(c3 + cf, p["w4"], p["b4"])
    return jnp.transpose(x * jax.nn.sigmoid(c4), (0, 3, 1, 2))


if __name__ == "__main__":
    n_feats, n, h, w = 16, 2, 32, 32
    f = n_feats // 4

    key = jax.random.PRNGKey(0)
    ks = jax.random.split(key, 16)

    def nrm(k, shape, scale=0.1):
        return scale * jax.random.normal(k, shape, jnp.float32)

    # Synthetic parameters (3x3 weights in HWIO, 1x1 weights as (Cin, Cout)).
    params = {
        "w1": nrm(ks[0], (n_feats, f)),   "b1": nrm(ks[1], (1, f), 0.02),
        "wf": nrm(ks[2], (f, f)),         "bf": nrm(ks[3], (1, f), 0.02),
        "wmax": nrm(ks[4], (3, 3, f, f)), "bmax": nrm(ks[5], (1, f), 0.02),
        "w2": nrm(ks[6], (3, 3, f, f)),   "b2": nrm(ks[7], (1, f), 0.02),
        "w3": nrm(ks[8], (3, 3, f, f)),   "b3": nrm(ks[9], (1, f), 0.02),
        "w3_": nrm(ks[10], (3, 3, f, f)), "b3_": nrm(ks[11], (1, f), 0.02),
        "w4": nrm(ks[12], (f, n_feats)),  "b4": nrm(ks[13], (1, n_feats), 0.02),
    }
    x = jax.random.normal(ks[14], (n, n_feats, h, w), jnp.float32)

    out = jax.block_until_ready(esa_forward_pallas(x, params))
    ref = jax.block_until_ready(esa_forward_ref(x, params))

    assert out.shape == x.shape and out.dtype == jnp.float32
    np.testing.assert_allclose(np.asarray(out), np.asarray(ref), rtol=2e-2, atol=2e-2)
    print("KERNEL_OK")
</pallas_src>

<mosaic_0001>
module attributes {stable_mosaic.version = 11 : i64} {
  func.func @_esa_fused_kernel(%arg0: i32, %arg1: memref<1x16x1024xf32, #tpu.memory_space<vmem>>, %arg2: memref<4x16xf32, #tpu.memory_space<vmem>>, %arg3: memref<4x1xf32, #tpu.memory_space<vmem>>, %arg4: memref<4x4xf32, #tpu.memory_space<vmem>>, %arg5: memref<4x1xf32, #tpu.memory_space<vmem>>, %arg6: memref<16x4xf32, #tpu.memory_space<vmem>>, %arg7: memref<16x1xf32, #tpu.memory_space<vmem>>, %arg8: memref<9x4x4xf32, #tpu.memory_space<vmem>>, %arg9: memref<4x1xf32, #tpu.memory_space<vmem>>, %arg10: memref<1024x9xf32, #tpu.memory_space<vmem>>, %arg11: memref<36x36xf32, #tpu.memory_space<vmem>>, %arg12: memref<1x36xf32, #tpu.memory_space<vmem>>, %arg13: memref<36x36xf32, #tpu.memory_space<vmem>>, %arg14: memref<1x36xf32, #tpu.memory_space<vmem>>, %arg15: memref<36x36xf32, #tpu.memory_space<vmem>>, %arg16: memref<1x36xf32, #tpu.memory_space<vmem>>, %arg17: memref<9x1024xf32, #tpu.memory_space<vmem>>, %arg18: memref<1x16x1024xf32, #tpu.memory_space<vmem>>) attributes {dimension_semantics = [#tpu.dimension_semantics<parallel>], iteration_bounds = array<i64: 2>, scalar_prefetch = 0 : i64, scratch_operands = 0 : i64, tpu.core_type = #tpu.core_type<tc>, window_params = [{transform_indices = @transform_0, window_bounds = array<i64: 1, 16, 1024>}, {pipeline_mode = #tpu.pipeline_mode<synchronous>, transform_indices = @transform_1, window_bounds = array<i64: 4, 16>}, {pipeline_mode = #tpu.pipeline_mode<synchronous>, transform_indices = @transform_2, window_bounds = array<i64: 4, 1>}, {pipeline_mode = #tpu.pipeline_mode<synchronous>, transform_indices = @transform_3, window_bounds = array<i64: 4, 4>}, {pipeline_mode = #tpu.pipeline_mode<synchronous>, transform_indices = @transform_4, window_bounds = array<i64: 4, 1>}, {pipeline_mode = #tpu.pipeline_mode<synchronous>, transform_indices = @transform_5, window_bounds = array<i64: 16, 4>}, {pipeline_mode = #tpu.pipeline_mode<synchronous>, transform_indices = @transform_6, window_bounds = array<i64: 16, 1>}, {pipeline_mode = #tpu.pipeline_mode<synchronous>, transform_indices = @transform_7, window_bounds = array<i64: 9, 4, 4>}, {pipeline_mode = #tpu.pipeline_mode<synchronous>, transform_indices = @transform_8, window_bounds = array<i64: 4, 1>}, {pipeline_mode = #tpu.pipeline_mode<synchronous>, transform_indices = @transform_9, window_bounds = array<i64: 1024, 9>}, {pipeline_mode = #tpu.pipeline_mode<synchronous>, transform_indices = @transform_10, window_bounds = array<i64: 36, 36>}, {pipeline_mode = #tpu.pipeline_mode<synchronous>, transform_indices = @transform_11, window_bounds = array<i64: 1, 36>}, {pipeline_mode = #tpu.pipeline_mode<synchronous>, transform_indices = @transform_12, window_bounds = array<i64: 36, 36>}, {pipeline_mode = #tpu.pipeline_mode<synchronous>, transform_indices = @transform_13, window_bounds = array<i64: 1, 36>}, {pipeline_mode = #tpu.pipeline_mode<synchronous>, transform_indices = @transform_14, window_bounds = array<i64: 36, 36>}, {pipeline_mode = #tpu.pipeline_mode<synchronous>, transform_indices = @transform_15, window_bounds = array<i64: 1, 36>}, {pipeline_mode = #tpu.pipeline_mode<synchronous>, transform_indices = @transform_16, window_bounds = array<i64: 9, 1024>}, {transform_indices = @transform_17, window_bounds = array<i64: 1, 16, 1024>}]} {
    %c0 = arith.constant 0 : index
    %c0_0 = arith.constant 0 : index
    %0 = vector.load %arg2[%c0, %c0_0] : memref<4x16xf32, #tpu.memory_space<vmem>>, vector<4x16xf32>
    %c0_1 = arith.constant 0 : index
    %c0_2 = arith.constant 0 : index
    %c0_3 = arith.constant 0 : index
    %1 = vector.load %arg1[%c0_1, %c0_2, %c0_3] : memref<1x16x1024xf32, #tpu.memory_space<vmem>>, vector<1x16x1024xf32>
    %2 = vector.shape_cast %1 : vector<1x16x1024xf32> to vector<16x1024xf32>
    %cst = arith.constant dense<0.000000e+00> : vector<4x1024xf32>
    %3 = tpu.matmul %0, %2, %cst {dimension_numbers = #tpu.dot_dimension_numbers<[1], [0], [0], [1], [0, 0, 1, 1], [], []>} : vector<4x16xf32>, vector<16x1024xf32>, vector<4x1024xf32> -> vector<4x1024xf32>
    %c0_4 = arith.constant 0 : index
    %c0_5 = arith.constant 0 : index
    %4 = vector.load %arg3[%c0_4, %c0_5] : memref<4x1xf32, #tpu.memory_space<vmem>>, vector<4x1xf32>
    %5 = vector.broadcast %4 : vector<4x1xf32> to vector<4x1024xf32>
    %6 = arith.addf %3, %5 : vector<4x1024xf32>
    %c0_6 = arith.constant 0 : index
    %c0_7 = arith.constant 0 : index
    %c0_8 = arith.constant 0 : index
    %7 = vector.load %arg8[%c0_6, %c0_7, %c0_8] : memref<9x4x4xf32, #tpu.memory_space<vmem>>, vector<1x4x4xf32>
    %8 = vector.shape_cast %7 : vector<1x4x4xf32> to vector<4x4xf32>
    %cst_9 = arith.constant dense<0.000000e+00> : vector<4x1024xf32>
    %9 = tpu.matmul %8, %6, %cst_9 {dimension_numbers = #tpu.dot_dimension_numbers<[1], [0], [0], [1], [0, 0, 1, 1], [], []>} : vector<4x4xf32>, vector<4x1024xf32>, vector<4x1024xf32> -> vector<4x1024xf32>
    %c1 = arith.constant 1 : index
    %c0_10 = arith.constant 0 : index
    %c0_11 = arith.constant 0 : index
    %10 = vector.load %arg8[%c1, %c0_10, %c0_11] : memref<9x4x4xf32, #tpu.memory_space<vmem>>, vector<1x4x4xf32>
    %11 = vector.shape_cast %10 : vector<1x4x4xf32> to vector<4x4xf32>
    %cst_12 = arith.constant dense<0.000000e+00> : vector<4x1024xf32>
    %12 = tpu.matmul %11, %6, %cst_12 {dimension_numbers = #tpu.dot_dimension_numbers<[1], [0], [0], [1], [0, 0, 1, 1], [], []>} : vector<4x4xf32>, vector<4x1024xf32>, vector<4x1024xf32> -> vector<4x1024xf32>
    %c1023_i32 = arith.constant 1023 : i32
    %13 = tpu.dynamic_rotate %12 by %c1023_i32 dim 1 : vector<4x1024xf32>, i32 -> vector<4x1024xf32>
    %14 = arith.addf %9, %13 : vector<4x1024xf32>
    %c2 = arith.constant 2 : index
    %c0_13 = arith.constant 0 : index
    %c0_14 = arith.constant 0 : index
    %15 = vector.load %arg8[%c2, %c0_13, %c0_14] : memref<9x4x4xf32, #tpu.memory_space<vmem>>, vector<1x4x4xf32>
    %16 = vector.shape_cast %15 : vector<1x4x4xf32> to vector<4x4xf32>
    %cst_15 = arith.constant dense<0.000000e+00> : vector<4x1024xf32>
    %17 = tpu.matmul %16, %6, %cst_15 {dimension_numbers = #tpu.dot_dimension_numbers<[1], [0], [0], [1], [0, 0, 1, 1], [], []>} : vector<4x4xf32>, vector<4x1024xf32>, vector<4x1024xf32> -> vector<4x1024xf32>
    %c1022_i32 = arith.constant 1022 : i32
    %18 = tpu.dynamic_rotate %17 by %c1022_i32 dim 1 : vector<4x1024xf32>, i32 -> vector<4x1024xf32>
    %19 = arith.addf %14, %18 : vector<4x1024xf32>
    %c3 = arith.constant 3 : index
    %c0_16 = arith.constant 0 : index
    %c0_17 = arith.constant 0 : index
    %20 = vector.load %arg8[%c3, %c0_16, %c0_17] : memref<9x4x4xf32, #tpu.memory_space<vmem>>, vector<1x4x4xf32>
    %21 = vector.shape_cast %20 : vector<1x4x4xf32> to vector<4x4xf32>
    %cst_18 = arith.constant dense<0.000000e+00> : vector<4x1024xf32>
    %22 = tpu.matmul %21, %6, %cst_18 {dimension_numbers = #tpu.dot_dimension_numbers<[1], [0], [0], [1], [0, 0, 1, 1], [], []>} : vector<4x4xf32>, vector<4x1024xf32>, vector<4x1024xf32> -> vector<4x1024xf32>
    %c992_i32 = arith.constant 992 : i32
    %23 = tpu.dynamic_rotate %22 by %c992_i32 dim 1 : vector<4x1024xf32>, i32 -> vector<4x1024xf32>
    %24 = arith.addf %19, %23 : vector<4x1024xf32>
    %c4 = arith.constant 4 : index
    %c0_19 = arith.constant 0 : index
    %c0_20 = arith.constant 0 : index
    %25 = vector.load %arg8[%c4, %c0_19, %c0_20] : memref<9x4x4xf32, #tpu.memory_space<vmem>>, vector<1x4x4xf32>
    %26 = vector.shape_cast %25 : vector<1x4x4xf32> to vector<4x4xf32>
    %cst_21 = arith.constant dense<0.000000e+00> : vector<4x1024xf32>
    %27 = tpu.matmul %26, %6, %cst_21 {dimension_numbers = #tpu.dot_dimension_numbers<[1], [0], [0], [1], [0, 0, 1, 1], [], []>} : vector<4x4xf32>, vector<4x1024xf32>, vector<4x1024xf32> -> vector<4x1024xf32>
    %c991_i32 = arith.constant 991 : i32
    %28 = tpu.dynamic_rotate %27 by %c991_i32 dim 1 : vector<4x1024xf32>, i32 -> vector<4x1024xf32>
    %29 = arith.addf %24, %28 : vector<4x1024xf32>
    %c5 = arith.constant 5 : index
    %c0_22 = arith.constant 0 : index
    %c0_23 = arith.constant 0 : index
    %30 = vector.load %arg8[%c5, %c0_22, %c0_23] : memref<9x4x4xf32, #tpu.memory_space<vmem>>, vector<1x4x4xf32>
    %31 = vector.shape_cast %30 : vector<1x4x4xf32> to vector<4x4xf32>
    %cst_24 = arith.constant dense<0.000000e+00> : vector<4x1024xf32>
    %32 = tpu.matmul %31, %6, %cst_24 {dimension_numbers = #tpu.dot_dimension_numbers<[1], [0], [0], [1], [0, 0, 1, 1], [], []>} : vector<4x4xf32>, vector<4x1024xf32>, vector<4x1024xf32> -> vector<4x1024xf32>
    %c990_i32 = arith.constant 990 : i32
    %33 = tpu.dynamic_rotate %32 by %c990_i32 dim 1 : vector<4x1024xf32>, i32 -> vector<4x1024xf32>
    %34 = arith.addf %29, %33 : vector<4x1024xf32>
    %c6 = arith.constant 6 : index
    %c0_25 = arith.constant 0 : index
    %c0_26 = arith.constant 0 : index
    %35 = vector.load %arg8[%c6, %c0_25, %c0_26] : memref<9x4x4xf32, #tpu.memory_space<vmem>>, vector<1x4x4xf32>
    %36 = vector.shape_cast %35 : vector<1x4x4xf32> to vector<4x4xf32>
    %cst_27 = arith.constant dense<0.000000e+00> : vector<4x1024xf32>
    %37 = tpu.matmul %36, %6, %cst_27 {dimension_numbers = #tpu.dot_dimension_numbers<[1], [0], [0], [1], [0, 0, 1, 1], [], []>} : vector<4x4xf32>, vector<4x1024xf32>, vector<4x1024xf32> -> vector<4x1024xf32>
    %c960_i32 = arith.constant 960 : i32
    %38 = tpu.dynamic_rotate %37 by %c960_i32 dim 1 : vector<4x1024xf32>, i32 -> vector<4x1024xf32>
    %39 = arith.addf %34, %38 : vector<4x1024xf32>
    %c7 = arith.constant 7 : index
    %c0_28 = arith.constant 0 : index
    %c0_29 = arith.constant 0 : index
    %40 = vector.load %arg8[%c7, %c0_28, %c0_29] : memref<9x4x4xf32, #tpu.memory_space<vmem>>, vector<1x4x4xf32>
    %41 = vector.shape_cast %40 : vector<1x4x4xf32> to vector<4x4xf32>
    %cst_30 = arith.constant dense<0.000000e+00> : vector<4x1024xf32>
    %42 = tpu.matmul %41, %6, %cst_30 {dimension_numbers = #tpu.dot_dimension_numbers<[1], [0], [0], [1], [0, 0, 1, 1], [], []>} : vector<4x4xf32>, vector<4x1024xf32>, vector<4x1024xf32> -> vector<4x1024xf32>
    %c959_i32 = arith.constant 959 : i32
    %43 = tpu.dynamic_rotate %42 by %c959_i32 dim 1 : vector<4x1024xf32>, i32 -> vector<4x1024xf32>
    %44 = arith.addf %39, %43 : vector<4x1024xf32>
    %c8 = arith.constant 8 : index
    %c0_31 = arith.constant 0 : index
    %c0_32 = arith.constant 0 : index
    %45 = vector.load %arg8[%c8, %c0_31, %c0_32] : memref<9x4x4xf32, #tpu.memory_space<vmem>>, vector<1x4x4xf32>
    %46 = vector.shape_cast %45 : vector<1x4x4xf32> to vector<4x4xf32>
    %cst_33 = arith.constant dense<0.000000e+00> : vector<4x1024xf32>
    %47 = tpu.matmul %46, %6, %cst_33 {dimension_numbers = #tpu.dot_dimension_numbers<[1], [0], [0], [1], [0, 0, 1, 1], [], []>} : vector<4x4xf32>, vector<4x1024xf32>, vector<4x1024xf32> -> vector<4x1024xf32>
    %c958_i32 = arith.constant 958 : i32
    %48 = tpu.dynamic_rotate %47 by %c958_i32 dim 1 : vector<4x1024xf32>, i32 -> vector<4x1024xf32>
    %49 = arith.addf %44, %48 : vector<4x1024xf32>
    %c0_34 = arith.constant 0 : index
    %c0_35 = arith.constant 0 : index
    %50 = vector.load %arg4[%c0_34, %c0_35] : memref<4x4xf32, #tpu.memory_space<vmem>>, vector<4x4xf32>
    %cst_36 = arith.constant dense<0.000000e+00> : vector<4x1024xf32>
    %51 = tpu.matmul %50, %6, %cst_36 {dimension_numbers = #tpu.dot_dimension_numbers<[1], [0], [0], [1], [0, 0, 1, 1], [], []>} : vector<4x4xf32>, vector<4x1024xf32>, vector<4x1024xf32> -> vector<4x1024xf32>
    %c0_37 = arith.constant 0 : index
    %c0_38 = arith.constant 0 : index
    %52 = vector.load %arg5[%c0_37, %c0_38] : memref<4x1xf32, #tpu.memory_space<vmem>>, vector<4x1xf32>
    %53 = vector.broadcast %52 : vector<4x1xf32> to vector<4x1024xf32>
    %54 = arith.addf %51, %53 : vector<4x1024xf32>
    %c960_i32_39 = arith.constant 960 : i32
    %55 = tpu.dynamic_rotate %49 by %c960_i32_39 dim 1 : vector<4x1024xf32>, i32 -> vector<4x1024xf32>
    %56 = arith.maximumf %49, %55 : vector<4x1024xf32>
    %c896_i32 = arith.constant 896 : i32
    %57 = tpu.dynamic_rotate %49 by %c896_i32 dim 1 : vector<4x1024xf32>, i32 -> vector<4x1024xf32>
    %58 = arith.maximumf %56, %57 : vector<4x1024xf32>
    %c832_i32 = arith.constant 832 : i32
    %59 = tpu.dynamic_rotate %49 by %c832_i32 dim 1 : vector<4x1024xf32>, i32 -> vector<4x1024xf32>
    %60 = arith.maximumf %58, %59 : vector<4x1024xf32>
    %c768_i32 = arith.constant 768 : i32
    %61 = tpu.dynamic_rotate %49 by %c768_i32 dim 1 : vector<4x1024xf32>, i32 -> vector<4x1024xf32>
    %62 = arith.maximumf %60, %61 : vector<4x1024xf32>
    %c704_i32 = arith.constant 704 : i32
    %63 = tpu.dynamic_rotate %49 by %c704_i32 dim 1 : vector<4x1024xf32>, i32 -> vector<4x1024xf32>
    %64 = arith.maximumf %62, %63 : vector<4x1024xf32>
    %c640_i32 = arith.constant 640 : i32
    %65 = tpu.dynamic_rotate %49 by %c640_i32 dim 1 : vector<4x1024xf32>, i32 -> vector<4x1024xf32>
    %66 = arith.maximumf %64, %65 : vector<4x1024xf32>
    %c1022_i32_40 = arith.constant 1022 : i32
    %67 = tpu.dynamic_rotate %66 by %c1022_i32_40 dim 1 : vector<4x1024xf32>, i32 -> vector<4x1024xf32>
    %68 = arith.maximumf %66, %67 : vector<4x1024xf32>
    %c1020_i32 = arith.constant 1020 : i32
    %69 = tpu.dynamic_rotate %66 by %c1020_i32 dim 1 : vector<4x1024xf32>, i32 -> vector<4x1024xf32>
    %70 = arith.maximumf %68, %69 : vector<4x1024xf32>
    %c1018_i32 = arith.constant 1018 : i32
    %71 = tpu.dynamic_rotate %66 by %c1018_i32 dim 1 : vector<4x1024xf32>, i32 -> vector<4x1024xf32>
    %72 = arith.maximumf %70, %71 : vector<4x1024xf32>
    %c1016_i32 = arith.constant 1016 : i32
    %73 = tpu.dynamic_rotate %66 by %c1016_i32 dim 1 : vector<4x1024xf32>, i32 -> vector<4x1024xf32>
    %74 = arith.maximumf %72, %73 : vector<4x1024xf32>
    %c1014_i32 = arith.constant 1014 : i32
    %75 = tpu.dynamic_rotate %66 by %c1014_i32 dim 1 : vector<4x1024xf32>, i32 -> vector<4x1024xf32>
    %76 = arith.maximumf %74, %75 : vector<4x1024xf32>
    %c1012_i32 = arith.constant 1012 : i32
    %77 = tpu.dynamic_rotate %66 by %c1012_i32 dim 1 : vector<4x1024xf32>, i32 -> vector<4x1024xf32>
    %78 = arith.maximumf %76, %77 : vector<4x1024xf32>
    %c0_41 = arith.constant 0 : index
    %c0_42 = arith.constant 0 : index
    %79 = vector.load %arg10[%c0_41, %c0_42] : memref<1024x9xf32, #tpu.memory_space<vmem>>, vector<1024x9xf32>
    %cst_43 = arith.constant dense<0.000000e+00> : vector<4x9xf32>
    %80 = tpu.matmul %78, %79, %cst_43 {dimension_numbers = #tpu.dot_dimension_numbers<[1], [0], [0], [1], [0, 0, 1, 1], [], []>} : vector<4x1024xf32>, vector<1024x9xf32>, vector<4x9xf32> -> vector<4x9xf32>
    %c0_44 = arith.constant 0 : index
    %c0_45 = arith.constant 0 : index
    %81 = vector.load %arg9[%c0_44, %c0_45] : memref<4x1xf32, #tpu.memory_space<vmem>>, vector<4x1xf32>
    %82 = vector.broadcast %81 : vector<4x1xf32> to vector<4x9xf32>
    %83 = arith.addf %80, %82 : vector<4x9xf32>
    %84 = vector.extract_strided_slice %83 {offsets = [0, 0], sizes = [1, 9], strides = [1, 1]} : vector<4x9xf32> to vector<1x9xf32>
    %85 = vector.extract_strided_slice %83 {offsets = [1, 0], sizes = [1, 9], strides = [1, 1]} : vector<4x9xf32> to vector<1x9xf32>
    %86 = vector.extract_strided_slice %83 {offsets = [2, 0], sizes = [1, 9], strides = [1, 1]} : vector<4x9xf32> to vector<1x9xf32>
    %87 = vector.extract_strided_slice %83 {offsets = [3, 0], sizes = [1, 9], strides = [1, 1]} : vector<4x9xf32> to vector<1x9xf32>
    %88 = tpu.concatenate %84, %85, %86, %87 in 1 : vector<1x9xf32>, vector<1x9xf32>, vector<1x9xf32>, vector<1x9xf32> -> vector<1x36xf32>
    %c0_46 = arith.constant 0 : index
    %c0_47 = arith.constant 0 : index
    %89 = vector.load %arg11[%c0_46, %c0_47] : memref<36x36xf32, #tpu.memory_space<vmem>>, vector<36x36xf32>
    %cst_48 = arith.constant dense<0.000000e+00> : vector<1x36xf32>
    %90 = tpu.matmul %88, %89, %cst_48 {dimension_numbers = #tpu.dot_dimension_numbers<[1], [0], [0], [1], [0, 0, 1, 1], [], []>} : vector<1x36xf32>, vector<36x36xf32>, vector<1x36xf32> -> vector<1x36xf32>
    %c0_49 = arith.constant 0 : index
    %c0_50 = arith.constant 0 : index
    %91 = vector.load %arg12[%c0_49, %c0_50] : memref<1x36xf32, #tpu.memory_space<vmem>>, vector<1x36xf32>
    %92 = arith.addf %90, %91 : vector<1x36xf32>
    %cst_51 = arith.constant 0.000000e+00 : f32
    %93 = vector.broadcast %cst_51 : f32 to vector<1x36xf32>
    %94 = arith.maximumf %92, %93 : vector<1x36xf32>
    %c0_52 = arith.constant 0 : index
    %c0_53 = arith.constant 0 : index
    %95 = vector.load %arg13[%c0_52, %c0_53] : memref<36x36xf32, #tpu.memory_space<vmem>>, vector<36x36xf32>
    %cst_54 = arith.constant dense<0.000000e+00> : vector<1x36xf32>
    %96 = tpu.matmul %94, %95, %cst_54 {dimension_numbers = #tpu.dot_dimension_numbers<[1], [0], [0], [1], [0, 0, 1, 1], [], []>} : vector<1x36xf32>, vector<36x36xf32>, vector<1x36xf32> -> vector<1x36xf32>
    %c0_55 = arith.constant 0 : index
    %c0_56 = arith.constant 0 : index
    %97 = vector.load %arg14[%c0_55, %c0_56] : memref<1x36xf32, #tpu.memory_space<vmem>>, vector<1x36xf32>
    %98 = arith.addf %96, %97 : vector<1x36xf32>
    %cst_57 = arith.constant 0.000000e+00 : f32
    %99 = vector.broadcast %cst_57 : f32 to vector<1x36xf32>
    %100 = arith.maximumf %98, %99 : vector<1x36xf32>
    %c0_58 = arith.constant 0 : index
    %c0_59 = arith.constant 0 : index
    %101 = vector.load %arg15[%c0_58, %c0_59] : memref<36x36xf32, #tpu.memory_space<vmem>>, vector<36x36xf32>
    %cst_60 = arith.constant dense<0.000000e+00> : vector<1x36xf32>
    %102 = tpu.matmul %100, %101, %cst_60 {dimension_numbers = #tpu.dot_dimension_numbers<[1], [0], [0], [1], [0, 0, 1, 1], [], []>} : vector<1x36xf32>, vector<36x36xf32>, vector<1x36xf32> -> vector<1x36xf32>
    %c0_61 = arith.constant 0 : index
    %c0_62 = arith.constant 0 : index
    %103 = vector.load %arg16[%c0_61, %c0_62] : memref<1x36xf32, #tpu.memory_space<vmem>>, vector<1x36xf32>
    %104 = arith.addf %102, %103 : vector<1x36xf32>
    %105 = vector.extract_strided_slice %104 {offsets = [0, 0], sizes = [1, 9], strides = [1, 1]} : vector<1x36xf32> to vector<1x9xf32>
    %106 = vector.extract_strided_slice %104 {offsets = [0, 9], sizes = [1, 9], strides = [1, 1]} : vector<1x36xf32> to vector<1x9xf32>
    %107 = vector.extract_strided_slice %104 {offsets = [0, 18], sizes = [1, 9], strides = [1, 1]} : vector<1x36xf32> to vector<1x9xf32>
    %108 = vector.extract_strided_slice %104 {offsets = [0, 27], sizes = [1, 9], strides = [1, 1]} : vector<1x36xf32> to vector<1x9xf32>
    %109 = tpu.concatenate %105, %106, %107, %108 in 0 : vector<1x9xf32>, vector<1x9xf32>, vector<1x9xf32>, vector<1x9xf32> -> vector<4x9xf32>
    %c0_63 = arith.constant 0 : index
    %c0_64 = arith.constant 0 : index
    %110 = vector.load %arg17[%c0_63, %c0_64] : memref<9x1024xf32, #tpu.memory_space<vmem>>, vector<9x1024xf32>
    %cst_65 = arith.constant dense<0.000000e+00> : vector<4x1024xf32>
    %111 = tpu.matmul %109, %110, %cst_65 {dimension_numbers = #tpu.dot_dimension_numbers<[1], [0], [0], [1], [0, 0, 1, 1], [], []>} : vector<4x9xf32>, vector<9x1024xf32>, vector<4x1024xf32> -> vector<4x1024xf32>
    %c0_66 = arith.constant 0 : index
    %c0_67 = arith.constant 0 : index
    %112 = vector.load %arg6[%c0_66, %c0_67] : memref<16x4xf32, #tpu.memory_space<vmem>>, vector<16x4xf32>
    %113 = arith.addf %111, %54 : vector<4x1024xf32>
    %cst_68 = arith.constant dense<0.000000e+00> : vector<16x1024xf32>
    %114 = tpu.matmul %112, %113, %cst_68 {dimension_numbers = #tpu.dot_dimension_numbers<[1], [0], [0], [1], [0, 0, 1, 1], [], []>} : vector<16x4xf32>, vector<4x1024xf32>, vector<16x1024xf32> -> vector<16x1024xf32>
    %c0_69 = arith.constant 0 : index
    %c0_70 = arith.constant 0 : index
    %115 = vector.load %arg7[%c0_69, %c0_70] : memref<16x1xf32, #tpu.memory_space<vmem>>, vector<16x1xf32>
    %116 = vector.broadcast %115 : vector<16x1xf32> to vector<16x1024xf32>
    %117 = arith.addf %114, %116 : vector<16x1024xf32>
    %c0_71 = arith.constant 0 : index
    %c0_72 = arith.constant 0 : index
    %c0_73 = arith.constant 0 : index
    %118 = vector.load %arg1[%c0_71, %c0_72, %c0_73] : memref<1x16x1024xf32, #tpu.memory_space<vmem>>, vector<1x16x1024xf32>
    %119 = vector.shape_cast %118 : vector<1x16x1024xf32> to vector<16x1024xf32>
    %120 = arith.negf %117 : vector<16x1024xf32>
    %121 = math.exp %120 : vector<16x1024xf32>
    %cst_74 = arith.constant 1.000000e+00 : f32
    %122 = vector.broadcast %cst_74 : f32 to vector<16x1024xf32>
    %123 = arith.addf %122, %121 : vector<16x1024xf32>
    %124 = arith.divf %122, %123 : vector<16x1024xf32>
    %125 = arith.mulf %119, %124 : vector<16x1024xf32>
    %c0_75 = arith.constant 0 : index
    %c0_76 = arith.constant 0 : index
    %c0_77 = arith.constant 0 : index
    %126 = vector.load %arg18[%c0_75, %c0_76, %c0_77] : memref<1x16x1024xf32, #tpu.memory_space<vmem>>, vector<1x16x1024xf32>
    %127 = vector.shape_cast %126 : vector<1x16x1024xf32> to vector<16x1024xf32>
    %128 = vector.shape_cast %125 : vector<16x1024xf32> to vector<1x16x1024xf32>
    tpu.vector_store %arg18[%c0_75, %c0_76, %c0_77], %128 {strides = array<i32>} : memref<1x16x1024xf32, #tpu.memory_space<vmem>>, vector<1x16x1024xf32>,
    return
  }
  func.func @transform_0(%arg0: i32) -> (i32, i32, i32) {
    %c0_i32 = arith.constant 0 : i32
    %c0_i32_0 = arith.constant 0 : i32
    %c0_i32_1 = arith.constant 0 : i32
    return %arg0, %c0_i32, %c0_i32_0 : i32, i32, i32
  }
  func.func @transform_1(%arg0: i32) -> (i32, i32) {
    %c0_i32 = arith.constant 0 : i32
    %c0_i32_0 = arith.constant 0 : i32
    %c0_i32_1 = arith.constant 0 : i32
    return %c0_i32, %c0_i32_0 : i32, i32
  }
  func.func @transform_2(%arg0: i32) -> (i32, i32) {
    %c0_i32 = arith.constant 0 : i32
    %c0_i32_0 = arith.constant 0 : i32
    %c0_i32_1 = arith.constant 0 : i32
    return %c0_i32, %c0_i32_0 : i32, i32
  }
  func.func @transform_3(%arg0: i32) -> (i32, i32) {
    %c0_i32 = arith.constant 0 : i32
    %c0_i32_0 = arith.constant 0 : i32
    %c0_i32_1 = arith.constant 0 : i32
    return %c0_i32, %c0_i32_0 : i32, i32
  }
  func.func @transform_4(%arg0: i32) -> (i32, i32) {
    %c0_i32 = arith.constant 0 : i32
    %c0_i32_0 = arith.constant 0 : i32
    %c0_i32_1 = arith.constant 0 : i32
    return %c0_i32, %c0_i32_0 : i32, i32
  }
  func.func @transform_5(%arg0: i32) -> (i32, i32) {
    %c0_i32 = arith.constant 0 : i32
    %c0_i32_0 = arith.constant 0 : i32
    %c0_i32_1 = arith.constant 0 : i32
    return %c0_i32, %c0_i32_0 : i32, i32
  }
  func.func @transform_6(%arg0: i32) -> (i32, i32) {
    %c0_i32 = arith.constant 0 : i32
    %c0_i32_0 = arith.constant 0 : i32
    %c0_i32_1 = arith.constant 0 : i32
    return %c0_i32, %c0_i32_0 : i32, i32
  }
  func.func @transform_7(%arg0: i32) -> (i32, i32, i32) {
    %c0_i32 = arith.constant 0 : i32
    %c0_i32_0 = arith.constant 0 : i32
    %c0_i32_1 = arith.constant 0 : i32
    %c0_i32_2 = arith.constant 0 : i32
    return %c0_i32, %c0_i32_0, %c0_i32_1 : i32, i32, i32
  }
  func.func @transform_8(%arg0: i32) -> (i32, i32) {
    %c0_i32 = arith.constant 0 : i32
    %c0_i32_0 = arith.constant 0 : i32
    %c0_i32_1 = arith.constant 0 : i32
    return %c0_i32, %c0_i32_0 : i32, i32
  }
  func.func @transform_9(%arg0: i32) -> (i32, i32) {
    %c0_i32 = arith.constant 0 : i32
    %c0_i32_0 = arith.constant 0 : i32
    %c0_i32_1 = arith.constant 0 : i32
    return %c0_i32, %c0_i32_0 : i32, i32
  }
  func.func @transform_10(%arg0: i32) -> (i32, i32) {
    %c0_i32 = arith.constant 0 : i32
    %c0_i32_0 = arith.constant 0 : i32
    %c0_i32_1 = arith.constant 0 : i32
    return %c0_i32, %c0_i32_0 : i32, i32
  }
  func.func @transform_11(%arg0: i32) -> (i32, i32) {
    %c0_i32 = arith.constant 0 : i32
    %c0_i32_0 = arith.constant 0 : i32
    %c0_i32_1 = arith.constant 0 : i32
    return %c0_i32, %c0_i32_0 : i32, i32
  }
  func.func @transform_12(%arg0: i32) -> (i32, i32) {
    %c0_i32 = arith.constant 0 : i32
    %c0_i32_0 = arith.constant 0 : i32
    %c0_i32_1 = arith.constant 0 : i32
    return %c0_i32, %c0_i32_0 : i32, i32
  }
  func.func @transform_13(%arg0: i32) -> (i32, i32) {
    %c0_i32 = arith.constant 0 : i32
    %c0_i32_0 = arith.constant 0 : i32
    %c0_i32_1 = arith.constant 0 : i32
    return %c0_i32, %c0_i32_0 : i32, i32
  }
  func.func @transform_14(%arg0: i32) -> (i32, i32) {
    %c0_i32 = arith.constant 0 : i32
    %c0_i32_0 = arith.constant 0 : i32
    %c0_i32_1 = arith.constant 0 : i32
    return %c0_i32, %c0_i32_0 : i32, i32
  }
  func.func @transform_15(%arg0: i32) -> (i32, i32) {
    %c0_i32 = arith.constant 0 : i32
    %c0_i32_0 = arith.constant 0 : i32
    %c0_i32_1 = arith.constant 0 : i32
    return %c0_i32, %c0_i32_0 : i32, i32
  }
  func.func @transform_16(%arg0: i32) -> (i32, i32) {
    %c0_i32 = arith.constant 0 : i32
    %c0_i32_0 = arith.constant 0 : i32
    %c0_i32_1 = arith.constant 0 : i32
    return %c0_i32, %c0_i32_0 : i32, i32
  }
  func.func @transform_17(%arg0: i32) -> (i32, i32, i32) {
    %c0_i32 = arith.constant 0 : i32
    %c0_i32_0 = arith.constant 0 : i32
    %c0_i32_1 = arith.constant 0 : i32
    return %arg0, %c0_i32, %c0_i32_0 : i32, i32, i32
  }
}

</mosaic_0001>

<llo_original>
// kernel: esa_forward_pallas.1
$region0: #{esa_forward_pallas.1}
  #allocation0 [shape = 'u32[]', space=smem, size = 0x4, offset = 0x4, fixed_abs, tag = 'smem constant byte address 0x4 - core index']
  #allocation1 [shape = 'u32[144,128]{1,0:T(1,128)}', space=vmem, size = 0x12000, scoped, tag = 'internal scratch']
  %s0 = inlined_call_operand.vmem [shape: f32[2,16,1024], index: 0, kind: input, shape index: {}]
  %s1 = inlined_call_operand.vmem [shape: f32[4,16], index: 1, kind: input, shape index: {}]
  %s2 = inlined_call_operand.vmem [shape: f32[4,1], index: 2, kind: input, shape index: {}]
  %s3 = inlined_call_operand.vmem [shape: f32[4,4], index: 3, kind: input, shape index: {}]
  %s4 = inlined_call_operand.vmem [shape: f32[4,1], index: 4, kind: input, shape index: {}]
  %s5 = inlined_call_operand.vmem [shape: f32[16,4], index: 5, kind: input, shape index: {}]
  %s6 = inlined_call_operand.vmem [shape: f32[16,1], index: 6, kind: input, shape index: {}]
  %s7 = inlined_call_operand.vmem [shape: f32[9,4,4], index: 7, kind: input, shape index: {}]
  %s8 = inlined_call_operand.vmem [shape: f32[4,1], index: 8, kind: input, shape index: {}]
  %s9 = inlined_call_operand.vmem [shape: f32[1024,9], index: 9, kind: input, shape index: {}]
  %s10 = inlined_call_operand.vmem [shape: f32[36,36], index: 10, kind: input, shape index: {}]
  %s11 = inlined_call_operand.vmem [shape: f32[1,36], index: 11, kind: input, shape index: {}]
  %s12 = inlined_call_operand.vmem [shape: f32[36,36], index: 12, kind: input, shape index: {}]
  %s13 = inlined_call_operand.vmem [shape: f32[1,36], index: 13, kind: input, shape index: {}]
  %s14 = inlined_call_operand.vmem [shape: f32[36,36], index: 14, kind: input, shape index: {}]
  %s15 = inlined_call_operand.vmem [shape: f32[1,36], index: 15, kind: input, shape index: {}]
  %s16 = inlined_call_operand.vmem [shape: f32[9,1024], index: 16, kind: input, shape index: {}]
  %s17 = inlined_call_operand.vmem [shape: f32[2,16,1024], index: 17, kind: output, shape index: {}]
  %s18 = sld [smem:[#allocation0]]
  $region101: #{esa_forward_pallas.1} parent=0
    _
  %s20 = ssub.s32 1, %s18
  %s21 = scalar_select 0, %s20, %s18
  loop: start=0, step=1, limit=4
  $region2: #{esa_forward_pallas.1} parent=0 // loop_pre_header
    _
  $region3: #{esa_forward_pallas.1} parent=0 // loop_header
    %s23 = sphi 0, %s27
    %p24 = scmp.ge.s32.totalorder %s23, 4
    %s33 = sphi 0, %s35
    %s36 = sphi 0, %s33
    %s37 = sphi 0, %s36
    %s53 = sphi 0, %s37
    %s57 = sphi 0, %s57
    %s59 = sphi 0, %s57
    %s60 = sphi 0, %s59
    %s74 = sphi 0, %s60
    %s78 = sphi 0, %s78
    %s80 = sphi 0, %s78
    %s81 = sphi 0, %s80
    %s95 = sphi 0, %s81
    %s99 = sphi 0, %s99
    %s101 = sphi 0, %s99
    %s102 = sphi 0, %s101
    %s116 = sphi 0, %s102
    %s120 = sphi 0, %s120
    %s122 = sphi 0, %s120
    %s123 = sphi 0, %s122
    %s137 = sphi 0, %s123
    %s141 = sphi 0, %s141
    %s143 = sphi 0, %s141
    %s144 = sphi 0, %s143
    %s158 = sphi 0, %s144
    %s162 = sphi 0, %s162
    %s164 = sphi 0, %s162
    %s165 = sphi 0, %s164
    %s179 = sphi 0, %s165
    %s183 = sphi 0, %s183
    %s185 = sphi 0, %s183
    %s186 = sphi 0, %s185
    %s200 = sphi 0, %s186
    %s204 = sphi 0, %s204
    %s206 = sphi 0, %s204
    %s207 = sphi 0, %s206
    %s221 = sphi 0, %s207
    %s225 = sphi 0, %s225
    %s227 = sphi 0, %s225
    %s228 = sphi 0, %s227
    %s242 = sphi 0, %s228
    %s246 = sphi 0, %s246
    %s248 = sphi 0, %s246
    %s249 = sphi 0, %s248
    %s263 = sphi 0, %s249
    %s267 = sphi 0, %s267
    %s269 = sphi 0, %s267
    %s270 = sphi 0, %s269
    %s284 = sphi 0, %s270
    %s288 = sphi 0, %s288
    %s290 = sphi 0, %s288
    %s291 = sphi 0, %s290
    %s305 = sphi 0, %s291
    %s309 = sphi 0, %s309
    %s311 = sphi 0, %s309
    %s312 = sphi 0, %s311
    %s326 = sphi 0, %s312
    %s330 = sphi 0, %s330
    %s332 = sphi 0, %s330
    %s333 = sphi 0, %s332
    %s347 = sphi 0, %s333
    %s351 = sphi 0, %s351
    %s353 = sphi 0, %s351
    %s354 = sphi 0, %s353
    %s368 = sphi 0, %s354
    %s372 = sphi 0, %s372
    %s374 = sphi 0, %s372
    %s375 = sphi 0, %s374
    %s389 = sphi 0, %s375
    %s395 = sphi 0, %s397
    %s398 = sphi 0, %s395
    %s399 = sphi 0, %s398
    %s415 = sphi 0, %s399
  $region4: #{esa_forward_pallas.1} parent=0 // loop_header_branch
    %26 = sbr.rel (%p24) target = $region8
  $region5: #{esa_forward_pallas.1} parent=0 // loop_body
    %s28 = ssub.s32 %s23, 1
    %s29 = ssub.s32 %s23, 2
    %s30 = sadd.s32 %s23, 1
    %s31 = ssub.s32 %s23, %s30
    %p32 = scmp.eq.s32.totalorder %s31, 0
    %s34 = sadd.s32 %s33, 1
    %s35 = scalar_select %p32, %s33, %s34
    %p38 = pneg %p32
    %p39 = scmp.eq.s32.totalorder %s23, 1
    %p40 = por %p38, %p39
    %p41 = scmp.ne.s32.totalorder %s33, %s36
    %p42 = scmp.eq.s32.totalorder %s23, 0
    %p43 = por %p41, %p42
    %p44 = scmp.ne.s32.totalorder %s33, %s36
    %p45 = scmp.eq.s32.totalorder %s28, 1
    %p46 = por %p44, %p45
    %p47 = scmp.ne.s32.totalorder %s36, %s37
    %p48 = scmp.eq.s32.totalorder %s28, 0
    %p49 = por %p47, %p48
    %p50 = scmp.ne.s32.totalorder %s36, %s37
    %p51 = scmp.eq.s32.totalorder %s29, 1
    %p52 = por %p50, %p51
    %p54 = scmp.ne.s32.totalorder %s37, %s53
    %p55 = scmp.eq.s32.totalorder %s29, 0
    %p56 = por %p54, %p55
    %s58 = sadd.s32 %s57, 1
    %p61 = scmp.eq.s32.totalorder %s23, 1
    %p62 = scmp.ne.s32.totalorder %s57, %s59
    %p63 = scmp.eq.s32.totalorder %s23, 0
    %p64 = por %p62, %p63
    %p65 = scmp.ne.s32.totalorder %s57, %s59
    %p66 = scmp.eq.s32.totalorder %s28, 1
    %p67 = por %p65, %p66
    %p68 = scmp.ne.s32.totalorder %s59, %s60
    %p69 = scmp.eq.s32.totalorder %s28, 0
    %p70 = por %p68, %p69
    %p71 = scmp.ne.s32.totalorder %s59, %s60
    %p72 = scmp.eq.s32.totalorder %s29, 1
    %p73 = por %p71, %p72
    %p75 = scmp.ne.s32.totalorder %s60, %s74
    %p76 = scmp.eq.s32.totalorder %s29, 0
    %p77 = por %p75, %p76
    %s79 = sadd.s32 %s78, 1
    %p82 = scmp.eq.s32.totalorder %s23, 1
    %p83 = scmp.ne.s32.totalorder %s78, %s80
    %p84 = scmp.eq.s32.totalorder %s23, 0
    %p85 = por %p83, %p84
    %p86 = scmp.ne.s32.totalorder %s78, %s80
    %p87 = scmp.eq.s32.totalorder %s28, 1
    %p88 = por %p86, %p87
    %p89 = scmp.ne.s32.totalorder %s80, %s81
    %p90 = scmp.eq.s32.totalorder %s28, 0
    %p91 = por %p89, %p90
    %p92 = scmp.ne.s32.totalorder %s80, %s81
    %p93 = scmp.eq.s32.totalorder %s29, 1
    %p94 = por %p92, %p93
    %p96 = scmp.ne.s32.totalorder %s81, %s95
    %p97 = scmp.eq.s32.totalorder %s29, 0
    %p98 = por %p96, %p97
    %s100 = sadd.s32 %s99, 1
    %p103 = scmp.eq.s32.totalorder %s23, 1
    %p104 = scmp.ne.s32.totalorder %s99, %s101
    %p105 = scmp.eq.s32.totalorder %s23, 0
    %p106 = por %p104, %p105
    %p107 = scmp.ne.s32.totalorder %s99, %s101
    %p108 = scmp.eq.s32.totalorder %s28, 1
    %p109 = por %p107, %p108
    %p110 = scmp.ne.s32.totalorder %s101, %s102
    %p111 = scmp.eq.s32.totalorder %s28, 0
    %p112 = por %p110, %p111
    %p113 = scmp.ne.s32.totalorder %s101, %s102
    %p114 = scmp.eq.s32.totalorder %s29, 1
    %p115 = por %p113, %p114
    %p117 = scmp.ne.s32.totalorder %s102, %s116
    %p118 = scmp.eq.s32.totalorder %s29, 0
    %p119 = por %p117, %p118
    %s121 = sadd.s32 %s120, 1
    %p124 = scmp.eq.s32.totalorder %s23, 1
    %p125 = scmp.ne.s32.totalorder %s120, %s122
    %p126 = scmp.eq.s32.totalorder %s23, 0
    %p127 = por %p125, %p126
    %p128 = scmp.ne.s32.totalorder %s120, %s122
    %p129 = scmp.eq.s32.totalorder %s28, 1
    %p130 = por %p128, %p129
    %p131 = scmp.ne.s32.totalorder %s122, %s123
    %p132 = scmp.eq.s32.totalorder %s28, 0
    %p133 = por %p131, %p132
    %p134 = scmp.ne.s32.totalorder %s122, %s123
    %p135 = scmp.eq.s32.totalorder %s29, 1
    %p136 = por %p134, %p135
    %p138 = scmp.ne.s32.totalorder %s123, %s137
    %p139 = scmp.eq.s32.totalorder %s29, 0
    %p140 = por %p138, %p139
    %s142 = sadd.s32 %s141, 1
    %p145 = scmp.eq.s32.totalorder %s23, 1
    %p146 = scmp.ne.s32.totalorder %s141, %s143
    %p147 = scmp.eq.s32.totalorder %s23, 0
    %p148 = por %p146, %p147
    %p149 = scmp.ne.s32.totalorder %s141, %s143
    %p150 = scmp.eq.s32.totalorder %s28, 1
    %p151 = por %p149, %p150
    %p152 = scmp.ne.s32.totalorder %s143, %s144
    %p153 = scmp.eq.s32.totalorder %s28, 0
    %p154 = por %p152, %p153
    %p155 = scmp.ne.s32.totalorder %s143, %s144
    %p156 = scmp.eq.s32.totalorder %s29, 1
    %p157 = por %p155, %p156
    %p159 = scmp.ne.s32.totalorder %s144, %s158
    %p160 = scmp.eq.s32.totalorder %s29, 0
    %p161 = por %p159, %p160
    %s163 = sadd.s32 %s162, 1
    %p166 = scmp.eq.s32.totalorder %s23, 1
    %p167 = scmp.ne.s32.totalorder %s162, %s164
    %p168 = scmp.eq.s32.totalorder %s23, 0
    %p169 = por %p167, %p168
    %p170 = scmp.ne.s32.totalorder %s162, %s164
    %p171 = scmp.eq.s32.totalorder %s28, 1
    %p172 = por %p170, %p171
    %p173 = scmp.ne.s32.totalorder %s164, %s165
    %p174 = scmp.eq.s32.totalorder %s28, 0
    %p175 = por %p173, %p174
    %p176 = scmp.ne.s32.totalorder %s164, %s165
    %p177 = scmp.eq.s32.totalorder %s29, 1
    %p178 = por %p176, %p177
    %p180 = scmp.ne.s32.totalorder %s165, %s179
    %p181 = scmp.eq.s32.totalorder %s29, 0
    %p182 = por %p180, %p181
    %s184 = sadd.s32 %s183, 1
    %p187 = scmp.eq.s32.totalorder %s23, 1
    %p188 = scmp.ne.s32.totalorder %s183, %s185
    %p189 = scmp.eq.s32.totalorder %s23, 0
    %p190 = por %p188, %p189
    %p191 = scmp.ne.s32.totalorder %s183, %s185
    %p192 = scmp.eq.s32.totalorder %s28, 1
    %p193 = por %p191, %p192
    %p194 = scmp.ne.s32.totalorder %s185, %s186
    %p195 = scmp.eq.s32.totalorder %s28, 0
    %p196 = por %p194, %p195
    %p197 = scmp.ne.s32.totalorder %s185, %s186
    %p198 = scmp.eq.s32.totalorder %s29, 1
    %p199 = por %p197, %p198
    %p201 = scmp.ne.s32.totalorder %s186, %s200
    %p202 = scmp.eq.s32.totalorder %s29, 0
    %p203 = por %p201, %p202
    %s205 = sadd.s32 %s204, 1
    %p208 = scmp.eq.s32.totalorder %s23, 1
    %p209 = scmp.ne.s32.totalorder %s204, %s206
    %p210 = scmp.eq.s32.totalorder %s23, 0
    %p211 = por %p209, %p210
    %p212 = scmp.ne.s32.totalorder %s204, %s206
    %p213 = scmp.eq.s32.totalorder %s28, 1
    %p214 = por %p212, %p213
    %p215 = scmp.ne.s32.totalorder %s206, %s207
    %p216 = scmp.eq.s32.totalorder %s28, 0
    %p217 = por %p215, %p216
    %p218 = scmp.ne.s32.totalorder %s206, %s207
    %p219 = scmp.eq.s32.totalorder %s29, 1
    %p220 = por %p218, %p219
    %p222 = scmp.ne.s32.totalorder %s207, %s221
    %p223 = scmp.eq.s32.totalorder %s29, 0
    %p224 = por %p222, %p223
    %s226 = sadd.s32 %s225, 1
    %p229 = scmp.eq.s32.totalorder %s23, 1
    %p230 = scmp.ne.s32.totalorder %s225, %s227
    %p231 = scmp.eq.s32.totalorder %s23, 0
    %p232 = por %p230, %p231
    %p233 = scmp.ne.s32.totalorder %s225, %s227
    %p234 = scmp.eq.s32.totalorder %s28, 1
    %p235 = por %p233, %p234
    %p236 = scmp.ne.s32.totalorder %s227, %s228
    %p237 = scmp.eq.s32.totalorder %s28, 0
    %p238 = por %p236, %p237
    %p239 = scmp.ne.s32.totalorder %s227, %s228
    %p240 = scmp.eq.s32.totalorder %s29, 1
    %p241 = por %p239, %p240
    %p243 = scmp.ne.s32.totalorder %s228, %s242
    %p244 = scmp.eq.s32.totalorder %s29, 0
    %p245 = por %p243, %p244
    %s247 = sadd.s32 %s246, 1
    %p250 = scmp.eq.s32.totalorder %s23, 1
    %p251 = scmp.ne.s32.totalorder %s246, %s248
    %p252 = scmp.eq.s32.totalorder %s23, 0
    %p253 = por %p251, %p252
    %p254 = scmp.ne.s32.totalorder %s246, %s248
    %p255 = scmp.eq.s32.totalorder %s28, 1
    %p256 = por %p254, %p255
    %p257 = scmp.ne.s32.totalorder %s248, %s249
    %p258 = scmp.eq.s32.totalorder %s28, 0
    %p259 = por %p257, %p258
    %p260 = scmp.ne.s32.totalorder %s248, %s249
    %p261 = scmp.eq.s32.totalorder %s29, 1
    %p262 = por %p260, %p261
    %p264 = scmp.ne.s32.totalorder %s249, %s263
    %p265 = scmp.eq.s32.totalorder %s29, 0
    %p266 = por %p264, %p265
    %s268 = sadd.s32 %s267, 1
    %p271 = scmp.eq.s32.totalorder %s23, 1
    %p272 = scmp.ne.s32.totalorder %s267, %s269
    %p273 = scmp.eq.s32.totalorder %s23, 0
    %p274 = por %p272, %p273
    %p275 = scmp.ne.s32.totalorder %s267, %s269
    %p276 = scmp.eq.s32.totalorder %s28, 1
    %p277 = por %p275, %p276
    %p278 = scmp.ne.s32.totalorder %s269, %s270
    %p279 = scmp.eq.s32.totalorder %s28, 0
    %p280 = por %p278, %p279
    %p281 = scmp.ne.s32.totalorder %s269, %s270
    %p282 = scmp.eq.s32.totalorder %s29, 1
    %p283 = por %p281, %p282
    %p285 = scmp.ne.s32.totalorder %s270, %s284
    %p286 = scmp.eq.s32.totalorder %s29, 0
    %p287 = por %p285, %p286
    %s289 = sadd.s32 %s288, 1
    %p292 = scmp.eq.s32.totalorder %s23, 1
    %p293 = scmp.ne.s32.totalorder %s288, %s290
    %p294 = scmp.eq.s32.totalorder %s23, 0
    %p295 = por %p293, %p294
    %p296 = scmp.ne.s32.totalorder %s288, %s290
    %p297 = scmp.eq.s32.totalorder %s28, 1
    %p298 = por %p296, %p297
    %p299 = scmp.ne.s32.totalorder %s290, %s291
    %p300 = scmp.eq.s32.totalorder %s28, 0
    %p301 = por %p299, %p300
    %p302 = scmp.ne.s32.totalorder %s290, %s291
    %p303 = scmp.eq.s32.totalorder %s29, 1
    %p304 = por %p302, %p303
    %p306 = scmp.ne.s32.totalorder %s291, %s305
    %p307 = scmp.eq.s32.totalorder %s29, 0
    %p308 = por %p306, %p307
    %s310 = sadd.s32 %s309, 1
    %p313 = scmp.eq.s32.totalorder %s23, 1
    %p314 = scmp.ne.s32.totalorder %s309, %s311
    %p315 = scmp.eq.s32.totalorder %s23, 0
    %p316 = por %p314, %p315
    %p317 = scmp.ne.s32.totalorder %s309, %s311
    %p318 = scmp.eq.s32.totalorder %s28, 1
    %p319 = por %p317, %p318
    %p320 = scmp.ne.s32.totalorder %s311, %s312
    %p321 = scmp.eq.s32.totalorder %s28, 0
    %p322 = por %p320, %p321
    %p323 = scmp.ne.s32.totalorder %s311, %s312
    %p324 = scmp.eq.s32.totalorder %s29, 1
    %p325 = por %p323, %p324
    %p327 = scmp.ne.s32.totalorder %s312, %s326
    %p328 = scmp.eq.s32.totalorder %s29, 0
    %p329 = por %p327, %p328
    %s331 = sadd.s32 %s330, 1
    %p334 = scmp.eq.s32.totalorder %s23, 1
    %p335 = scmp.ne.s32.totalorder %s330, %s332
    %p336 = scmp.eq.s32.totalorder %s23, 0
    %p337 = por %p335, %p336
    %p338 = scmp.ne.s32.totalorder %s330, %s332
    %p339 = scmp.eq.s32.totalorder %s28, 1
    %p340 = por %p338, %p339
    %p341 = scmp.ne.s32.totalorder %s332, %s333
    %p342 = scmp.eq.s32.totalorder %s28, 0
    %p343 = por %p341, %p342
    %p344 = scmp.ne.s32.totalorder %s332, %s333
    %p345 = scmp.eq.s32.totalorder %s29, 1
    %p346 = por %p344, %p345
    %p348 = scmp.ne.s32.totalorder %s333, %s347
    %p349 = scmp.eq.s32.totalorder %s29, 0
    %p350 = por %p348, %p349
    %s352 = sadd.s32 %s351, 1
    %p355 = scmp.eq.s32.totalorder %s23, 1
    %p356 = scmp.ne.s32.totalorder %s351, %s353
    %p357 = scmp.eq.s32.totalorder %s23, 0
    %p358 = por %p356, %p357
    %p359 = scmp.ne.s32.totalorder %s351, %s353
    %p360 = scmp.eq.s32.totalorder %s28, 1
    %p361 = por %p359, %p360
    %p362 = scmp.ne.s32.totalorder %s353, %s354
    %p363 = scmp.eq.s32.totalorder %s28, 0
    %p364 = por %p362, %p363
    %p365 = scmp.ne.s32.totalorder %s353, %s354
    %p366 = scmp.eq.s32.totalorder %s29, 1
    %p367 = por %p365, %p366
    %p369 = scmp.ne.s32.totalorder %s354, %s368
    %p370 = scmp.eq.s32.totalorder %s29, 0
    %p371 = por %p369, %p370
    %s373 = sadd.s32 %s372, 1
    %p376 = scmp.eq.s32.totalorder %s23, 1
    %p377 = scmp.ne.s32.totalorder %s372, %s374
    %p378 = scmp.eq.s32.totalorder %s23, 0
    %p379 = por %p377, %p378
    %p380 = scmp.ne.s32.totalorder %s372, %s374
    %p381 = scmp.eq.s32.totalorder %s28, 1
    %p382 = por %p380, %p381
    %p383 = scmp.ne.s32.totalorder %s374, %s375
    %p384 = scmp.eq.s32.totalorder %s28, 0
    %p385 = por %p383, %p384
    %p386 = scmp.ne.s32.totalorder %s374, %s375
    %p387 = scmp.eq.s32.totalorder %s29, 1
    %p388 = por %p386, %p387
    %p390 = scmp.ne.s32.totalorder %s375, %s389
    %p391 = scmp.eq.s32.totalorder %s29, 0
    %p392 = por %p390, %p391
    %s393 = ssub.s32 %s23, %s30
    %p394 = scmp.eq.s32.totalorder %s393, 0
    %s396 = sadd.s32 %s395, 1
    %s397 = scalar_select %p394, %s395, %s396
    %p400 = pneg %p394
    %p401 = scmp.eq.s32.totalorder %s23, 1
    %p402 = por %p400, %p401
    %p403 = scmp.ne.s32.totalorder %s395, %s398
    %p404 = scmp.eq.s32.totalorder %s23, 0
    %p405 = por %p403, %p404
    %p406 = scmp.ne.s32.totalorder %s395, %s398
    %p407 = scmp.eq.s32.totalorder %s28, 1
    %p408 = por %p406, %p407
    %p409 = scmp.ne.s32.totalorder %s398, %s399
    %p410 = scmp.eq.s32.totalorder %s28, 0
    %p411 = por %p409, %p410
    %p412 = scmp.ne.s32.totalorder %s398, %s399
    %p413 = scmp.eq.s32.totalorder %s29, 1
    %p414 = por %p412, %p413
    %p416 = scmp.ne.s32.totalorder %s399, %s415
    %p417 = scmp.eq.s32.totalorder %s29, 0
    %p418 = por %p416, %p417
    %p419 = scmp.le.s32.totalorder 1, %s23
    %p420 = scmp.lt.s32.totalorder %s23, 3
    %p421 = pnand %p419, %p420
    %p422 = pneg %p421
    // Predicated region
    $region9: #{esa_forward_pallas.1} parent=5 // pred_check
      _
    $region10: #{esa_forward_pallas.1} parent=5 // pred_check_branch
      %424 = sbr.rel (%p421) target = $region12
    $region11: #{esa_forward_pallas.1} parent=5 // pred_region
      %s425 = ssub.s32 %s23, 1
      // Predicated region
      $region13: #{esa_forward_pallas.1} parent=11 // pred_check
        %p426 = pneg %p70
      $region14: #{esa_forward_pallas.1} parent=11 // pred_check_branch
        %428 = sbr.rel (%p426) target = $region16
      $region15: #{esa_forward_pallas.1} parent=11 // pred_region
        _
      $region16: #{esa_forward_pallas.1} parent=11 // pred_fallthru
        _
      // Predicated region
      $region17: #{esa_forward_pallas.1} parent=11 // pred_check
        %p429 = pneg %p91
      $region18: #{esa_forward_pallas.1} parent=11 // pred_check_branch
        %431 = sbr.rel (%p429) target = $region20
      $region19: #{esa_forward_pallas.1} parent=11 // pred_region
        _
      $region20: #{esa_forward_pallas.1} parent=11 // pred_fallthru
        _
      // Predicated region
      $region21: #{esa_forward_pallas.1} parent=11 // pred_check
        %p432 = pneg %p112
      $region22: #{esa_forward_pallas.1} parent=11 // pred_check_branch
        %434 = sbr.rel (%p432) target = $region24
      $region23: #{esa_forward_pallas.1} parent=11 // pred_region
        _
      $region24: #{esa_forward_pallas.1} parent=11 // pred_fallthru
        _
      // Predicated region
      $region25: #{esa_forward_pallas.1} parent=11 // pred_check
        %p435 = pneg %p133
      $region26: #{esa_forward_pallas.1} parent=11 // pred_check_branch
        %437 = sbr.rel (%p435) target = $region28
      $region27: #{esa_forward_pallas.1} parent=11 // pred_region
        _
      $region28: #{esa_forward_pallas.1} parent=11 // pred_fallthru
        _
      // Predicated region
      $region29: #{esa_forward_pallas.1} parent=11 // pred_check
        %p438 = pneg %p154
      $region30: #{esa_forward_pallas.1} parent=11 // pred_check_branch
        %440 = sbr.rel (%p438) target = $region32
      $region31: #{esa_forward_pallas.1} parent=11 // pred_region
        _
      $region32: #{esa_forward_pallas.1} parent=11 // pred_fallthru
        _
      // Predicated region
      $region33: #{esa_forward_pallas.1} parent=11 // pred_check
        %p441 = pneg %p175
      $region34: #{esa_forward_pallas.1} parent=11 // pred_check_branch
        %443 = sbr.rel (%p441) target = $region36
      $region35: #{esa_forward_pallas.1} parent=11 // pred_region
        _
      $region36: #{esa_forward_pallas.1} parent=11 // pred_fallthru
        _
      // Predicated region
      $region37: #{esa_forward_pallas.1} parent=11 // pred_check
        %p444 = pneg %p196
      $region38: #{esa_forward_pallas.1} parent=11 // pred_check_branch
        %446 = sbr.rel (%p444) target = $region40
      $region39: #{esa_forward_pallas.1} parent=11 // pred_region
        _
      $region40: #{esa_forward_pallas.1} parent=11 // pred_fallthru
        _
      // Predicated region
      $region41: #{esa_forward_pallas.1} parent=11 // pred_check
        %p447 = pneg %p217
      $region42: #{esa_forward_pallas.1} parent=11 // pred_check_branch
        %449 = sbr.rel (%p447) target = $region44
      $region43: #{esa_forward_pallas.1} parent=11 // pred_region
        _
      $region44: #{esa_forward_pallas.1} parent=11 // pred_fallthru
        _
      // Predicated region
      $region45: #{esa_forward_pallas.1} parent=11 // pred_check
        %p450 = pneg %p238
      $region46: #{esa_forward_pallas.1} parent=11 // pred_check_branch
        %452 = sbr.rel (%p450) target = $region48
      $region47: #{esa_forward_pallas.1} parent=11 // pred_region
        _
      $region48: #{esa_forward_pallas.1} parent=11 // pred_fallthru
        _
      // Predicated region
      $region49: #{esa_forward_pallas.1} parent=11 // pred_check
        %p453 = pneg %p259
      $region50: #{esa_forward_pallas.1} parent=11 // pred_check_branch
        %455 = sbr.rel (%p453) target = $region52
      $region51: #{esa_forward_pallas.1} parent=11 // pred_region
        _
      $region52: #{esa_forward_pallas.1} parent=11 // pred_fallthru
        _
      // Predicated region
      $region53: #{esa_forward_pallas.1} parent=11 // pred_check
        %p456 = pneg %p280
      $region54: #{esa_forward_pallas.1} parent=11 // pred_check_branch
        %458 = sbr.rel (%p456) target = $region56
      $region55: #{esa_forward_pallas.1} parent=11 // pred_region
        _
      $region56: #{esa_forward_pallas.1} parent=11 // pred_fallthru
        _
      // Predicated region
      $region57: #{esa_forward_pallas.1} parent=11 // pred_check
        %p459 = pneg %p301
      $region58: #{esa_forward_pallas.1} parent=11 // pred_check_branch
        %461 = sbr.rel (%p459) target = $region60
      $region59: #{esa_forward_pallas.1} parent=11 // pred_region
        _
      $region60: #{esa_forward_pallas.1} parent=11 // pred_fallthru
        _
      // Predicated region
      $region61: #{esa_forward_pallas.1} parent=11 // pred_check
        %p462 = pneg %p322
      $region62: #{esa_forward_pallas.1} parent=11 // pred_check_branch
        %464 = sbr.rel (%p462) target = $region64
      $region63: #{esa_forward_pallas.1} parent=11 // pred_region
        _
      $region64: #{esa_forward_pallas.1} parent=11 // pred_fallthru
        _
      // Predicated region
      $region65: #{esa_forward_pallas.1} parent=11 // pred_check
        %p465 = pneg %p343
      $region66: #{esa_forward_pallas.1} parent=11 // pred_check_branch
        %467 = sbr.rel (%p465) target = $region68
      $region67: #{esa_forward_pallas.1} parent=11 // pred_region
        _
      $region68: #{esa_forward_pallas.1} parent=11 // pred_fallthru
        _
      // Predicated region
      $region69: #{esa_forward_pallas.1} parent=11 // pred_check
        %p468 = pneg %p364
      $region70: #{esa_forward_pallas.1} parent=11 // pred_check_branch
        %470 = sbr.rel (%p468) target = $region72
      $region71: #{esa_forward_pallas.1} parent=11 // pred_region
        _
      $region72: #{esa_forward_pallas.1} parent=11 // pred_fallthru
        _
      // Predicated region
      $region73: #{esa_forward_pallas.1} parent=11 // pred_check
        %p471 = pneg %p385
      $region74: #{esa_forward_pallas.1} parent=11 // pred_check_branch
        %473 = sbr.rel (%p471) target = $region76
      $region75: #{esa_forward_pallas.1} parent=11 // pred_region
        _
      $region76: #{esa_forward_pallas.1} parent=11 // pred_fallthru
        _
    $region12: #{esa_forward_pallas.1} parent=5 // pred_fallthru
      _
    %p474 = scmp.lt.s32.totalorder %s23, 2
    // Predicated region
    $region77: #{esa_forward_pallas.1} parent=5 // pred_check
      %p475 = pneg %p474
    $region78: #{esa_forward_pallas.1} parent=5 // pred_check_branch
      %477 = sbr.rel (%p475) target = $region80
    $region79: #{esa_forward_pallas.1} parent=5 // pred_region
      // Predicated region
      $region81: #{esa_forward_pallas.1} parent=79 // pred_check
        %p478 = pneg %p43
      $region82: #{esa_forward_pallas.1} parent=79 // pred_check_branch
        %480 = sbr.rel (%p478) target = $region84
      $region83: #{esa_forward_pallas.1} parent=79 // pred_region
        %p481 = scmp.lt.s32.totalorder %s23, 1
        %s482 = scalar_select %p481, %s23, 1
        %s483 = smul.addr %s482, 16
        %s484 = smul.addr %s483, 8
        %s485 = scalar_lea.vmem %s0, %s484
      $region84: #{esa_forward_pallas.1} parent=79 // pred_fallthru
        _
    $region80: #{esa_forward_pallas.1} parent=5 // pred_fallthru
      _
    %p486 = scmp.le.s32.totalorder 1, %s23
    %p487 = scmp.lt.s32.totalorder %s23, 3
    %p488 = pnand %p486, %p487
    %p489 = pneg %p488
    // Predicated region
    $region85: #{esa_forward_pallas.1} parent=5 // pred_check
      _
    $region86: #{esa_forward_pallas.1} parent=5 // pred_check_branch
      %491 = sbr.rel (%p488) target = $region88
    $region87: #{esa_forward_pallas.1} parent=5 // pred_region
      %s492 = ssub.s32 %s23, 1
      %p493 = scmp.lt.s32.totalorder %s28, 1
      %s494 = scalar_select %p493, %s28, 1
      %s495 = smul.addr %s494, 16
      %s496 = smul.addr %s495, 8
      %s497 = scalar_lea.vmem %s0, %s496
      %p498 = pneg %p49
      %p499 = pneg %p46
      %p500 = pneg %p70
      %p501 = pneg %p67
      %p502 = pneg %p91
      %p503 = pneg %p88
      %p504 = pneg %p112
      %p505 = pneg %p109
      %p506 = pneg %p133
      %p507 = pneg %p130
      %p508 = pneg %p154
      %p509 = pneg %p151
      %p510 = pneg %p175
      %p511 = pneg %p172
      %p512 = pneg %p196
      %p513 = pneg %p193
      %p514 = pneg %p217
      %p515 = pneg %p214
      %p516 = pneg %p238
      %p517 = pneg %p235
      %p518 = pneg %p259
      %p519 = pneg %p256
      %p520 = pneg %p280
      %p521 = pneg %p277
      %p522 = pneg %p301
      %p523 = pneg %p298
      %p524 = pneg %p322
      %p525 = pneg %p319
      %p526 = pneg %p343
      %p527 = pneg %p340
      %p528 = pneg %p364
      %p529 = pneg %p361
      %p530 = pneg %p385
      %p531 = pneg %p382
      %p532 = pneg %p411
      %p533 = pneg %p408
      %p534 = scmp.lt.s32.totalorder %s28, 1
      %s535 = scalar_select %p534, %s28, 1
      %s536 = smul.addr %s535, 16
      %s537 = smul.addr %s536, 8
      %s538 = scalar_lea.vmem %s17, %s537
      %p539 = scmp.lt.s32.totalorder %s28, 1
      %s540 = scalar_select %p539, %s28, 1
      %s541 = smul.addr %s540, 16
      %s542 = smul.addr %s541, 8
      %s543 = scalar_lea.vmem %s0, %s542
      %p544 = scmp.lt.s32.totalorder %s28, 1
      %s545 = scalar_select %p544, %s28, 1
      %s546 = smul.addr %s545, 16
      %s547 = smul.addr %s546, 8
      %s548 = scalar_lea.vmem %s17, %s547
      %v549 = vld [vmem:[%s1] sm:$0xf]
      %v550 = vld [vmem:[%s543] sm:$0xff]
      %v551 = vld [vmem:[%s543 + $0x8] sm:$0xff]
      %v552 = vld [vmem:[%s543 + $0x10] sm:$0xff]
      %v553 = vld [vmem:[%s543 + $0x18] sm:$0xff]
      %v554 = vld [vmem:[%s543 + $0x20] sm:$0xff]
      %v555 = vld [vmem:[%s543 + $0x28] sm:$0xff]
      %v556 = vld [vmem:[%s543 + $0x30] sm:$0xff]
      %v557 = vld [vmem:[%s543 + $0x38] sm:$0xff]
      %v558 = vld [vmem:[%s543 + $0x40] sm:$0xff]
      %v559 = vld [vmem:[%s543 + $0x48] sm:$0xff]
      %v560 = vld [vmem:[%s543 + $0x50] sm:$0xff]
      %v561 = vld [vmem:[%s543 + $0x58] sm:$0xff]
      %v562 = vld [vmem:[%s543 + $0x60] sm:$0xff]
      %v563 = vld [vmem:[%s543 + $0x68] sm:$0xff]
      %v564 = vld [vmem:[%s543 + $0x70] sm:$0xff]
      %v565 = vld [vmem:[%s543 + $0x78] sm:$0xff]
      %v566 = vld [vmem:[%s2] sm:$0xf]
      %568 = vset.pattern.permute.xlu0 0
      %569 = vperm.xlu0 %568, %v566
      %v570 = vpop.permute.xlu0 %569
      %vm572 = vcmask 130048
      %v574 = vsel %vm572, %v549, 0
      %576 = vmatprep.subr.mxu0 %v551
      %577 = vmatpush1.msra.mxu0 %v550
      %578 = vmatprep.subr.mxu0 %v559
      %579 = vmatpush1.msra.mxu0 %v558
      %580 = vmatprep.subr.mxu0 0.0
      %581 = vmatpush1.msra.mxu0 0.0
      %582 = vmatprep.subr.mxu0 0.0
      %583 = vmatpush1.msra.mxu0 0.0
      %584 = vmatprep.subr.mxu0 0.0
      %585 = vmatpush1.msra.mxu0 0.0
      %586 = vmatprep.subr.mxu0 0.0
      %587 = vmatpush1.msra.mxu0 0.0
      %588 = vmatprep.subr.mxu0 0.0
      %589 = vmatpush1.msra.mxu0 0.0
      %590 = vmatprep.subr.mxu0 0.0
      %591 = vmatpush1.msra.mxu0 0.0
      %592 = vmatprep.subr.mxu0 0.0
      %593 = vmatpush1.msra.mxu0 0.0
      %594 = vmatprep.subr.mxu0 0.0
      %595 = vmatpush1.msra.mxu0 0.0
      %596 = vmatprep.subr.mxu0 0.0
      %597 = vmatpush1.msra.mxu0 0.0
      %598 = vmatprep.subr.mxu0 0.0
      %599 = vmatpush1.msra.mxu0 0.0
      %600 = vmatprep.subr.mxu0 0.0
      %601 = vmatpush1.msra.mxu0 0.0
      %602 = vmatprep.subr.mxu0 0.0
      %603 = vmatpush1.msra.mxu0 0.0
      %604 = vmatprep.subr.mxu0 0.0
      %605 = vmatpush1.msra.mxu0 0.0
      %606 = vmatprep.subr.mxu0 0.0
      %607 = vmatpush1.msra.mxu0 0.0
      %608 = vmatprep.subr.mxu0 0.0
      %609 = vmatpush1.msra.mxu0 0.0
      %610 = vmatprep.subr.mxu0 0.0
      %611 = vmatpush1.msra.mxu0 0.0
      %612 = vmatprep.subr.mxu0 0.0
      %613 = vmatpush1.msra.mxu0 0.0
      %614 = vmatprep.subr.mxu0 0.0
      %615 = vmatpush1.msra.mxu0 0.0
      %616 = vmatprep.subr.mxu0 0.0
      %617 = vmatpush1.msra.mxu0 0.0
      %618 = vmatprep.subr.mxu0 0.0
      %619 = vmatpush1.msra.mxu0 0.0
      %620 = vmatprep.subr.mxu0 0.0
      %621 = vmatpush1.msra.mxu0 0.0
      %622 = vmatprep.subr.mxu0 0.0
      %623 = vmatpush1.msra.mxu0 0.0
      %624 = vmatprep.subr.mxu0 0.0
      %625 = vmatpush1.msra.mxu0 0.0
      %626 = vmatprep.subr.mxu0 0.0
      %627 = vmatpush1.msra.mxu0 0.0
      %628 = vmatprep.subr.mxu0 0.0
      %629 = vmatpush1.msra.mxu0 0.0
      %630 = vmatprep.subr.mxu0 0.0
      %631 = vmatpush1.msra.mxu0 0.0
      %632 = vmatprep.subr.mxu0 0.0
      %633 = vmatpush1.msra.mxu0 0.0
      %634 = vmatprep.subr.mxu0 0.0
      %635 = vmatpush1.msra.mxu0 0.0
      %636 = vmatprep.subr.mxu0 0.0
      %637 = vmatpush1.msra.mxu0 0.0
      %638 = vmatprep.subr.mxu0 0.0
      %639 = vmatpush1.msra.mxu0 0.0
      %640 = vmatprep.mubr.f32.mxu0 0.0
      %641 = vmatmul.mubr.f32.gmra.mrb[0].mxu0 %v574
      %v642 = vpop.f32.mrb[0].mxu0
      %v643 = vadd.f32 %v570, %v642
      %v644 = vpop.f32.mrb[0].mxu0
      %v645 = vadd.f32 %v570, %v644
      %646 = vdwg.mxu0
      %647 = vmatprep.subr.mxu0 %v553
      %648 = vmatpush1.msra.mxu0 %v552
      %649 = vmatprep.subr.mxu0 %v561
      %650 = vmatpush1.msra.mxu0 %v560
      %651 = vmatprep.subr.mxu0 0.0
      %652 = vmatpush1.msra.mxu0 0.0
      %653 = vmatprep.subr.mxu0 0.0
      %654 = vmatpush1.msra.mxu0 0.0
      %655 = vmatprep.subr.mxu0 0.0
      %656 = vmatpush1.msra.mxu0 0.0
      %657 = vmatprep.subr.mxu0 0.0
      %658 = vmatpush1.msra.mxu0 0.0
      %659 = vmatprep.subr.mxu0 0.0
      %660 = vmatpush1.msra.mxu0 0.0
      %661 = vmatprep.subr.mxu0 0.0
      %662 = vmatpush1.msra.mxu0 0.0
      %663 = vmatprep.subr.mxu0 0.0
      %664 = vmatpush1.msra.mxu0 0.0
      %665 = vmatprep.subr.mxu0 0.0
      %666 = vmatpush1.msra.mxu0 0.0
      %667 = vmatprep.subr.mxu0 0.0
      %668 = vmatpush1.msra.mxu0 0.0
      %669 = vmatprep.subr.mxu0 0.0
      %670 = vmatpush1.msra.mxu0 0.0
      %671 = vmatprep.subr.mxu0 0.0
      %672 = vmatpush1.msra.mxu0 0.0
      %673 = vmatprep.subr.mxu0 0.0
      %674 = vmatpush1.msra.mxu0 0.0
      %675 = vmatprep.subr.mxu0 0.0
      %676 = vmatpush1.msra.mxu0 0.0
      %677 = vmatprep.subr.mxu0 0.0
      %678 = vmatpush1.msra.mxu0 0.0
      %679 = vmatprep.subr.mxu0 0.0
      %680 = vmatpush1.msra.mxu0 0.0
      %681 = vmatprep.subr.mxu0 0.0
      %682 = vmatpush1.msra.mxu0 0.0
      %683 = vmatprep.subr.mxu0 0.0
      %684 = vmatpush1.msra.mxu0 0.0
      %685 = vmatprep.subr.mxu0 0.0
      %686 = vmatpush1.msra.mxu0 0.0
      %687 = vmatprep.subr.mxu0 0.0
      %688 = vmatpush1.msra.mxu0 0.0
      %689 = vmatprep.subr.mxu0 0.0
      %690 = vmatpush1.msra.mxu0 0.0
      %691 = vmatprep.subr.mxu0 0.0
      %692 = vmatpush1.msra.mxu0 0.0
      %693 = vmatprep.subr.mxu0 0.0
      %694 = vmatpush1.msra.mxu0 0.0
      %695 = vmatprep.subr.mxu0 0.0
      %696 = vmatpush1.msra.mxu0 0.0
      %697 = vmatprep.subr.mxu0 0.0
      %698 = vmatpush1.msra.mxu0 0.0
      %699 = vmatprep.subr.mxu0 0.0
      %700 = vmatpush1.msra.mxu0 0.0
      %701 = vmatprep.subr.mxu0 0.0
      %702 = vmatpush1.msra.mxu0 0.0
      %703 = vmatprep.subr.mxu0 0.0
      %704 = vmatpush1.msra.mxu0 0.0
      %705 = vmatprep.subr.mxu0 0.0
      %706 = vmatpush1.msra.mxu0 0.0
      %707 = vmatprep.subr.mxu0 0.0
      %708 = vmatpush1.msra.mxu0 0.0
      %709 = vmatprep.subr.mxu0 0.0
      %710 = vmatpush1.msra.mxu0 0.0
      %711 = vmatprep.mubr.f32.mxu0 0.0
      %712 = vmatmul.mubr.f32.gmra.mrb[0].mxu0 %v574
      %v713 = vpop.f32.mrb[0].mxu0
      %v714 = vadd.f32 %v570, %v713
      %v715 = vpop.f32.mrb[0].mxu0
      %v716 = vadd.f32 %v570, %v715
      %717 = vdwg.mxu0
      %718 = vmatprep.subr.mxu0 %v555
      %719 = vmatpush1.msra.mxu0 %v554
      %720 = vmatprep.subr.mxu0 %v563
      %721 = vmatpush1.msra.mxu0 %v562
      %722 = vmatprep.subr.mxu0 0.0
      %723 = vmatpush1.msra.mxu0 0.0
      %724 = vmatprep.subr.mxu0 0.0
      %725 = vmatpush1.msra.mxu0 0.0
      %726 = vmatprep.subr.mxu0 0.0
      %727 = vmatpush1.msra.mxu0 0.0
      %728 = vmatprep.subr.mxu0 0.0
      %729 = vmatpush1.msra.mxu0 0.0
      %730 = vmatprep.subr.mxu0 0.0
      %731 = vmatpush1.msra.mxu0 0.0
      %732 = vmatprep.subr.mxu0 0.0
      %733 = vmatpush1.msra.mxu0 0.0
      %734 = vmatprep.subr.mxu0 0.0
      %735 = vmatpush1.msra.mxu0 0.0
      %736 = vmatprep.subr.mxu0 0.0
      %737 = vmatpush1.msra.mxu0 0.0
      %738 = vmatprep.subr.mxu0 0.0
      %739 = vmatpush1.msra.mxu0 0.0
      %740 = vmatprep.subr.mxu0 0.0
      %741 = vmatpush1.msra.mxu0 0.0
      %742 = vmatprep.subr.mxu0 0.0
      %743 = vmatpush1.msra.mxu0 0.0
      %744 = vmatprep.subr.mxu0 0.0
      %745 = vmatpush1.msra.mxu0 0.0
      %746 = vmatprep.subr.mxu0 0.0
      %747 = vmatpush1.msra.mxu0 0.0
      %748 = vmatprep.subr.mxu0 0.0
      %749 = vmatpush1.msra.mxu0 0.0
      %750 = vmatprep.subr.mxu0 0.0
      %751 = vmatpush1.msra.mxu0 0.0
      %752 = vmatprep.subr.mxu0 0.0
      %753 = vmatpush1.msra.mxu0 0.0
      %754 = vmatprep.subr.mxu0 0.0
      %755 = vmatpush1.msra.mxu0 0.0
      %756 = vmatprep.subr.mxu0 0.0
      %757 = vmatpush1.msra.mxu0 0.0
      %758 = vmatprep.subr.mxu0 0.0
      %759 = vmatpush1.msra.mxu0 0.0
      %760 = vmatprep.subr.mxu0 0.0
      %761 = vmatpush1.msra.mxu0 0.0
      %762 = vmatprep.subr.mxu0 0.0
      %763 = vmatpush1.msra.mxu0 0.0
      %764 = vmatprep.subr.mxu0 0.0
      %765 = vmatpush1.msra.mxu0 0.0
      %766 = vmatprep.subr.mxu0 0.0
      %767 = vmatpush1.msra.mxu0 0.0
      %768 = vmatprep.subr.mxu0 0.0
      %769 = vmatpush1.msra.mxu0 0.0
      %770 = vmatprep.subr.mxu0 0.0
      %771 = vmatpush1.msra.mxu0 0.0
      %772 = vmatprep.subr.mxu0 0.0
      %773 = vmatpush1.msra.mxu0 0.0
      %774 = vmatprep.subr.mxu0 0.0
      %775 = vmatpush1.msra.mxu0 0.0
      %776 = vmatprep.subr.mxu0 0.0
      %777 = vmatpush1.msra.mxu0 0.0
      %778 = vmatprep.subr.mxu0 0.0
      %779 = vmatpush1.msra.mxu0 0.0
      %780 = vmatprep.subr.mxu0 0.0
      %781 = vmatpush1.msra.mxu0 0.0
      %782 = vmatprep.mubr.f32.mxu0 0.0
      %783 = vmatmul.mubr.f32.gmra.mrb[0].mxu0 %v574
      %v784 = vpop.f32.mrb[0].mxu0
      %v785 = vadd.f32 %v570, %v784
      %v786 = vpop.f32.mrb[0].mxu0
      %v787 = vadd.f32 %v570, %v786
      %788 = vdwg.mxu0
      %789 = vmatprep.subr.mxu0 %v557
      %790 = vmatpush1.msra.mxu0 %v556
      %791 = vmatprep.subr.mxu0 %v565
      %792 = vmatpush1.msra.mxu0 %v564
      %793 = vmatprep.subr.mxu0 0.0
      %794 = vmatpush1.msra.mxu0 0.0
      %795 = vmatprep.subr.mxu0 0.0
      %796 = vmatpush1.msra.mxu0 0.0
      %797 = vmatprep.subr.mxu0 0.0
      %798 = vmatpush1.msra.mxu0 0.0
      %799 = vmatprep.subr.mxu0 0.0
      %800 = vmatpush1.msra.mxu0 0.0
      %801 = vmatprep.subr.mxu0 0.0
      %802 = vmatpush1.msra.mxu0 0.0
      %803 = vmatprep.subr.mxu0 0.0
      %804 = vmatpush1.msra.mxu0 0.0
      %805 = vmatprep.subr.mxu0 0.0
      %806 = vmatpush1.msra.mxu0 0.0
      %807 = vmatprep.subr.mxu0 0.0
      %808 = vmatpush1.msra.mxu0 0.0
      %809 = vmatprep.subr.mxu0 0.0
      %810 = vmatpush1.msra.mxu0 0.0
      %811 = vmatprep.subr.mxu0 0.0
      %812 = vmatpush1.msra.mxu0 0.0
      %813 = vmatprep.subr.mxu0 0.0
      %814 = vmatpush1.msra.mxu0 0.0
      %815 = vmatprep.subr.mxu0 0.0
      %816 = vmatpush1.msra.mxu0 0.0
      %817 = vmatprep.subr.mxu0 0.0
      %818 = vmatpush1.msra.mxu0 0.0
      %819 = vmatprep.subr.mxu0 0.0
      %820 = vmatpush1.msra.mxu0 0.0
      %821 = vmatprep.subr.mxu0 0.0
      %822 = vmatpush1.msra.mxu0 0.0
      %823 = vmatprep.subr.mxu0 0.0
      %824 = vmatpush1.msra.mxu0 0.0
      %825 = vmatprep.subr.mxu0 0.0
      %826 = vmatpush1.msra.mxu0 0.0
      %827 = vmatprep.subr.mxu0 0.0
      %828 = vmatpush1.msra.mxu0 0.0
      %829 = vmatprep.subr.mxu0 0.0
      %830 = vmatpush1.msra.mxu0 0.0
      %831 = vmatprep.subr.mxu0 0.0
      %832 = vmatpush1.msra.mxu0 0.0
      %833 = vmatprep.subr.mxu0 0.0
      %834 = vmatpush1.msra.mxu0 0.0
      %835 = vmatprep.subr.mxu0 0.0
      %836 = vmatpush1.msra.mxu0 0.0
      %837 = vmatprep.subr.mxu0 0.0
      %838 = vmatpush1.msra.mxu0 0.0
      %839 = vmatprep.subr.mxu0 0.0
      %840 = vmatpush1.msra.mxu0 0.0
      %841 = vmatprep.subr.mxu0 0.0
      %842 = vmatpush1.msra.mxu0 0.0
      %843 = vmatprep.subr.mxu0 0.0
      %844 = vmatpush1.msra.mxu0 0.0
      %845 = vmatprep.subr.mxu0 0.0
      %846 = vmatpush1.msra.mxu0 0.0
      %847 = vmatprep.subr.mxu0 0.0
      %848 = vmatpush1.msra.mxu0 0.0
      %849 = vmatprep.subr.mxu0 0.0
      %850 = vmatpush1.msra.mxu0 0.0
      %851 = vmatprep.subr.mxu0 0.0
      %852 = vmatpush1.msra.mxu0 0.0
      %853 = vmatprep.mubr.f32.mxu0 0.0
      %854 = vmatmul.mubr.f32.gmra.mrb[0].mxu0 %v574
      %v855 = vpop.f32.mrb[0].mxu0
      %v856 = vadd.f32 %v570, %v855
      %v857 = vpop.f32.mrb[0].mxu0
      %v858 = vadd.f32 %v570, %v857
      %859 = vdwg.mxu0
      %v860 = vld [vmem:[%s7] sm:$0xf]
      %s861 = scalar_lea.vmem %s7, 4
      %v862 = vld [vmem:[%s861] sm:$0xf]
      %vm863 = vcmask 31744
      %v865 = vsel %vm863, %v862, 0
      %vm867 = vcmask 1043456
      %v869 = vsel %vm867, %v643, 0
      %v872 = vsel %vm867, %v645, 0
      %v875 = vsel %vm867, %v714, 0
      %v878 = vsel %vm867, %v716, 0
      %v881 = vsel %vm867, %v785, 0
      %v884 = vsel %vm867, %v787, 0
      %v887 = vsel %vm867, %v856, 0
      %v890 = vsel %vm867, %v858, 0
      %892 = vmatprep.subr.mxu0 %v872
      %893 = vmatpush1.msra.mxu0 %v869
      %894 = vmatprep.subr.mxu0 0.0
      %895 = vmatpush1.msra.mxu0 0.0
      %896 = vmatprep.subr.mxu0 0.0
      %897 = vmatpush1.msra.mxu0 0.0
      %898 = vmatprep.subr.mxu0 0.0
      %899 = vmatpush1.msra.mxu0 0.0
      %900 = vmatprep.subr.mxu0 0.0
      %901 = vmatpush1.msra.mxu0 0.0
      %902 = vmatprep.subr.mxu0 0.0
      %903 = vmatpush1.msra.mxu0 0.0
      %904 = vmatprep.subr.mxu0 0.0
      %905 = vmatpush1.msra.mxu0 0.0
      %906 = vmatprep.subr.mxu0 0.0
      %907 = vmatpush1.msra.mxu0 0.0
      %908 = vmatprep.subr.mxu0 0.0
      %909 = vmatpush1.msra.mxu0 0.0
      %910 = vmatprep.subr.mxu0 0.0
      %911 = vmatpush1.msra.mxu0 0.0
      %912 = vmatprep.subr.mxu0 0.0
      %913 = vmatpush1.msra.mxu0 0.0
      %914 = vmatprep.subr.mxu0 0.0
      %915 = vmatpush1.msra.mxu0 0.0
      %916 = vmatprep.subr.mxu0 0.0
      %917 = vmatpush1.msra.mxu0 0.0
      %918 = vmatprep.subr.mxu0 0.0
      %919 = vmatpush1.msra.mxu0 0.0
      %920 = vmatprep.subr.mxu0 0.0
      %921 = vmatpush1.msra.mxu0 0.0
      %922 = vmatprep.subr.mxu0 0.0
      %923 = vmatpush1.msra.mxu0 0.0
      %924 = vmatprep.subr.mxu0 0.0
      %925 = vmatpush1.msra.mxu0 0.0
      %926 = vmatprep.subr.mxu0 0.0
      %927 = vmatpush1.msra.mxu0 0.0
      %928 = vmatprep.subr.mxu0 0.0
      %929 = vmatpush1.msra.mxu0 0.0
      %930 = vmatprep.subr.mxu0 0.0
      %931 = vmatpush1.msra.mxu0 0.0
      %932 = vmatprep.subr.mxu0 0.0
      %933 = vmatpush1.msra.mxu0 0.0
      %934 = vmatprep.subr.mxu0 0.0
      %935 = vmatpush1.msra.mxu0 0.0
      %936 = vmatprep.subr.mxu0 0.0
      %937 = vmatpush1.msra.mxu0 0.0
      %938 = vmatprep.subr.mxu0 0.0
      %939 = vmatpush1.msra.mxu0 0.0
      %940 = vmatprep.subr.mxu0 0.0
      %941 = vmatpush1.msra.mxu0 0.0
      %942 = vmatprep.subr.mxu0 0.0
      %943 = vmatpush1.msra.mxu0 0.0
      %944 = vmatprep.subr.mxu0 0.0
      %945 = vmatpush1.msra.mxu0 0.0
      %946 = vmatprep.subr.mxu0 0.0
      %947 = vmatpush1.msra.mxu0 0.0
      %948 = vmatprep.subr.mxu0 0.0
      %949 = vmatpush1.msra.mxu0 0.0
      %950 = vmatprep.subr.mxu0 0.0
      %951 = vmatpush1.msra.mxu0 0.0
      %952 = vmatprep.subr.mxu0 0.0
      %953 = vmatpush1.msra.mxu0 0.0
      %954 = vmatprep.subr.mxu0 0.0
      %955 = vmatpush1.msra.mxu0 0.0
      %956 = vmatprep.mubr.f32.mxu0 0.0
      %957 = vmatmul.mubr.f32.gmra.mrb[0].mxu0 %v865
      %v958 = vpop.f32.mrb[0].mxu0
      %v959 = vadd.f32 0.0, %v958
      %v960 = vpop.f32.mrb[0].mxu0
      %v961 = vadd.f32 0.0, %v960
      %962 = vdwg.mxu0
      %963 = vmatprep.subr.mxu0 %v878
      %964 = vmatpush1.msra.mxu0 %v875
      %965 = vmatprep.subr.mxu0 0.0
      %966 = vmatpush1.msra.mxu0 0.0
      %967 = vmatprep.subr.mxu0 0.0
      %968 = vmatpush1.msra.mxu0 0.0
      %969 = vmatprep.subr.mxu0 0.0
      %970 = vmatpush1.msra.mxu0 0.0
      %971 = vmatprep.subr.mxu0 0.0
      %972 = vmatpush1.msra.mxu0 0.0
      %973 = vmatprep.subr.mxu0 0.0
      %974 = vmatpush1.msra.mxu0 0.0
      %975 = vmatprep.subr.mxu0 0.0
      %976 = vmatpush1.msra.mxu0 0.0
      %977 = vmatprep.subr.mxu0 0.0
      %978 = vmatpush1.msra.mxu0 0.0
      %979 = vmatprep.subr.mxu0 0.0
      %980 = vmatpush1.msra.mxu0 0.0
      %981 = vmatprep.subr.mxu0 0.0
      %982 = vmatpush1.msra.mxu0 0.0
      %983 = vmatprep.subr.mxu0 0.0
      %984 = vmatpush1.msra.mxu0 0.0
      %985 = vmatprep.subr.mxu0 0.0
      %986 = vmatpush1.msra.mxu0 0.0
      %987 = vmatprep.subr.mxu0 0.0
      %988 = vmatpush1.msra.mxu0 0.0
      %989 = vmatprep.subr.mxu0 0.0
      %990 = vmatpush1.msra.mxu0 0.0
      %991 = vmatprep.subr.mxu0 0.0
      %992 = vmatpush1.msra.mxu0 0.0
      %993 = vmatprep.subr.mxu0 0.0
      %994 = vmatpush1.msra.mxu0 0.0
      %995 = vmatprep.subr.mxu0 0.0
      %996 = vmatpush1.msra.mxu0 0.0
      %997 = vmatprep.subr.mxu0 0.0
      %998 = vmatpush1.msra.mxu0 0.0
      %999 = vmatprep.subr.mxu0 0.0
      %1000 = vmatpush1.msra.mxu0 0.0
      %1001 = vmatprep.subr.mxu0 0.0
      %1002 = vmatpush1.msra.mxu0 0.0
      %1003 = vmatprep.subr.mxu0 0.0
      %1004 = vmatpush1.msra.mxu0 0.0
      %1005 = vmatprep.subr.mxu0 0.0
      %1006 = vmatpush1.msra.mxu0 0.0
      %1007 = vmatprep.subr.mxu0 0.0
      %1008 = vmatpush1.msra.mxu0 0.0
      %1009 = vmatprep.subr.mxu0 0.0
      %1010 = vmatpush1.msra.mxu0 0.0
      %1011 = vmatprep.subr.mxu0 0.0
      %1012 = vmatpush1.msra.mxu0 0.0
      %1013 = vmatprep.subr.mxu0 0.0
      %1014 = vmatpush1.msra.mxu0 0.0
      %1015 = vmatprep.subr.mxu0 0.0
      %1016 = vmatpush1.msra.mxu0 0.0
      %1017 = vmatprep.subr.mxu0 0.0
      %1018 = vmatpush1.msra.mxu0 0.0
      %1019 = vmatprep.subr.mxu0 0.0
      %1020 = vmatpush1.msra.mxu0 0.0
      %1021 = vmatprep.subr.mxu0 0.0
      %1022 = vmatpush1.msra.mxu0 0.0
      %1023 = vmatprep.subr.mxu0 0.0
      %1024 = vmatpush1.msra.mxu0 0.0
      %1025 = vmatprep.subr.mxu0 0.0
      %1026 = vmatpush1.msra.mxu0 0.0
      %1027 = vmatprep.mubr.f32.mxu0 0.0
      %1028 = vmatmul.mubr.f32.gmra.mrb[0].mxu0 %v865
      %v1029 = vpop.f32.mrb[0].mxu0
      %v1030 = vadd.f32 0.0, %v1029
      %v1031 = vpop.f32.mrb[0].mxu0
      %v1032 = vadd.f32 0.0, %v1031
      %1033 = vdwg.mxu0
      %1034 = vmatprep.subr.mxu0 %v884
      %1035 = vmatpush1.msra.mxu0 %v881
      %1036 = vmatprep.subr.mxu0 0.0
      %1037 = vmatpush1.msra.mxu0 0.0
      %1038 = vmatprep.subr.mxu0 0.0
      %1039 = vmatpush1.msra.mxu0 0.0
      %1040 = vmatprep.subr.mxu0 0.0
      %1041 = vmatpush1.msra.mxu0 0.0
      %1042 = vmatprep.subr.mxu0 0.0
      %1043 = vmatpush1.msra.mxu0 0.0
      %1044 = vmatprep.subr.mxu0 0.0
      %1045 = vmatpush1.msra.mxu0 0.0
      %1046 = vmatprep.subr.mxu0 0.0
      %1047 = vmatpush1.msra.mxu0 0.0
      %1048 = vmatprep.subr.mxu0 0.0
      %1049 = vmatpush1.msra.mxu0 0.0
      %1050 = vmatprep.subr.mxu0 0.0
      %1051 = vmatpush1.msra.mxu0 0.0
      %1052 = vmatprep.subr.mxu0 0.0
      %1053 = vmatpush1.msra.mxu0 0.0
      %1054 = vmatprep.subr.mxu0 0.0
      %1055 = vmatpush1.msra.mxu0 0.0
      %1056 = vmatprep.subr.mxu0 0.0
      %1057 = vmatpush1.msra.mxu0 0.0
      %1058 = vmatprep.subr.mxu0 0.0
      %1059 = vmatpush1.msra.mxu0 0.0
      %1060 = vmatprep.subr.mxu0 0.0
      %1061 = vmatpush1.msra.mxu0 0.0
      %1062 = vmatprep.subr.mxu0 0.0
      %1063 = vmatpush1.msra.mxu0 0.0
      %1064 = vmatprep.subr.mxu0 0.0
      %1065 = vmatpush1.msra.mxu0 0.0
      %1066 = vmatprep.subr.mxu0 0.0
      %1067 = vmatpush1.msra.mxu0 0.0
      %1068 = vmatprep.subr.mxu0 0.0
      %1069 = vmatpush1.msra.mxu0 0.0
      %1070 = vmatprep.subr.mxu0 0.0
      %1071 = vmatpush1.msra.mxu0 0.0
      %1072 = vmatprep.subr.mxu0 0.0
      %1073 = vmatpush1.msra.mxu0 0.0
      %1074 = vmatprep.subr.mxu0 0.0
      %1075 = vmatpush1.msra.mxu0 0.0
      %1076 = vmatprep.subr.mxu0 0.0
      %1077 = vmatpush1.msra.mxu0 0.0
      %1078 = vmatprep.subr.mxu0 0.0
      %1079 = vmatpush1.msra.mxu0 0.0
      %1080 = vmatprep.subr.mxu0 0.0
      %1081 = vmatpush1.msra.mxu0 0.0
      %1082 = vmatprep.subr.mxu0 0.0
      %1083 = vmatpush1.msra.mxu0 0.0
      %1084 = vmatprep.subr.mxu0 0.0
      %1085 = vmatpush1.msra.mxu0 0.0
      %1086 = vmatprep.subr.mxu0 0.0
      %1087 = vmatpush1.msra.mxu0 0.0
      %1088 = vmatprep.subr.mxu0 0.0
      %1089 = vmatpush1.msra.mxu0 0.0
      %1090 = vmatprep.subr.mxu0 0.0
      %1091 = vmatpush1.msra.mxu0 0.0
      %1092 = vmatprep.subr.mxu0 0.0
      %1093 = vmatpush1.msra.mxu0 0.0
      %1094 = vmatprep.subr.mxu0 0.0
      %1095 = vmatpush1.msra.mxu0 0.0
      %1096 = vmatprep.subr.mxu0 0.0
      %1097 = vmatpush1.msra.mxu0 0.0
      %1098 = vmatprep.mubr.f32.mxu0 0.0
      %1099 = vmatmul.mubr.f32.gmra.mrb[0].mxu0 %v865
      %v1100 = vpop.f32.mrb[0].mxu0
      %v1101 = vadd.f32 0.0, %v1100
      %v1102 = vpop.f32.mrb[0].mxu0
      %v1103 = vadd.f32 0.0, %v1102
      %1104 = vdwg.mxu0
      %1105 = vmatprep.subr.mxu0 %v890
      %1106 = vmatpush1.msra.mxu0 %v887
      %1107 = vmatprep.subr.mxu0 0.0
      %1108 = vmatpush1.msra.mxu0 0.0
      %1109 = vmatprep.subr.mxu0 0.0
      %1110 = vmatpush1.msra.mxu0 0.0
      %1111 = vmatprep.subr.mxu0 0.0
      %1112 = vmatpush1.msra.mxu0 0.0
      %1113 = vmatprep.subr.mxu0 0.0
      %1114 = vmatpush1.msra.mxu0 0.0
      %1115 = vmatprep.subr.mxu0 0.0
      %1116 = vmatpush1.msra.mxu0 0.0
      %1117 = vmatprep.subr.mxu0 0.0
      %1118 = vmatpush1.msra.mxu0 0.0
      %1119 = vmatprep.subr.mxu0 0.0
      %1120 = vmatpush1.msra.mxu0 0.0
      %1121 = vmatprep.subr.mxu0 0.0
      %1122 = vmatpush1.msra.mxu0 0.0
      %1123 = vmatprep.subr.mxu0 0.0
      %1124 = vmatpush1.msra.mxu0 0.0
      %1125 = vmatprep.subr.mxu0 0.0
      %1126 = vmatpush1.msra.mxu0 0.0
      %1127 = vmatprep.subr.mxu0 0.0
      %1128 = vmatpush1.msra.mxu0 0.0
      %1129 = vmatprep.subr.mxu0 0.0
      %1130 = vmatpush1.msra.mxu0 0.0
      %1131 = vmatprep.subr.mxu0 0.0
      %1132 = vmatpush1.msra.mxu0 0.0
      %1133 = vmatprep.subr.mxu0 0.0
      %1134 = vmatpush1.msra.mxu0 0.0
      %1135 = vmatprep.subr.mxu0 0.0
      %1136 = vmatpush1.msra.mxu0 0.0
      %1137 = vmatprep.subr.mxu0 0.0
      %1138 = vmatpush1.msra.mxu0 0.0
      %1139 = vmatprep.subr.mxu0 0.0
      %1140 = vmatpush1.msra.mxu0 0.0
      %1141 = vmatprep.subr.mxu0 0.0
      %1142 = vmatpush1.msra.mxu0 0.0
      %1143 = vmatprep.subr.mxu0 0.0
      %1144 = vmatpush1.msra.mxu0 0.0
      %1145 = vmatprep.subr.mxu0 0.0
      %1146 = vmatpush1.msra.mxu0 0.0
      %1147 = vmatprep.subr.mxu0 0.0
      %1148 = vmatpush1.msra.mxu0 0.0
      %1149 = vmatprep.subr.mxu0 0.0
      %1150 = vmatpush1.msra.mxu0 0.0
      %1151 = vmatprep.subr.mxu0 0.0
      %1152 = vmatpush1.msra.mxu0 0.0
      %1153 = vmatprep.subr.mxu0 0.0
      %1154 = vmatpush1.msra.mxu0 0.0
      %1155 = vmatprep.subr.mxu0 0.0
      %1156 = vmatpush1.msra.mxu0 0.0
      %1157 = vmatprep.subr.mxu0 0.0
      %1158 = vmatpush1.msra.mxu0 0.0
      %1159 = vmatprep.subr.mxu0 0.0
      %1160 = vmatpush1.msra.mxu0 0.0
      %1161 = vmatprep.subr.mxu0 0.0
      %1162 = vmatpush1.msra.mxu0 0.0
      %1163 = vmatprep.subr.mxu0 0.0
      %1164 = vmatpush1.msra.mxu0 0.0
      %1165 = vmatprep.subr.mxu0 0.0
      %1166 = vmatpush1.msra.mxu0 0.0
      %1167 = vmatprep.subr.mxu0 0.0
      %1168 = vmatpush1.msra.mxu0 0.0
      %1169 = vmatprep.mubr.f32.mxu0 0.0
      %1170 = vmatmul.mubr.f32.gmra.mrb[0].mxu0 %v865
      %v1171 = vpop.f32.mrb[0].mxu0
      %v1172 = vadd.f32 0.0, %v1171
      %v1173 = vpop.f32.mrb[0].mxu0
      %v1174 = vadd.f32 0.0, %v1173
      %1175 = vdwg.mxu0
      %1176 = vrot.lane.b32.xlu0 %v959, 127
      %v1177 = vpop.permute.xlu0 %1176
      %1178 = vrot.lane.b32.xlu0 %v961, 127
      %v1179 = vpop.permute.xlu0 %1178
      %1180 = vrot.lane.b32.xlu0 %v1030, 127
      %v1181 = vpop.permute.xlu0 %1180
      %1182 = vrot.lane.b32.xlu0 %v1032, 127
      %v1183 = vpop.permute.xlu0 %1182
      %1184 = vrot.lane.b32.xlu0 %v1101, 127
      %v1185 = vpop.permute.xlu0 %1184
      %1186 = vrot.lane.b32.xlu0 %v1103, 127
      %v1187 = vpop.permute.xlu0 %1186
      %1188 = vrot.lane.b32.xlu0 %v1172, 127
      %v1189 = vpop.permute.xlu0 %1188
      %1190 = vrot.lane.b32.xlu0 %v1174, 127
      %v1191 = vpop.permute.xlu0 %1190
      %v1192 = vlaneseq
      %v1193 = vand.u32 %v1192, 127
      %vm1194 = vcmp.lt.s32.totalorder %v1193, 127
      %v1195 = vsel %vm1194, %v1189, %v1191
      %v1196 = vsel %vm1194, %v1187, %v1189
      %v1197 = vsel %vm1194, %v1185, %v1187
      %v1198 = vsel %vm1194, %v1183, %v1185
      %v1199 = vsel %vm1194, %v1181, %v1183
      %v1200 = vsel %vm1194, %v1179, %v1181
      %v1201 = vsel %vm1194, %v1177, %v1179
      %v1202 = vsel %vm1194, %v1191, %v1177
      %v1204 = vsel %vm863, %v860, 0
      %1206 = vmatprep.subr.mxu0 %v872
      %1207 = vmatpush1.msra.mxu0 %v869
      %1208 = vmatprep.subr.mxu0 0.0
      %1209 = vmatpush1.msra.mxu0 0.0
      %1210 = vmatprep.subr.mxu0 0.0
      %1211 = vmatpush1.msra.mxu0 0.0
      %1212 = vmatprep.subr.mxu0 0.0
      %1213 = vmatpush1.msra.mxu0 0.0
      %1214 = vmatprep.subr.mxu0 0.0
      %1215 = vmatpush1.msra.mxu0 0.0
      %1216 = vmatprep.subr.mxu0 0.0
      %1217 = vmatpush1.msra.mxu0 0.0
      %1218 = vmatprep.subr.mxu0 0.0
      %1219 = vmatpush1.msra.mxu0 0.0
      %1220 = vmatprep.subr.mxu0 0.0
      %1221 = vmatpush1.msra.mxu0 0.0
      %1222 = vmatprep.subr.mxu0 0.0
      %1223 = vmatpush1.msra.mxu0 0.0
      %1224 = vmatprep.subr.mxu0 0.0
      %1225 = vmatpush1.msra.mxu0 0.0
      %1226 = vmatprep.subr.mxu0 0.0
      %1227 = vmatpush1.msra.mxu0 0.0
      %1228 = vmatprep.subr.mxu0 0.0
      %1229 = vmatpush1.msra.mxu0 0.0
      %1230 = vmatprep.subr.mxu0 0.0
      %1231 = vmatpush1.msra.mxu0 0.0
      %1232 = vmatprep.subr.mxu0 0.0
      %1233 = vmatpush1.msra.mxu0 0.0
      %1234 = vmatprep.subr.mxu0 0.0
      %1235 = vmatpush1.msra.mxu0 0.0
      %1236 = vmatprep.subr.mxu0 0.0
      %1237 = vmatpush1.msra.mxu0 0.0
      %1238 = vmatprep.subr.mxu0 0.0
      %1239 = vmatpush1.msra.mxu0 0.0
      %1240 = vmatprep.subr.mxu0 0.0
      %1241 = vmatpush1.msra.mxu0 0.0
      %1242 = vmatprep.subr.mxu0 0.0
      %1243 = vmatpush1.msra.mxu0 0.0
      %1244 = vmatprep.subr.mxu0 0.0
      %1245 = vmatpush1.msra.mxu0 0.0
      %1246 = vmatprep.subr.mxu0 0.0
      %1247 = vmatpush1.msra.mxu0 0.0
      %1248 = vmatprep.subr.mxu0 0.0
      %1249 = vmatpush1.msra.mxu0 0.0
      %1250 = vmatprep.subr.mxu0 0.0
      %1251 = vmatpush1.msra.mxu0 0.0
      %1252 = vmatprep.subr.mxu0 0.0
      %1253 = vmatpush1.msra.mxu0 0.0
      %1254 = vmatprep.subr.mxu0 0.0
      %1255 = vmatpush1.msra.mxu0 0.0
      %1256 = vmatprep.subr.mxu0 0.0
      %1257 = vmatpush1.msra.mxu0 0.0
      %1258 = vmatprep.subr.mxu0 0.0
      %1259 = vmatpush1.msra.mxu0 0.0
      %1260 = vmatprep.subr.mxu0 0.0
      %1261 = vmatpush1.msra.mxu0 0.0
      %1262 = vmatprep.subr.mxu0 0.0
      %1263 = vmatpush1.msra.mxu0 0.0
      %1264 = vmatprep.subr.mxu0 0.0
      %1265 = vmatpush1.msra.mxu0 0.0
      %1266 = vmatprep.subr.mxu0 0.0
      %1267 = vmatpush1.msra.mxu0 0.0
      %1268 = vmatprep.subr.mxu0 0.0
      %1269 = vmatpush1.msra.mxu0 0.0
      %1270 = vmatprep.mubr.f32.mxu0 0.0
      %1271 = vmatmul.mubr.f32.gmra.mrb[0].mxu0 %v1204
      %v1272 = vpop.f32.mrb[0].mxu0
      %v1273 = vadd.f32 %v1201, %v1272
      %v1274 = vpop.f32.mrb[0].mxu0
      %v1275 = vadd.f32 %v1200, %v1274
      %1276 = vdwg.mxu0
      %1277 = vmatprep.subr.mxu0 %v878
      %1278 = vmatpush1.msra.mxu0 %v875
      %1279 = vmatprep.subr.mxu0 0.0
      %1280 = vmatpush1.msra.mxu0 0.0
      %1281 = vmatprep.subr.mxu0 0.0
      %1282 = vmatpush1.msra.mxu0 0.0
      %1283 = vmatprep.subr.mxu0 0.0
      %1284 = vmatpush1.msra.mxu0 0.0
      %1285 = vmatprep.subr.mxu0 0.0
      %1286 = vmatpush1.msra.mxu0 0.0
      %1287 = vmatprep.subr.mxu0 0.0
      %1288 = vmatpush1.msra.mxu0 0.0
      %1289 = vmatprep.subr.mxu0 0.0
      %1290 = vmatpush1.msra.mxu0 0.0
      %1291 = vmatprep.subr.mxu0 0.0
      %1292 = vmatpush1.msra.mxu0 0.0
      %1293 = vmatprep.subr.mxu0 0.0
      %1294 = vmatpush1.msra.mxu0 0.0
      %1295 = vmatprep.subr.mxu0 0.0
      %1296 = vmatpush1.msra.mxu0 0.0
      %1297 = vmatprep.subr.mxu0 0.0
      %1298 = vmatpush1.msra.mxu0 0.0
      %1299 = vmatprep.subr.mxu0 0.0
      %1300 = vmatpush1.msra.mxu0 0.0
      %1301 = vmatprep.subr.mxu0 0.0
      %1302 = vmatpush1.msra.mxu0 0.0
      %1303 = vmatprep.subr.mxu0 0.0
      %1304 = vmatpush1.msra.mxu0 0.0
      %1305 = vmatprep.subr.mxu0 0.0
      %1306 = vmatpush1.msra.mxu0 0.0
      %1307 = vmatprep.subr.mxu0 0.0
      %1308 = vmatpush1.msra.mxu0 0.0
      %1309 = vmatprep.subr.mxu0 0.0
      %1310 = vmatpush1.msra.mxu0 0.0
      %1311 = vmatprep.subr.mxu0 0.0
      %1312 = vmatpush1.msra.mxu0 0.0
      %1313 = vmatprep.subr.mxu0 0.0
      %1314 = vmatpush1.msra.mxu0 0.0
      %1315 = vmatprep.subr.mxu0 0.0
      %1316 = vmatpush1.msra.mxu0 0.0
      %1317 = vmatprep.subr.mxu0 0.0
      %1318 = vmatpush1.msra.mxu0 0.0
      %1319 = vmatprep.subr.mxu0 0.0
      %1320 = vmatpush1.msra.mxu0 0.0
      %1321 = vmatprep.subr.mxu0 0.0
      %1322 = vmatpush1.msra.mxu0 0.0
      %1323 = vmatprep.subr.mxu0 0.0
      %1324 = vmatpush1.msra.mxu0 0.0
      %1325 = vmatprep.subr.mxu0 0.0
      %1326 = vmatpush1.msra.mxu0 0.0
      %1327 = vmatprep.subr.mxu0 0.0
      %1328 = vmatpush1.msra.mxu0 0.0
      %1329 = vmatprep.subr.mxu0 0.0
      %1330 = vmatpush1.msra.mxu0 0.0
      %1331 = vmatprep.subr.mxu0 0.0
      %1332 = vmatpush1.msra.mxu0 0.0
      %1333 = vmatprep.subr.mxu0 0.0
      %1334 = vmatpush1.msra.mxu0 0.0
      %1335 = vmatprep.subr.mxu0 0.0
      %1336 = vmatpush1.msra.mxu0 0.0
      %1337 = vmatprep.subr.mxu0 0.0
      %1338 = vmatpush1.msra.mxu0 0.0
      %1339 = vmatprep.subr.mxu0 0.0
      %1340 = vmatpush1.msra.mxu0 0.0
      %1341 = vmatprep.mubr.f32.mxu0 0.0
      %1342 = vmatmul.mubr.f32.gmra.mrb[0].mxu0 %v1204
      %v1343 = vpop.f32.mrb[0].mxu0
      %v1344 = vadd.f32 %v1199, %v1343
      %v1345 = vpop.f32.mrb[0].mxu0
      %v1346 = vadd.f32 %v1198, %v1345
      %1347 = vdwg.mxu0
      %1348 = vmatprep.subr.mxu0 %v884
      %1349 = vmatpush1.msra.mxu0 %v881
      %1350 = vmatprep.subr.mxu0 0.0
      %1351 = vmatpush1.msra.mxu0 0.0
      %1352 = vmatprep.subr.mxu0 0.0
      %1353 = vmatpush1.msra.mxu0 0.0
      %1354 = vmatprep.subr.mxu0 0.0
      %1355 = vmatpush1.msra.mxu0 0.0
      %1356 = vmatprep.subr.mxu0 0.0
      %1357 = vmatpush1.msra.mxu0 0.0
      %1358 = vmatprep.subr.mxu0 0.0
      %1359 = vmatpush1.msra.mxu0 0.0
      %1360 = vmatprep.subr.mxu0 0.0
      %1361 = vmatpush1.msra.mxu0 0.0
      %1362 = vmatprep.subr.mxu0 0.0
      %1363 = vmatpush1.msra.mxu0 0.0
      %1364 = vmatprep.subr.mxu0 0.0
      %1365 = vmatpush1.msra.mxu0 0.0
      %1366 = vmatprep.subr.mxu0 0.0
      %1367 = vmatpush1.msra.mxu0 0.0
      %1368 = vmatprep.subr.mxu0 0.0
      %1369 = vmatpush1.msra.mxu0 0.0
      %1370 = vmatprep.subr.mxu0 0.0
      %1371 = vmatpush1.msra.mxu0 0.0
      %1372 = vmatprep.subr.mxu0 0.0
      %1373 = vmatpush1.msra.mxu0 0.0
      %1374 = vmatprep.subr.mxu0 0.0
      %1375 = vmatpush1.msra.mxu0 0.0
      %1376 = vmatprep.subr.mxu0 0.0
      %1377 = vmatpush1.msra.mxu0 0.0
      %1378 = vmatprep.subr.mxu0 0.0
      %1379 = vmatpush1.msra.mxu0 0.0
      %1380 = vmatprep.subr.mxu0 0.0
      %1381 = vmatpush1.msra.mxu0 0.0
      %1382 = vmatprep.subr.mxu0 0.0
      %1383 = vmatpush1.msra.mxu0 0.0
      %1384 = vmatprep.subr.mxu0 0.0
      %1385 = vmatpush1.msra.mxu0 0.0
      %1386 = vmatprep.subr.mxu0 0.0
      %1387 = vmatpush1.msra.mxu0 0.0
      %1388 = vmatprep.subr.mxu0 0.0
      %1389 = vmatpush1.msra.mxu0 0.0
      %1390 = vmatprep.subr.mxu0 0.0
      %1391 = vmatpush1.msra.mxu0 0.0
      %1392 = vmatprep.subr.mxu0 0.0
      %1393 = vmatpush1.msra.mxu0 0.0
      %1394 = vmatprep.subr.mxu0 0.0
      %1395 = vmatpush1.msra.mxu0 0.0
      %1396 = vmatprep.subr.mxu0 0.0
      %1397 = vmatpush1.msra.mxu0 0.0
      %1398 = vmatprep.subr.mxu0 0.0
      %1399 = vmatpush1.msra.mxu0 0.0
      %1400 = vmatprep.subr.mxu0 0.0
      %1401 = vmatpush1.msra.mxu0 0.0
      %1402 = vmatprep.subr.mxu0 0.0
      %1403 = vmatpush1.msra.mxu0 0.0
      %1404 = vmatprep.subr.mxu0 0.0
      %1405 = vmatpush1.msra.mxu0 0.0
      %1406 = vmatprep.subr.mxu0 0.0
      %1407 = vmatpush1.msra.mxu0 0.0
      %1408 = vmatprep.subr.mxu0 0.0
      %1409 = vmatpush1.msra.mxu0 0.0
      %1410 = vmatprep.subr.mxu0 0.0
      %1411 = vmatpush1.msra.mxu0 0.0
      %1412 = vmatprep.mubr.f32.mxu0 0.0
      %1413 = vmatmul.mubr.f32.gmra.mrb[0].mxu0 %v1204
      %v1414 = vpop.f32.mrb[0].mxu0
      %v1415 = vadd.f32 %v1197, %v1414
      %v1416 = vpop.f32.mrb[0].mxu0
      %v1417 = vadd.f32 %v1196, %v1416
      %1418 = vdwg.mxu0
      %1419 = vmatprep.subr.mxu0 %v890
      %1420 = vmatpush1.msra.mxu0 %v887
      %1421 = vmatprep.subr.mxu0 0.0
      %1422 = vmatpush1.msra.mxu0 0.0
      %1423 = vmatprep.subr.mxu0 0.0
      %1424 = vmatpush1.msra.mxu0 0.0
      %1425 = vmatprep.subr.mxu0 0.0
      %1426 = vmatpush1.msra.mxu0 0.0
      %1427 = vmatprep.subr.mxu0 0.0
      %1428 = vmatpush1.msra.mxu0 0.0
      %1429 = vmatprep.subr.mxu0 0.0
      %1430 = vmatpush1.msra.mxu0 0.0
      %1431 = vmatprep.subr.mxu0 0.0
      %1432 = vmatpush1.msra.mxu0 0.0
      %1433 = vmatprep.subr.mxu0 0.0
      %1434 = vmatpush1.msra.mxu0 0.0
      %1435 = vmatprep.subr.mxu0 0.0
      %1436 = vmatpush1.msra.mxu0 0.0
      %1437 = vmatprep.subr.mxu0 0.0
      %1438 = vmatpush1.msra.mxu0 0.0
      %1439 = vmatprep.subr.mxu0 0.0
      %1440 = vmatpush1.msra.mxu0 0.0
      %1441 = vmatprep.subr.mxu0 0.0
      %1442 = vmatpush1.msra.mxu0 0.0
      %1443 = vmatprep.subr.mxu0 0.0
      %1444 = vmatpush1.msra.mxu0 0.0
      %1445 = vmatprep.subr.mxu0 0.0
      %1446 = vmatpush1.msra.mxu0 0.0
      %1447 = vmatprep.subr.mxu0 0.0
      %1448 = vmatpush1.msra.mxu0 0.0
      %1449 = vmatprep.subr.mxu0 0.0
      %1450 = vmatpush1.msra.mxu0 0.0
      %1451 = vmatprep.subr.mxu0 0.0
      %1452 = vmatpush1.msra.mxu0 0.0
      %1453 = vmatprep.subr.mxu0 0.0
      %1454 = vmatpush1.msra.mxu0 0.0
      %1455 = vmatprep.subr.mxu0 0.0
      %1456 = vmatpush1.msra.mxu0 0.0
      %1457 = vmatprep.subr.mxu0 0.0
      %1458 = vmatpush1.msra.mxu0 0.0
      %1459 = vmatprep.subr.mxu0 0.0
      %1460 = vmatpush1.msra.mxu0 0.0
      %1461 = vmatprep.subr.mxu0 0.0
      %1462 = vmatpush1.msra.mxu0 0.0
      %1463 = vmatprep.subr.mxu0 0.0
      %1464 = vmatpush1.msra.mxu0 0.0
      %1465 = vmatprep.subr.mxu0 0.0
      %1466 = vmatpush1.msra.mxu0 0.0
      %1467 = vmatprep.subr.mxu0 0.0
      %1468 = vmatpush1.msra.mxu0 0.0
      %1469 = vmatprep.subr.mxu0 0.0
      %1470 = vmatpush1.msra.mxu0 0.0
      %1471 = vmatprep.subr.mxu0 0.0
      %1472 = vmatpush1.msra.mxu0 0.0
      %1473 = vmatprep.subr.mxu0 0.0
      %1474 = vmatpush1.msra.mxu0 0.0
      %1475 = vmatprep.subr.mxu0 0.0
      %1476 = vmatpush1.msra.mxu0 0.0
      %1477 = vmatprep.subr.mxu0 0.0
      %1478 = vmatpush1.msra.mxu0 0.0
      %1479 = vmatprep.subr.mxu0 0.0
      %1480 = vmatpush1.msra.mxu0 0.0
      %1481 = vmatprep.subr.mxu0 0.0
      %1482 = vmatpush1.msra.mxu0 0.0
      %1483 = vmatprep.mubr.f32.mxu0 0.0
      %1484 = vmatmul.mubr.f32.gmra.mrb[0].mxu0 %v1204
      %v1485 = vpop.f32.mrb[0].mxu0
      %v1486 = vadd.f32 %v1195, %v1485
      %v1487 = vpop.f32.mrb[0].mxu0
      %v1488 = vadd.f32 %v1202, %v1487
      %1489 = vdwg.mxu0
      %s1490 = scalar_lea.vmem %s7, 8
      %v1491 = vld [vmem:[%s1490] sm:$0xf]
      %v1493 = vsel %vm863, %v1491, 0
      %1495 = vmatprep.subr.mxu0 %v872
      %1496 = vmatpush1.msra.mxu0 %v869
      %1497 = vmatprep.subr.mxu0 0.0
      %1498 = vmatpush1.msra.mxu0 0.0
      %1499 = vmatprep.subr.mxu0 0.0
      %1500 = vmatpush1.msra.mxu0 0.0
      %1501 = vmatprep.subr.mxu0 0.0
      %1502 = vmatpush1.msra.mxu0 0.0
      %1503 = vmatprep.subr.mxu0 0.0
      %1504 = vmatpush1.msra.mxu0 0.0
      %1505 = vmatprep.subr.mxu0 0.0
      %1506 = vmatpush1.msra.mxu0 0.0
      %1507 = vmatprep.subr.mxu0 0.0
      %1508 = vmatpush1.msra.mxu0 0.0
      %1509 = vmatprep.subr.mxu0 0.0
      %1510 = vmatpush1.msra.mxu0 0.0
      %1511 = vmatprep.subr.mxu0 0.0
      %1512 = vmatpush1.msra.mxu0 0.0
      %1513 = vmatprep.subr.mxu0 0.0
      %1514 = vmatpush1.msra.mxu0 0.0
      %1515 = vmatprep.subr.mxu0 0.0
      %1516 = vmatpush1.msra.mxu0 0.0
      %1517 = vmatprep.subr.mxu0 0.0
      %1518 = vmatpush1.msra.mxu0 0.0
      %1519 = vmatprep.subr.mxu0 0.0
      %1520 = vmatpush1.msra.mxu0 0.0
      %1521 = vmatprep.subr.mxu0 0.0
      %1522 = vmatpush1.msra.mxu0 0.0
      %1523 = vmatprep.subr.mxu0 0.0
      %1524 = vmatpush1.msra.mxu0 0.0
      %1525 = vmatprep.subr.mxu0 0.0
      %1526 = vmatpush1.msra.mxu0 0.0
      %1527 = vmatprep.subr.mxu0 0.0
      %1528 = vmatpush1.msra.mxu0 0.0
      %1529 = vmatprep.subr.mxu0 0.0
      %1530 = vmatpush1.msra.mxu0 0.0
      %1531 = vmatprep.subr.mxu0 0.0
      %1532 = vmatpush1.msra.mxu0 0.0
      %1533 = vmatprep.subr.mxu0 0.0
      %1534 = vmatpush1.msra.mxu0 0.0
      %1535 = vmatprep.subr.mxu0 0.0
      %1536 = vmatpush1.msra.mxu0 0.0
      %1537 = vmatprep.subr.mxu0 0.0
      %1538 = vmatpush1.msra.mxu0 0.0
      %1539 = vmatprep.subr.mxu0 0.0
      %1540 = vmatpush1.msra.mxu0 0.0
      %1541 = vmatprep.subr.mxu0 0.0
      %1542 = vmatpush1.msra.mxu0 0.0
      %1543 = vmatprep.subr.mxu0 0.0
      %1544 = vmatpush1.msra.mxu0 0.0
      %1545 = vmatprep.subr.mxu0 0.0
      %1546 = vmatpush1.msra.mxu0 0.0
      %1547 = vmatprep.subr.mxu0 0.0
      %1548 = vmatpush1.msra.mxu0 0.0
      %1549 = vmatprep.subr.mxu0 0.0
      %1550 = vmatpush1.msra.mxu0 0.0
      %1551 = vmatprep.subr.mxu0 0.0
      %1552 = vmatpush1.msra.mxu0 0.0
      %1553 = vmatprep.subr.mxu0 0.0
      %1554 = vmatpush1.msra.mxu0 0.0
      %1555 = vmatprep.subr.mxu0 0.0
      %1556 = vmatpush1.msra.mxu0 0.0
      %1557 = vmatprep.subr.mxu0 0.0
      %1558 = vmatpush1.msra.mxu0 0.0
      %1559 = vmatprep.mubr.f32.mxu0 0.0
      %1560 = vmatmul.mubr.f32.gmra.mrb[0].mxu0 %v1493
      %v1561 = vpop.f32.mrb[0].mxu0
      %v1562 = vadd.f32 0.0, %v1561
      %v1563 = vpop.f32.mrb[0].mxu0
      %v1564 = vadd.f32 0.0, %v1563
      %1565 = vdwg.mxu0
      %1566 = vmatprep.subr.mxu0 %v878
      %1567 = vmatpush1.msra.mxu0 %v875
      %1568 = vmatprep.subr.mxu0 0.0
      %1569 = vmatpush1.msra.mxu0 0.0
      %1570 = vmatprep.subr.mxu0 0.0
      %1571 = vmatpush1.msra.mxu0 0.0
      %1572 = vmatprep.subr.mxu0 0.0
      %1573 = vmatpush1.msra.mxu0 0.0
      %1574 = vmatprep.subr.mxu0 0.0
      %1575 = vmatpush1.msra.mxu0 0.0
      %1576 = vmatprep.subr.mxu0 0.0
      %1577 = vmatpush1.msra.mxu0 0.0
      %1578 = vmatprep.subr.mxu0 0.0
      %1579 = vmatpush1.msra.mxu0 0.0
      %1580 = vmatprep.subr.mxu0 0.0
      %1581 = vmatpush1.msra.mxu0 0.0
      %1582 = vmatprep.subr.mxu0 0.0
      %1583 = vmatpush1.msra.mxu0 0.0
      %1584 = vmatprep.subr.mxu0 0.0
      %1585 = vmatpush1.msra.mxu0 0.0
      %1586 = vmatprep.subr.mxu0 0.0
      %1587 = vmatpush1.msra.mxu0 0.0
      %1588 = vmatprep.subr.mxu0 0.0
      %1589 = vmatpush1.msra.mxu0 0.0
      %1590 = vmatprep.subr.mxu0 0.0
      %1591 = vmatpush1.msra.mxu0 0.0
      %1592 = vmatprep.subr.mxu0 0.0
      %1593 = vmatpush1.msra.mxu0 0.0
      %1594 = vmatprep.subr.mxu0 0.0
      %1595 = vmatpush1.msra.mxu0 0.0
      %1596 = vmatprep.subr.mxu0 0.0
      %1597 = vmatpush1.msra.mxu0 0.0
      %1598 = vmatprep.subr.mxu0 0.0
      %1599 = vmatpush1.msra.mxu0 0.0
      %1600 = vmatprep.subr.mxu0 0.0
      %1601 = vmatpush1.msra.mxu0 0.0
      %1602 = vmatprep.subr.mxu0 0.0
      %1603 = vmatpush1.msra.mxu0 0.0
      %1604 = vmatprep.subr.mxu0 0.0
      %1605 = vmatpush1.msra.mxu0 0.0
      %1606 = vmatprep.subr.mxu0 0.0
      %1607 = vmatpush1.msra.mxu0 0.0
      %1608 = vmatprep.subr.mxu0 0.0
      %1609 = vmatpush1.msra.mxu0 0.0
      %1610 = vmatprep.subr.mxu0 0.0
      %1611 = vmatpush1.msra.mxu0 0.0
      %1612 = vmatprep.subr.mxu0 0.0
      %1613 = vmatpush1.msra.mxu0 0.0
      %1614 = vmatprep.subr.mxu0 0.0
      %1615 = vmatpush1.msra.mxu0 0.0
      %1616 = vmatprep.subr.mxu0 0.0
      %1617 = vmatpush1.msra.mxu0 0.0
      %1618 = vmatprep.subr.mxu0 0.0
      %1619 = vmatpush1.msra.mxu0 0.0
      %1620 = vmatprep.subr.mxu0 0.0
      %1621 = vmatpush1.msra.mxu0 0.0
      %1622 = vmatprep.subr.mxu0 0.0
      %1623 = vmatpush1.msra.mxu0 0.0
      %1624 = vmatprep.subr.mxu0 0.0
      %1625 = vmatpush1.msra.mxu0 0.0
      %1626 = vmatprep.subr.mxu0 0.0
      %1627 = vmatpush1.msra.mxu0 0.0
      %1628 = vmatprep.subr.mxu0 0.0
      %1629 = vmatpush1.msra.mxu0 0.0
      %1630 = vmatprep.mubr.f32.mxu0 0.0
      %1631 = vmatmul.mubr.f32.gmra.mrb[0].mxu0 %v1493
      %v1632 = vpop.f32.mrb[0].mxu0
      %v1633 = vadd.f32 0.0, %v1632
      %v1634 = vpop.f32.mrb[0].mxu0
      %v1635 = vadd.f32 0.0, %v1634
      %1636 = vdwg.mxu0
      %1637 = vmatprep.subr.mxu0 %v884
      %1638 = vmatpush1.msra.mxu0 %v881
      %1639 = vmatprep.subr.mxu0 0.0
      %1640 = vmatpush1.msra.mxu0 0.0
      %1641 = vmatprep.subr.mxu0 0.0
      %1642 = vmatpush1.msra.mxu0 0.0
      %1643 = vmatprep.subr.mxu0 0.0
      %1644 = vmatpush1.msra.mxu0 0.0
      %1645 = vmatprep.subr.mxu0 0.0
      %1646 = vmatpush1.msra.mxu0 0.0
      %1647 = vmatprep.subr.mxu0 0.0
      %1648 = vmatpush1.msra.mxu0 0.0
      %1649 = vmatprep.subr.mxu0 0.0
      %1650 = vmatpush1.msra.mxu0 0.0
      %1651 = vmatprep.subr.mxu0 0.0
      %1652 = vmatpush1.msra.mxu0 0.0
      %1653 = vmatprep.subr.mxu0 0.0
      %1654 = vmatpush1.msra.mxu0 0.0
      %1655 = vmatprep.subr.mxu0 0.0
      %1656 = vmatpush1.msra.mxu0 0.0
      %1657 = vmatprep.subr.mxu0 0.0
      %1658 = vmatpush1.msra.mxu0 0.0
      %1659 = vmatprep.subr.mxu0 0.0
      %1660 = vmatpush1.msra.mxu0 0.0
      %1661 = vmatprep.subr.mxu0 0.0
      %1662 = vmatpush1.msra.mxu0 0.0
      %1663 = vmatprep.subr.mxu0 0.0
      %1664 = vmatpush1.msra.mxu0 0.0
      %1665 = vmatprep.subr.mxu0 0.0
      %1666 = vmatpush1.msra.mxu0 0.0
      %1667 = vmatprep.subr.mxu0 0.0
      %1668 = vmatpush1.msra.mxu0 0.0
      %1669 = vmatprep.subr.mxu0 0.0
      %1670 = vmatpush1.msra.mxu0 0.0
      %1671 = vmatprep.subr.mxu0 0.0
      %1672 = vmatpush1.msra.mxu0 0.0
      %1673 = vmatprep.subr.mxu0 0.0
      %1674 = vmatpush1.msra.mxu0 0.0
      %1675 = vmatprep.subr.mxu0 0.0
      %1676 = vmatpush1.msra.mxu0 0.0
      %1677 = vmatprep.subr.mxu0 0.0
      %1678 = vmatpush1.msra.mxu0 0.0
      %1679 = vmatprep.subr.mxu0 0.0
      %1680 = vmatpush1.msra.mxu0 0.0
      %1681 = vmatprep.subr.mxu0 0.0
      %1682 = vmatpush1.msra.mxu0 0.0
      %1683 = vmatprep.subr.mxu0 0.0
      %1684 = vmatpush1.msra.mxu0 0.0
      %1685 = vmatprep.subr.mxu0 0.0
      %1686 = vmatpush1.msra.mxu0 0.0
      %1687 = vmatprep.subr.mxu0 0.0
      %1688 = vmatpush1.msra.mxu0 0.0
      %1689 = vmatprep.subr.mxu0 0.0
      %1690 = vmatpush1.msra.mxu0 0.0
      %1691 = vmatprep.subr.mxu0 0.0
      %1692 = vmatpush1.msra.mxu0 0.0
      %1693 = vmatprep.subr.mxu0 0.0
      %1694 = vmatpush1.msra.mxu0 0.0
      %1695 = vmatprep.subr.mxu0 0.0
      %1696 = vmatpush1.msra.mxu0 0.0
      %1697 = vmatprep.subr.mxu0 0.0
      %1698 = vmatpush1.msra.mxu0 0.0
      %1699 = vmatprep.subr.mxu0 0.0
      %1700 = vmatpush1.msra.mxu0 0.0
      %1701 = vmatprep.mubr.f32.mxu0 0.0
      %1702 = vmatmul.mubr.f32.gmra.mrb[0].mxu0 %v1493
      %v1703 = vpop.f32.mrb[0].mxu0
      %v1704 = vadd.f32 0.0, %v1703
      %v1705 = vpop.f32.mrb[0].mxu0
      %v1706 = vadd.f32 0.0, %v1705
      %1707 = vdwg.mxu0
      %1708 = vmatprep.subr.mxu0 %v890
      %1709 = vmatpush1.msra.mxu0 %v887
      %1710 = vmatprep.subr.mxu0 0.0
      %1711 = vmatpush1.msra.mxu0 0.0
      %1712 = vmatprep.subr.mxu0 0.0
      %1713 = vmatpush1.msra.mxu0 0.0
      %1714 = vmatprep.subr.mxu0 0.0
      %1715 = vmatpush1.msra.mxu0 0.0
      %1716 = vmatprep.subr.mxu0 0.0
      %1717 = vmatpush1.msra.mxu0 0.0
      %1718 = vmatprep.subr.mxu0 0.0
      %1719 = vmatpush1.msra.mxu0 0.0
      %1720 = vmatprep.subr.mxu0 0.0
      %1721 = vmatpush1.msra.mxu0 0.0
      %1722 = vmatprep.subr.mxu0 0.0
      %1723 = vmatpush1.msra.mxu0 0.0
      %1724 = vmatprep.subr.mxu0 0.0
      %1725 = vmatpush1.msra.mxu0 0.0
      %1726 = vmatprep.subr.mxu0 0.0
      %1727 = vmatpush1.msra.mxu0 0.0
      %1728 = vmatprep.subr.mxu0 0.0
      %1729 = vmatpush1.msra.mxu0 0.0
      %1730 = vmatprep.subr.mxu0 0.0
      %1731 = vmatpush1.msra.mxu0 0.0
      %1732 = vmatprep.subr.mxu0 0.0
      %1733 = vmatpush1.msra.mxu0 0.0
      %1734 = vmatprep.subr.mxu0 0.0
      %1735 = vmatpush1.msra.mxu0 0.0
      %1736 = vmatprep.subr.mxu0 0.0
      %1737 = vmatpush1.msra.mxu0 0.0
      %1738 = vmatprep.subr.mxu0 0.0
      %1739 = vmatpush1.msra.mxu0 0.0
      %1740 = vmatprep.subr.mxu0 0.0
      %1741 = vmatpush1.msra.mxu0 0.0
      %1742 = vmatprep.subr.mxu0 0.0
      %1743 = vmatpush1.msra.mxu0 0.0
      %1744 = vmatprep.subr.mxu0 0.0
      %1745 = vmatpush1.msra.mxu0 0.0
      %1746 = vmatprep.subr.mxu0 0.0
      %1747 = vmatpush1.msra.mxu0 0.0
      %1748 = vmatprep.subr.mxu0 0.0
      %1749 = vmatpush1.msra.mxu0 0.0
      %1750 = vmatprep.subr.mxu0 0.0
      %1751 = vmatpush1.msra.mxu0 0.0
      %1752 = vmatprep.subr.mxu0 0.0
      %1753 = vmatpush1.msra.mxu0 0.0
      %1754 = vmatprep.subr.mxu0 0.0
      %1755 = vmatpush1.msra.mxu0 0.0
      %1756 = vmatprep.subr.mxu0 0.0
      %1757 = vmatpush1.msra.mxu0 0.0
      %1758 = vmatprep.subr.mxu0 0.0
      %1759 = vmatpush1.msra.mxu0 0.0
      %1760 = vmatprep.subr.mxu0 0.0
      %1761 = vmatpush1.msra.mxu0 0.0
      %1762 = vmatprep.subr.mxu0 0.0
      %1763 = vmatpush1.msra.mxu0 0.0
      %1764 = vmatprep.subr.mxu0 0.0
      %1765 = vmatpush1.msra.mxu0 0.0
      %1766 = vmatprep.subr.mxu0 0.0
      %1767 = vmatpush1.msra.mxu0 0.0
      %1768 = vmatprep.subr.mxu0 0.0
      %1769 = vmatpush1.msra.mxu0 0.0
      %1770 = vmatprep.subr.mxu0 0.0
      %1771 = vmatpush1.msra.mxu0 0.0
      %1772 = vmatprep.mubr.f32.mxu0 0.0
      %1773 = vmatmul.mubr.f32.gmra.mrb[0].mxu0 %v1493
      %v1774 = vpop.f32.mrb[0].mxu0
      %v1775 = vadd.f32 0.0, %v1774
      %v1776 = vpop.f32.mrb[0].mxu0
      %v1777 = vadd.f32 0.0, %v1776
      %1778 = vdwg.mxu0
      %1779 = vrot.lane.b32.xlu0 %v1562, 126
      %v1780 = vpop.permute.xlu0 %1779
      %1781 = vrot.lane.b32.xlu0 %v1564, 126
      %v1782 = vpop.permute.xlu0 %1781
      %1783 = vrot.lane.b32.xlu0 %v1633, 126
      %v1784 = vpop.permute.xlu0 %1783
      %1785 = vrot.lane.b32.xlu0 %v1635, 126
      %v1786 = vpop.permute.xlu0 %1785
      %1787 = vrot.lane.b32.xlu0 %v1704, 126
      %v1788 = vpop.permute.xlu0 %1787
      %1789 = vrot.lane.b32.xlu0 %v1706, 126
      %v1790 = vpop.permute.xlu0 %1789
      %1791 = vrot.lane.b32.xlu0 %v1775, 126
      %v1792 = vpop.permute.xlu0 %1791
      %1793 = vrot.lane.b32.xlu0 %v1777, 126
      %v1794 = vpop.permute.xlu0 %1793
      %vm1795 = vcmp.lt.s32.totalorder %v1193, 126
      %v1796 = vsel %vm1795, %v1792, %v1794
      %v1797 = vsel %vm1795, %v1790, %v1792
      %v1798 = vsel %vm1795, %v1788, %v1790
      %v1799 = vsel %vm1795, %v1786, %v1788
      %v1800 = vsel %vm1795, %v1784, %v1786
      %v1801 = vsel %vm1795, %v1782, %v1784
      %v1802 = vsel %vm1795, %v1780, %v1782
      %v1803 = vsel %vm1795, %v1794, %v1780
      %v1804 = vadd.f32 %v1273, %v1802
      %v1805 = vadd.f32 %v1275, %v1801
      %v1806 = vadd.f32 %v1344, %v1800
      %v1807 = vadd.f32 %v1346, %v1799
      %v1808 = vadd.f32 %v1415, %v1798
      %v1809 = vadd.f32 %v1417, %v1797
      %v1810 = vadd.f32 %v1486, %v1796
      %v1811 = vadd.f32 %v1488, %v1803
      %s1812 = scalar_lea.vmem %s7, 12
      %v1813 = vld [vmem:[%s1812] sm:$0xf]
      %v1815 = vsel %vm863, %v1813, 0
      %1817 = vmatprep.subr.mxu0 %v872
      %1818 = vmatpush1.msra.mxu0 %v869
      %1819 = vmatprep.subr.mxu0 0.0
      %1820 = vmatpush1.msra.mxu0 0.0
      %1821 = vmatprep.subr.mxu0 0.0
      %1822 = vmatpush1.msra.mxu0 0.0
      %1823 = vmatprep.subr.mxu0 0.0
      %1824 = vmatpush1.msra.mxu0 0.0
      %1825 = vmatprep.subr.mxu0 0.0
      %1826 = vmatpush1.msra.mxu0 0.0
      %1827 = vmatprep.subr.mxu0 0.0
      %1828 = vmatpush1.msra.mxu0 0.0
      %1829 = vmatprep.subr.mxu0 0.0
      %1830 = vmatpush1.msra.mxu0 0.0
      %1831 = vmatprep.subr.mxu0 0.0
      %1832 = vmatpush1.msra.mxu0 0.0
      %1833 = vmatprep.subr.mxu0 0.0
      %1834 = vmatpush1.msra.mxu0 0.0
      %1835 = vmatprep.subr.mxu0 0.0
      %1836 = vmatpush1.msra.mxu0 0.0
      %1837 = vmatprep.subr.mxu0 0.0
      %1838 = vmatpush1.msra.mxu0 0.0
      %1839 = vmatprep.subr.mxu0 0.0
      %1840 = vmatpush1.msra.mxu0 0.0
      %1841 = vmatprep.subr.mxu0 0.0
      %1842 = vmatpush1.msra.mxu0 0.0
      %1843 = vmatprep.subr.mxu0 0.0
      %1844 = vmatpush1.msra.mxu0 0.0
      %1845 = vmatprep.subr.mxu0 0.0
      %1846 = vmatpush1.msra.mxu0 0.0
      %1847 = vmatprep.subr.mxu0 0.0
      %1848 = vmatpush1.msra.mxu0 0.0
      %1849 = vmatprep.subr.mxu0 0.0
      %1850 = vmatpush1.msra.mxu0 0.0
      %1851 = vmatprep.subr.mxu0 0.0
      %1852 = vmatpush1.msra.mxu0 0.0
      %1853 = vmatprep.subr.mxu0 0.0
      %1854 = vmatpush1.msra.mxu0 0.0
      %1855 = vmatprep.subr.mxu0 0.0
      %1856 = vmatpush1.msra.mxu0 0.0
      %1857 = vmatprep.subr.mxu0 0.0
      %1858 = vmatpush1.msra.mxu0 0.0
      %1859 = vmatprep.subr.mxu0 0.0
      %1860 = vmatpush1.msra.mxu0 0.0
      %1861 = vmatprep.subr.mxu0 0.0
      %1862 = vmatpush1.msra.mxu0 0.0
      %1863 = vmatprep.subr.mxu0 0.0
      %1864 = vmatpush1.msra.mxu0 0.0
      %1865 = vmatprep.subr.mxu0 0.0
      %1866 = vmatpush1.msra.mxu0 0.0
      %1867 = vmatprep.subr.mxu0 0.0
      %1868 = vmatpush1.msra.mxu0 0.0
      %1869 = vmatprep.subr.mxu0 0.0
      %1870 = vmatpush1.msra.mxu0 0.0
      %1871 = vmatprep.subr.mxu0 0.0
      %1872 = vmatpush1.msra.mxu0 0.0
      %1873 = vmatprep.subr.mxu0 0.0
      %1874 = vmatpush1.msra.mxu0 0.0
      %1875 = vmatprep.subr.mxu0 0.0
      %1876 = vmatpush1.msra.mxu0 0.0
      %1877 = vmatprep.subr.mxu0 0.0
      %1878 = vmatpush1.msra.mxu0 0.0
      %1879 = vmatprep.subr.mxu0 0.0
      %1880 = vmatpush1.msra.mxu0 0.0
      %1881 = vmatprep.mubr.f32.mxu0 0.0
      %1882 = vmatmul.mubr.f32.gmra.mrb[0].mxu0 %v1815
      %v1883 = vpop.f32.mrb[0].mxu0
      %v1884 = vadd.f32 0.0, %v1883
      %v1885 = vpop.f32.mrb[0].mxu0
      %v1886 = vadd.f32 0.0, %v1885
      %1887 = vdwg.mxu0
      %1888 = vmatprep.subr.mxu0 %v878
      %1889 = vmatpush1.msra.mxu0 %v875
      %1890 = vmatprep.subr.mxu0 0.0
      %1891 = vmatpush1.msra.mxu0 0.0
      %1892 = vmatprep.subr.mxu0 0.0
      %1893 = vmatpush1.msra.mxu0 0.0
      %1894 = vmatprep.subr.mxu0 0.0
      %1895 = vmatpush1.msra.mxu0 0.0
      %1896 = vmatprep.subr.mxu0 0.0
      %1897 = vmatpush1.msra.mxu0 0.0
      %1898 = vmatprep.subr.mxu0 0.0
      %1899 = vmatpush1.msra.mxu0 0.0
      %1900 = vmatprep.subr.mxu0 0.0
      %1901 = vmatpush1.msra.mxu0 0.0
      %1902 = vmatprep.subr.mxu0 0.0
      %1903 = vmatpush1.msra.mxu0 0.0
      %1904 = vmatprep.subr.mxu0 0.0
      %1905 = vmatpush1.msra.mxu0 0.0
      %1906 = vmatprep.subr.mxu0 0.0
      %1907 = vmatpush1.msra.mxu0 0.0
      %1908 = vmatprep.subr.mxu0 0.0
      %1909 = vmatpush1.msra.mxu0 0.0
      %1910 = vmatprep.subr.mxu0 0.0
      %1911 = vmatpush1.msra.mxu0 0.0
      %1912 = vmatprep.subr.mxu0 0.0
      %1913 = vmatpush1.msra.mxu0 0.0
      %1914 = vmatprep.subr.mxu0 0.0
      %1915 = vmatpush1.msra.mxu0 0.0
      %1916 = vmatprep.subr.mxu0 0.0
      %1917 = vmatpush1.msra.mxu0 0.0
      %1918 = vmatprep.subr.mxu0 0.0
      %1919 = vmatpush1.msra.mxu0 0.0
      %1920 = vmatprep.subr.mxu0 0.0
      %1921 = vmatpush1.msra.mxu0 0.0
      %1922 = vmatprep.subr.mxu0 0.0
      %1923 = vmatpush1.msra.mxu0 0.0
      %1924 = vmatprep.subr.mxu0 0.0
      %1925 = vmatpush1.msra.mxu0 0.0
      %1926 = vmatprep.subr.mxu0 0.0
      %1927 = vmatpush1.msra.mxu0 0.0
      %1928 = vmatprep.subr.mxu0 0.0
      %1929 = vmatpush1.msra.mxu0 0.0
      %1930 = vmatprep.subr.mxu0 0.0
      %1931 = vmatpush1.msra.mxu0 0.0
      %1932 = vmatprep.subr.mxu0 0.0
      %1933 = vmatpush1.msra.mxu0 0.0
      %1934 = vmatprep.subr.mxu0 0.0
      %1935 = vmatpush1.msra.mxu0 0.0
      %1936 = vmatprep.subr.mxu0 0.0
      %1937 = vmatpush1.msra.mxu0 0.0
      %1938 = vmatprep.subr.mxu0 0.0
      %1939 = vmatpush1.msra.mxu0 0.0
      %1940 = vmatprep.subr.mxu0 0.0
      %1941 = vmatpush1.msra.mxu0 0.0
      %1942 = vmatprep.subr.mxu0 0.0
      %1943 = vmatpush1.msra.mxu0 0.0
      %1944 = vmatprep.subr.mxu0 0.0
      %1945 = vmatpush1.msra.mxu0 0.0
      %1946 = vmatprep.subr.mxu0 0.0
      %1947 = vmatpush1.msra.mxu0 0.0
      %1948 = vmatprep.subr.mxu0 0.0
      %1949 = vmatpush1.msra.mxu0 0.0
      %1950 = vmatprep.subr.mxu0 0.0
      %1951 = vmatpush1.msra.mxu0 0.0
      %1952 = vmatprep.mubr.f32.mxu0 0.0
      %1953 = vmatmul.mubr.f32.gmra.mrb[0].mxu0 %v1815
      %v1954 = vpop.f32.mrb[0].mxu0
      %v1955 = vadd.f32 0.0, %v1954
      %v1956 = vpop.f32.mrb[0].mxu0
      %v1957 = vadd.f32 0.0, %v1956
      %1958 = vdwg.mxu0
      %1959 = vmatprep.subr.mxu0 %v884
      %1960 = vmatpush1.msra.mxu0 %v881
      %1961 = vmatprep.subr.mxu0 0.0
      %1962 = vmatpush1.msra.mxu0 0.0
      %1963 = vmatprep.subr.mxu0 0.0
      %1964 = vmatpush1.msra.mxu0 0.0
      %1965 = vmatprep.subr.mxu0 0.0
      %1966 = vmatpush1.msra.mxu0 0.0
      %1967 = vmatprep.subr.mxu0 0.0
      %1968 = vmatpush1.msra.mxu0 0.0
      %1969 = vmatprep.subr.mxu0 0.0
      %1970 = vmatpush1.msra.mxu0 0.0
      %1971 = vmatprep.subr.mxu0 0.0
      %1972 = vmatpush1.msra.mxu0 0.0
      %1973 = vmatprep.subr.mxu0 0.0
      %1974 = vmatpush1.msra.mxu0 0.0
      %1975 = vmatprep.subr.mxu0 0.0
      %1976 = vmatpush1.msra.mxu0 0.0
      %1977 = vmatprep.subr.mxu0 0.0
      %1978 = vmatpush1.msra.mxu0 0.0
      %1979 = vmatprep.subr.mxu0 0.0
      %1980 = vmatpush1.msra.mxu0 0.0
      %1981 = vmatprep.subr.mxu0 0.0
      %1982 = vmatpush1.msra.mxu0 0.0
      %1983 = vmatprep.subr.mxu0 0.0
      %1984 = vmatpush1.msra.mxu0 0.0
      %1985 = vmatprep.subr.mxu0 0.0
      %1986 = vmatpush1.msra.mxu0 0.0
      %1987 = vmatprep.subr.mxu0 0.0
      %1988 = vmatpush1.msra.mxu0 0.0
      %1989 = vmatprep.subr.mxu0 0.0
      %1990 = vmatpush1.msra.mxu0 0.0
      %1991 = vmatprep.subr.mxu0 0.0
      %1992 = vmatpush1.msra.mxu0 0.0
      %1993 = vmatprep.subr.mxu0 0.0
      %1994 = vmatpush1.msra.mxu0 0.0
      %1995 = vmatprep.subr.mxu0 0.0
      %1996 = vmatpush1.msra.mxu0 0.0
      %1997 = vmatprep.subr.mxu0 0.0
      %1998 = vmatpush1.msra.mxu0 0.0
      %1999 = vmatprep.subr.mxu0 0.0
      %2000 = vmatpush1.msra.mxu0 0.0
      %2001 = vmatprep.subr.mxu0 0.0
      %2002 = vmatpush1.msra.mxu0 0.0
      %2003 = vmatprep.subr.mxu0 0.0
      %2004 = vmatpush1.msra.mxu0 0.0
      %2005 = vmatprep.subr.mxu0 0.0
      %2006 = vmatpush1.msra.mxu0 0.0
      %2007 = vmatprep.subr.mxu0 0.0
      %2008 = vmatpush1.msra.mxu0 0.0
      %2009 = vmatprep.subr.mxu0 0.0
      %2010 = vmatpush1.msra.mxu0 0.0
      %2011 = vmatprep.subr.mxu0 0.0
      %2012 = vmatpush1.msra.mxu0 0.0
      %2013 = vmatprep.subr.mxu0 0.0
      %2014 = vmatpush1.msra.mxu0 0.0
      %2015 = vmatprep.subr.mxu0 0.0
      %2016 = vmatpush1.msra.mxu0 0.0
      %2017 = vmatprep.subr.mxu0 0.0
      %2018 = vmatpush1.msra.mxu0 0.0
      %2019 = vmatprep.subr.mxu0 0.0
      %2020 = vmatpush1.msra.mxu0 0.0
      %2021 = vmatprep.subr.mxu0 0.0
      %2022 = vmatpush1.msra.mxu0 0.0
      %2023 = vmatprep.mubr.f32.mxu0 0.0
      %2024 = vmatmul.mubr.f32.gmra.mrb[0].mxu0 %v1815
      %v2025 = vpop.f32.mrb[0].mxu0
      %v2026 = vadd.f32 0.0, %v2025
      %v2027 = vpop.f32.mrb[0].mxu0
      %v2028 = vadd.f32 0.0, %v2027
      %2029 = vdwg.mxu0
      %2030 = vmatprep.subr.mxu0 %v890
      %2031 = vmatpush1.msra.mxu0 %v887
      %2032 = vmatprep.subr.mxu0 0.0
      %2033 = vmatpush1.msra.mxu0 0.0
      %2034 = vmatprep.subr.mxu0 0.0
      %2035 = vmatpush1.msra.mxu0 0.0
      %2036 = vmatprep.subr.mxu0 0.0
      %2037 = vmatpush1.msra.mxu0 0.0
      %2038 = vmatprep.subr.mxu0 0.0
      %2039 = vmatpush1.msra.mxu0 0.0
      %2040 = vmatprep.subr.mxu0 0.0
      %2041 = vmatpush1.msra.mxu0 0.0
      %2042 = vmatprep.subr.mxu0 0.0
      %2043 = vmatpush1.msra.mxu0 0.0
      %2044 = vmatprep.subr.mxu0 0.0
      %2045 = vmatpush1.msra.mxu0 0.0
      %2046 = vmatprep.subr.mxu0 0.0
      %2047 = vmatpush1.msra.mxu0 0.0
      %2048 = vmatprep.subr.mxu0 0.0
      %2049 = vmatpush1.msra.mxu0 0.0
      %2050 = vmatprep.subr.mxu0 0.0
      %2051 = vmatpush1.msra.mxu0 0.0
      %2052 = vmatprep.subr.mxu0 0.0
      %2053 = vmatpush1.msra.mxu0 0.0
      %2054 = vmatprep.subr.mxu0 0.0
      %2055 = vmatpush1.msra.mxu0 0.0
      %2056 = vmatprep.subr.mxu0 0.0
      %2057 = vmatpush1.msra.mxu0 0.0
      %2058 = vmatprep.subr.mxu0 0.0
      %2059 = vmatpush1.msra.mxu0 0.0
      %2060 = vmatprep.subr.mxu0 0.0
      %2061 = vmatpush1.msra.mxu0 0.0
      %2062 = vmatprep.subr.mxu0 0.0
      %2063 = vmatpush1.msra.mxu0 0.0
      %2064 = vmatprep.subr.mxu0 0.0
      %2065 = vmatpush1.msra.mxu0 0.0
      %2066 = vmatprep.subr.mxu0 0.0
      %2067 = vmatpush1.msra.mxu0 0.0
      %2068 = vmatprep.subr.mxu0 0.0
      %2069 = vmatpush1.msra.mxu0 0.0
      %2070 = vmatprep.subr.mxu0 0.0
      %2071 = vmatpush1.msra.mxu0 0.0
      %2072 = vmatprep.subr.mxu0 0.0
      %2073 = vmatpush1.msra.mxu0 0.0
      %2074 = vmatprep.subr.mxu0 0.0
      %2075 = vmatpush1.msra.mxu0 0.0
      %2076 = vmatprep.subr.mxu0 0.0
      %2077 = vmatpush1.msra.mxu0 0.0
      %2078 = vmatprep.subr.mxu0 0.0
      %2079 = vmatpush1.msra.mxu0 0.0
      %2080 = vmatprep.subr.mxu0 0.0
      %2081 = vmatpush1.msra.mxu0 0.0
      %2082 = vmatprep.subr.mxu0 0.0
      %2083 = vmatpush1.msra.mxu0 0.0
      %2084 = vmatprep.subr.mxu0 0.0
      %2085 = vmatpush1.msra.mxu0 0.0
      %2086 = vmatprep.subr.mxu0 0.0
      %2087 = vmatpush1.msra.mxu0 0.0
      %2088 = vmatprep.subr.mxu0 0.0
      %2089 = vmatpush1.msra.mxu0 0.0
      %2090 = vmatprep.subr.mxu0 0.0
      %2091 = vmatpush1.msra.mxu0 0.0
      %2092 = vmatprep.subr.mxu0 0.0
      %2093 = vmatpush1.msra.mxu0 0.0
      %2094 = vmatprep.mubr.f32.mxu0 0.0
      %2095 = vmatmul.mubr.f32.gmra.mrb[0].mxu0 %v1815
      %v2096 = vpop.f32.mrb[0].mxu0
      %v2097 = vadd.f32 0.0, %v2096
      %v2098 = vpop.f32.mrb[0].mxu0
      %v2099 = vadd.f32 0.0, %v2098
      %2100 = vdwg.mxu0
      %2101 = vrot.lane.b32.xlu0 %v1884, 96
      %v2102 = vpop.permute.xlu0 %2101
      %2103 = vrot.lane.b32.xlu0 %v1886, 96
      %v2104 = vpop.permute.xlu0 %2103
      %2105 = vrot.lane.b32.xlu0 %v1955, 96
      %v2106 = vpop.permute.xlu0 %2105
      %2107 = vrot.lane.b32.xlu0 %v1957, 96
      %v2108 = vpop.permute.xlu0 %2107
      %2109 = vrot.lane.b32.xlu0 %v2026, 96
      %v2110 = vpop.permute.xlu0 %2109
      %2111 = vrot.lane.b32.xlu0 %v2028, 96
      %v2112 = vpop.permute.xlu0 %2111
      %2113 = vrot.lane.b32.xlu0 %v2097, 96
      %v2114 = vpop.permute.xlu0 %2113
      %2115 = vrot.lane.b32.xlu0 %v2099, 96
      %v2116 = vpop.permute.xlu0 %2115
      %vm2117 = vcmp.lt.s32.totalorder %v1193, 96
      %v2118 = vsel %vm2117, %v2114, %v2116
      %v2119 = vsel %vm2117, %v2112, %v2114
      %v2120 = vsel %vm2117, %v2110, %v2112
      %v2121 = vsel %vm2117, %v2108, %v2110
      %v2122 = vsel %vm2117, %v2106, %v2108
      %v2123 = vsel %vm2117, %v2104, %v2106
      %v2124 = vsel %vm2117, %v2102, %v2104
      %v2125 = vsel %vm2117, %v2116, %v2102
      %v2126 = vadd.f32 %v1804, %v2124
      %v2127 = vadd.f32 %v1805, %v2123
      %v2128 = vadd.f32 %v1806, %v2122
      %v2129 = vadd.f32 %v1807, %v2121
      %v2130 = vadd.f32 %v1808, %v2120
      %v2131 = vadd.f32 %v1809, %v2119
      %v2132 = vadd.f32 %v1810, %v2118
      %v2133 = vadd.f32 %v1811, %v2125
      %s2134 = scalar_lea.vmem %s7, 16
      %v2135 = vld [vmem:[%s2134] sm:$0xf]
      %v2137 = vsel %vm863, %v2135, 0
      %2139 = vmatprep.subr.mxu0 %v872
      %2140 = vmatpush1.msra.mxu0 %v869
      %2141 = vmatprep.subr.mxu0 0.0
      %2142 = vmatpush1.msra.mxu0 0.0
      %2143 = vmatprep.subr.mxu0 0.0
      %2144 = vmatpush1.msra.mxu0 0.0
      %2145 = vmatprep.subr.mxu0 0.0
      %2146 = vmatpush1.msra.mxu0 0.0
      %2147 = vmatprep.subr.mxu0 0.0
      %2148 = vmatpush1.msra.mxu0 0.0
      %2149 = vmatprep.subr.mxu0 0.0
      %2150 = vmatpush1.msra.mxu0 0.0
      %2151 = vmatprep.subr.mxu0 0.0
      %2152 = vmatpush1.msra.mxu0 0.0
      %2153 = vmatprep.subr.mxu0 0.0
      %2154 = vmatpush1.msra.mxu0 0.0
      %2155 = vmatprep.subr.mxu0 0.0
      %2156 = vmatpush1.msra.mxu0 0.0
      %2157 = vmatprep.subr.mxu0 0.0
      %2158 = vmatpush1.msra.mxu0 0.0
      %2159 = vmatprep.subr.mxu0 0.0
      %2160 = vmatpush1.msra.mxu0 0.0
      %2161 = vmatprep.subr.mxu0 0.0
      %2162 = vmatpush1.msra.mxu0 0.0
      %2163 = vmatprep.subr.mxu0 0.0
      %2164 = vmatpush1.msra.mxu0 0.0
      %2165 = vmatprep.subr.mxu0 0.0
      %2166 = vmatpush1.msra.mxu0 0.0
      %2167 = vmatprep.subr.mxu0 0.0
      %2168 = vmatpush1.msra.mxu0 0.0
      %2169 = vmatprep.subr.mxu0 0.0
      %2170 = vmatpush1.msra.mxu0 0.0
      %2171 = vmatprep.subr.mxu0 0.0
      %2172 = vmatpush1.msra.mxu0 0.0
      %2173 = vmatprep.subr.mxu0 0.0
      %2174 = vmatpush1.msra.mxu0 0.0
      %2175 = vmatprep.subr.mxu0 0.0
      %2176 = vmatpush1.msra.mxu0 0.0
      %2177 = vmatprep.subr.mxu0 0.0
      %2178 = vmatpush1.msra.mxu0 0.0
      %2179 = vmatprep.subr.mxu0 0.0
      %2180 = vmatpush1.msra.mxu0 0.0
      %2181 = vmatprep.subr.mxu0 0.0
      %2182 = vmatpush1.msra.mxu0 0.0
      %2183 = vmatprep.subr.mxu0 0.0
      %2184 = vmatpush1.msra.mxu0 0.0
      %2185 = vmatprep.subr.mxu0 0.0
      %2186 = vmatpush1.msra.mxu0 0.0
      %2187 = vmatprep.subr.mxu0 0.0
      %2188 = vmatpush1.msra.mxu0 0.0
      %2189 = vmatprep.subr.mxu0 0.0
      %2190 = vmatpush1.msra.mxu0 0.0
      %2191 = vmatprep.subr.mxu0 0.0
      %2192 = vmatpush1.msra.mxu0 0.0
      %2193 = vmatprep.subr.mxu0 0.0
      %2194 = vmatpush1.msra.mxu0 0.0
      %2195 = vmatprep.subr.mxu0 0.0
      %2196 = vmatpush1.msra.mxu0 0.0
      %2197 = vmatprep.subr.mxu0 0.0
      %2198 = vmatpush1.msra.mxu0 0.0
      %2199 = vmatprep.subr.mxu0 0.0
      %2200 = vmatpush1.msra.mxu0 0.0
      %2201 = vmatprep.subr.mxu0 0.0
      %2202 = vmatpush1.msra.mxu0 0.0
      %2203 = vmatprep.mubr.f32.mxu0 0.0
      %2204 = vmatmul.mubr.f32.gmra.mrb[0].mxu0 %v2137
      %v2205 = vpop.f32.mrb[0].mxu0
      %v2206 = vadd.f32 0.0, %v2205
      %v2207 = vpop.f32.mrb[0].mxu0
      %v2208 = vadd.f32 0.0, %v2207
      %2209 = vdwg.mxu0
      %2210 = vmatprep.subr.mxu0 %v878
      %2211 = vmatpush1.msra.mxu0 %v875
      %2212 = vmatprep.subr.mxu0 0.0
      %2213 = vmatpush1.msra.mxu0 0.0
      %2214 = vmatprep.subr.mxu0 0.0
      %2215 = vmatpush1.msra.mxu0 0.0
      %2216 = vmatprep.subr.mxu0 0.0
      %2217 = vmatpush1.msra.mxu0 0.0
      %2218 = vmatprep.subr.mxu0 0.0
      %2219 = vmatpush1.msra.mxu0 0.0
      %2220 = vmatprep.subr.mxu0 0.0
      %2221 = vmatpush1.msra.mxu0 0.0
      %2222 = vmatprep.subr.mxu0 0.0
      %2223 = vmatpush1.msra.mxu0 0.0
      %2224 = vmatprep.subr.mxu0 0.0
      %2225 = vmatpush1.msra.mxu0 0.0
      %2226 = vmatprep.subr.mxu0 0.0
      %2227 = vmatpush1.msra.mxu0 0.0
      %2228 = vmatprep.subr.mxu0 0.0
      %2229 = vmatpush1.msra.mxu0 0.0
      %2230 = vmatprep.subr.mxu0 0.0
      %2231 = vmatpush1.msra.mxu0 0.0
      %2232 = vmatprep.subr.mxu0 0.0
      %2233 = vmatpush1.msra.mxu0 0.0
      %2234 = vmatprep.subr.mxu0 0.0
      %2235 = vmatpush1.msra.mxu0 0.0
      %2236 = vmatprep.subr.mxu0 0.0
      %2237 = vmatpush1.msra.mxu0 0.0
      %2238 = vmatprep.subr.mxu0 0.0
      %2239 = vmatpush1.msra.mxu0 0.0
      %2240 = vmatprep.subr.mxu0 0.0
      %2241 = vmatpush1.msra.mxu0 0.0
      %2242 = vmatprep.subr.mxu0 0.0
      %2243 = vmatpush1.msra.mxu0 0.0
      %2244 = vmatprep.subr.mxu0 0.0
      %2245 = vmatpush1.msra.mxu0 0.0
      %2246 = vmatprep.subr.mxu0 0.0
      %2247 = vmatpush1.msra.mxu0 0.0
      %2248 = vmatprep.subr.mxu0 0.0
      %2249 = vmatpush1.msra.mxu0 0.0
      %2250 = vmatprep.subr.mxu0 0.0
      %2251 = vmatpush1.msra.mxu0 0.0
      %2252 = vmatprep.subr.mxu0 0.0
      %2253 = vmatpush1.msra.mxu0 0.0
      %2254 = vmatprep.subr.mxu0 0.0
      %2255 = vmatpush1.msra.mxu0 0.0
      %2256 = vmatprep.subr.mxu0 0.0
      %2257 = vmatpush1.msra.mxu0 0.0
      %2258 = vmatprep.subr.mxu0 0.0
      %2259 = vmatpush1.msra.mxu0 0.0
      %2260 = vmatprep.subr.mxu0 0.0
      %2261 = vmatpush1.msra.mxu0 0.0
      %2262 = vmatprep.subr.mxu0 0.0
      %2263 = vmatpush1.msra.mxu0 0.0
      %2264 = vmatprep.subr.mxu0 0.0
      %2265 = vmatpush1.msra.mxu0 0.0
      %2266 = vmatprep.subr.mxu0 0.0
      %2267 = vmatpush1.msra.mxu0 0.0
      %2268 = vmatprep.subr.mxu0 0.0
      %2269 = vmatpush1.msra.mxu0 0.0
      %2270 = vmatprep.subr.mxu0 0.0
      %2271 = vmatpush1.msra.mxu0 0.0
      %2272 = vmatprep.subr.mxu0 0.0
      %2273 = vmatpush1.msra.mxu0 0.0
      %2274 = vmatprep.mubr.f32.mxu0 0.0
      %2275 = vmatmul.mubr.f32.gmra.mrb[0].mxu0 %v2137
      %v2276 = vpop.f32.mrb[0].mxu0
      %v2277 = vadd.f32 0.0, %v2276
      %v2278 = vpop.f32.mrb[0].mxu0
      %v2279 = vadd.f32 0.0, %v2278
      %2280 = vdwg.mxu0
      %2281 = vmatprep.subr.mxu0 %v884
      %2282 = vmatpush1.msra.mxu0 %v881
      %2283 = vmatprep.subr.mxu0 0.0
      %2284 = vmatpush1.msra.mxu0 0.0
      %2285 = vmatprep.subr.mxu0 0.0
      %2286 = vmatpush1.msra.mxu0 0.0
      %2287 = vmatprep.subr.mxu0 0.0
      %2288 = vmatpush1.msra.mxu0 0.0
      %2289 = vmatprep.subr.mxu0 0.0
      %2290 = vmatpush1.msra.mxu0 0.0
      %2291 = vmatprep.subr.mxu0 0.0
      %2292 = vmatpush1.msra.mxu0 0.0
      %2293 = vmatprep.subr.mxu0 0.0
      %2294 = vmatpush1.msra.mxu0 0.0
      %2295 = vmatprep.subr.mxu0 0.0
      %2296 = vmatpush1.msra.mxu0 0.0
      %2297 = vmatprep.subr.mxu0 0.0
      %2298 = vmatpush1.msra.mxu0 0.0
      %2299 = vmatprep.subr.mxu0 0.0
      %2300 = vmatpush1.msra.mxu0 0.0
      %2301 = vmatprep.subr.mxu0 0.0
      %2302 = vmatpush1.msra.mxu0 0.0
      %2303 = vmatprep.subr.mxu0 0.0
      %2304 = vmatpush1.msra.mxu0 0.0
      %2305 = vmatprep.subr.mxu0 0.0
      %2306 = vmatpush1.msra.mxu0 0.0
      %2307 = vmatprep.subr.mxu0 0.0
      %2308 = vmatpush1.msra.mxu0 0.0
      %2309 = vmatprep.subr.mxu0 0.0
      %2310 = vmatpush1.msra.mxu0 0.0
      %2311 = vmatprep.subr.mxu0 0.0
      %2312 = vmatpush1.msra.mxu0 0.0
      %2313 = vmatprep.subr.mxu0 0.0
      %2314 = vmatpush1.msra.mxu0 0.0
      %2315 = vmatprep.subr.mxu0 0.0
      %2316 = vmatpush1.msra.mxu0 0.0
      %2317 = vmatprep.subr.mxu0 0.0
      %2318 = vmatpush1.msra.mxu0 0.0
      %2319 = vmatprep.subr.mxu0 0.0
      %2320 = vmatpush1.msra.mxu0 0.0
      %2321 = vmatprep.subr.mxu0 0.0
      %2322 = vmatpush1.msra.mxu0 0.0
      %2323 = vmatprep.subr.mxu0 0.0
      %2324 = vmatpush1.msra.mxu0 0.0
      %2325 = vmatprep.subr.mxu0 0.0
      %2326 = vmatpush1.msra.mxu0 0.0
      %2327 = vmatprep.subr.mxu0 0.0
      %2328 = vmatpush1.msra.mxu0 0.0
      %2329 = vmatprep.subr.mxu0 0.0
      %2330 = vmatpush1.msra.mxu0 0.0
      %2331 = vmatprep.subr.mxu0 0.0
      %2332 = vmatpush1.msra.mxu0 0.0
      %2333 = vmatprep.subr.mxu0 0.0
      %2334 = vmatpush1.msra.mxu0 0.0
      %2335 = vmatprep.subr.mxu0 0.0
      %2336 = vmatpush1.msra.mxu0 0.0
      %2337 = vmatprep.subr.mxu0 0.0
      %2338 = vmatpush1.msra.mxu0 0.0
      %2339 = vmatprep.subr.mxu0 0.0
      %2340 = vmatpush1.msra.mxu0 0.0
      %2341 = vmatprep.subr.mxu0 0.0
      %2342 = vmatpush1.msra.mxu0 0.0
      %2343 = vmatprep.subr.mxu0 0.0
      %2344 = vmatpush1.msra.mxu0 0.0
      %2345 = vmatprep.mubr.f32.mxu0 0.0
      %2346 = vmatmul.mubr.f32.gmra.mrb[0].mxu0 %v2137
      %v2347 = vpop.f32.mrb[0].mxu0
      %v2348 = vadd.f32 0.0, %v2347
      %v2349 = vpop.f32.mrb[0].mxu0
      %v2350 = vadd.f32 0.0, %v2349
      %2351 = vdwg.mxu0
      %2352 = vmatprep.subr.mxu0 %v890
      %2353 = vmatpush1.msra.mxu0 %v887
      %2354 = vmatprep.subr.mxu0 0.0
      %2355 = vmatpush1.msra.mxu0 0.0
      %2356 = vmatprep.subr.mxu0 0.0
      %2357 = vmatpush1.msra.mxu0 0.0
      %2358 = vmatprep.subr.mxu0 0.0
      %2359 = vmatpush1.msra.mxu0 0.0
      %2360 = vmatprep.subr.mxu0 0.0
      %2361 = vmatpush1.msra.mxu0 0.0
      %2362 = vmatprep.subr.mxu0 0.0
      %2363 = vmatpush1.msra.mxu0 0.0
      %2364 = vmatprep.subr.mxu0 0.0
      %2365 = vmatpush1.msra.mxu0 0.0
      %2366 = vmatprep.subr.mxu0 0.0
      %2367 = vmatpush1.msra.mxu0 0.0
      %2368 = vmatprep.subr.mxu0 0.0
      %2369 = vmatpush1.msra.mxu0 0.0
      %2370 = vmatprep.subr.mxu0 0.0
      %2371 = vmatpush1.msra.mxu0 0.0
      %2372 = vmatprep.subr.mxu0 0.0
      %2373 = vmatpush1.msra.mxu0 0.0
      %2374 = vmatprep.subr.mxu0 0.0
      %2375 = vmatpush1.msra.mxu0 0.0
      %2376 = vmatprep.subr.mxu0 0.0
      %2377 = vmatpush1.msra.mxu0 0.0
      %2378 = vmatprep.subr.mxu0 0.0
      %2379 = vmatpush1.msra.mxu0 0.0
      %2380 = vmatprep.subr.mxu0 0.0
      %2381 = vmatpush1.msra.mxu0 0.0
      %2382 = vmatprep.subr.mxu0 0.0
      %2383 = vmatpush1.msra.mxu0 0.0
      %2384 = vmatprep.subr.mxu0 0.0
      %2385 = vmatpush1.msra.mxu0 0.0
      %2386 = vmatprep.subr.mxu0 0.0
      %2387 = vmatpush1.msra.mxu0 0.0
      %2388 = vmatprep.subr.mxu0 0.0
      %2389 = vmatpush1.msra.mxu0 0.0
      %2390 = vmatprep.subr.mxu0 0.0
      %2391 = vmatpush1.msra.mxu0 0.0
      %2392 = vmatprep.subr.mxu0 0.0
      %2393 = vmatpush1.msra.mxu0 0.0
      %2394 = vmatprep.subr.mxu0 0.0
      %2395 = vmatpush1.msra.mxu0 0.0
      %2396 = vmatprep.subr.mxu0 0.0
      %2397 = vmatpush1.msra.mxu0 0.0
      %2398 = vmatprep.subr.mxu0 0.0
      %2399 = vmatpush1.msra.mxu0 0.0
      %2400 = vmatprep.subr.mxu0 0.0
      %2401 = vmatpush1.msra.mxu0 0.0
      %2402 = vmatprep.subr.mxu0 0.0
      %2403 = vmatpush1.msra.mxu0 0.0
      %2404 = vmatprep.subr.mxu0 0.0
      %2405 = vmatpush1.msra.mxu0 0.0
      %2406 = vmatprep.subr.mxu0 0.0
      %2407 = vmatpush1.msra.mxu0 0.0
      %2408 = vmatprep.subr.mxu0 0.0
      %2409 = vmatpush1.msra.mxu0 0.0
      %2410 = vmatprep.subr.mxu0 0.0
      %2411 = vmatpush1.msra.mxu0 0.0
      %2412 = vmatprep.subr.mxu0 0.0
      %2413 = vmatpush1.msra.mxu0 0.0
      %2414 = vmatprep.subr.mxu0 0.0
      %2415 = vmatpush1.msra.mxu0 0.0
      %2416 = vmatprep.mubr.f32.mxu0 0.0
      %2417 = vmatmul.mubr.f32.gmra.mrb[0].mxu0 %v2137
      %v2418 = vpop.f32.mrb[0].mxu0
      %v2419 = vadd.f32 0.0, %v2418
      %v2420 = vpop.f32.mrb[0].mxu0
      %v2421 = vadd.f32 0.0, %v2420
      %2422 = vdwg.mxu0
      %2423 = vrot.lane.b32.xlu0 %v2206, 95
      %v2424 = vpop.permute.xlu0 %2423
      %2425 = vrot.lane.b32.xlu0 %v2208, 95
      %v2426 = vpop.permute.xlu0 %2425
      %2427 = vrot.lane.b32.xlu0 %v2277, 95
      %v2428 = vpop.permute.xlu0 %2427
      %2429 = vrot.lane.b32.xlu0 %v2279, 95
      %v2430 = vpop.permute.xlu0 %2429
      %2431 = vrot.lane.b32.xlu0 %v2348, 95
      %v2432 = vpop.permute.xlu0 %2431
      %2433 = vrot.lane.b32.xlu0 %v2350, 95
      %v2434 = vpop.permute.xlu0 %2433
      %2435 = vrot.lane.b32.xlu0 %v2419, 95
      %v2436 = vpop.permute.xlu0 %2435
      %2437 = vrot.lane.b32.xlu0 %v2421, 95
      %v2438 = vpop.permute.xlu0 %2437
      %vm2439 = vcmp.lt.s32.totalorder %v1193, 95
      %v2440 = vsel %vm2439, %v2436, %v2438
      %v2441 = vsel %vm2439, %v2434, %v2436
      %v2442 = vsel %vm2439, %v2432, %v2434
      %v2443 = vsel %vm2439, %v2430, %v2432
      %v2444 = vsel %vm2439, %v2428, %v2430
      %v2445 = vsel %vm2439, %v2426, %v2428
      %v2446 = vsel %vm2439, %v2424, %v2426
      %v2447 = vsel %vm2439, %v2438, %v2424
      %v2448 = vadd.f32 %v2126, %v2446
      %v2449 = vadd.f32 %v2127, %v2445
      %v2450 = vadd.f32 %v2128, %v2444
      %v2451 = vadd.f32 %v2129, %v2443
      %v2452 = vadd.f32 %v2130, %v2442
      %v2453 = vadd.f32 %v2131, %v2441
      %v2454 = vadd.f32 %v2132, %v2440
      %v2455 = vadd.f32 %v2133, %v2447
      %s2456 = scalar_lea.vmem %s7, 20
      %v2457 = vld [vmem:[%s2456] sm:$0xf]
      %v2459 = vsel %vm863, %v2457, 0
      %2461 = vmatprep.subr.mxu0 %v872
      %2462 = vmatpush1.msra.mxu0 %v869
      %2463 = vmatprep.subr.mxu0 0.0
      %2464 = vmatpush1.msra.mxu0 0.0
      %2465 = vmatprep.subr.mxu0 0.0
      %2466 = vmatpush1.msra.mxu0 0.0
      %2467 = vmatprep.subr.mxu0 0.0
      %2468 = vmatpush1.msra.mxu0 0.0
      %2469 = vmatprep.subr.mxu0 0.0
      %2470 = vmatpush1.msra.mxu0 0.0
      %2471 = vmatprep.subr.mxu0 0.0
      %2472 = vmatpush1.msra.mxu0 0.0
      %2473 = vmatprep.subr.mxu0 0.0
      %2474 = vmatpush1.msra.mxu0 0.0
      %2475 = vmatprep.subr.mxu0 0.0
      %2476 = vmatpush1.msra.mxu0 0.0
      %2477 = vmatprep.subr.mxu0 0.0
      %2478 = vmatpush1.msra.mxu0 0.0
      %2479 = vmatprep.subr.mxu0 0.0
      %2480 = vmatpush1.msra.mxu0 0.0
      %2481 = vmatprep.subr.mxu0 0.0
      %2482 = vmatpush1.msra.mxu0 0.0
      %2483 = vmatprep.subr.mxu0 0.0
      %2484 = vmatpush1.msra.mxu0 0.0
      %2485 = vmatprep.subr.mxu0 0.0
      %2486 = vmatpush1.msra.mxu0 0.0
      %2487 = vmatprep.subr.mxu0 0.0
      %2488 = vmatpush1.msra.mxu0 0.0
      %2489 = vmatprep.subr.mxu0 0.0
      %2490 = vmatpush1.msra.mxu0 0.0
      %2491 = vmatprep.subr.mxu0 0.0
      %2492 = vmatpush1.msra.mxu0 0.0
      %2493 = vmatprep.subr.mxu0 0.0
      %2494 = vmatpush1.msra.mxu0 0.0
      %2495 = vmatprep.subr.mxu0 0.0
      %2496 = vmatpush1.msra.mxu0 0.0
      %2497 = vmatprep.subr.mxu0 0.0
      %2498 = vmatpush1.msra.mxu0 0.0
      %2499 = vmatprep.subr.mxu0 0.0
      %2500 = vmatpush1.msra.mxu0 0.0
      %2501 = vmatprep.subr.mxu0 0.0
      %2502 = vmatpush1.msra.mxu0 0.0
      %2503 = vmatprep.subr.mxu0 0.0
      %2504 = vmatpush1.msra.mxu0 0.0
      %2505 = vmatprep.subr.mxu0 0.0
      %2506 = vmatpush1.msra.mxu0 0.0
      %2507 = vmatprep.subr.mxu0 0.0
      %2508 = vmatpush1.msra.mxu0 0.0
      %2509 = vmatprep.subr.mxu0 0.0
      %2510 = vmatpush1.msra.mxu0 0.0
      %2511 = vmatprep.subr.mxu0 0.0
      %2512 = vmatpush1.msra.mxu0 0.0
      %2513 = vmatprep.subr.mxu0 0.0
      %2514 = vmatpush1.msra.mxu0 0.0
      %2515 = vmatprep.subr.mxu0 0.0
      %2516 = vmatpush1.msra.mxu0 0.0
      %2517 = vmatprep.subr.mxu0 0.0
      %2518 = vmatpush1.msra.mxu0 0.0
      %2519 = vmatprep.subr.mxu0 0.0
      %2520 = vmatpush1.msra.mxu0 0.0
      %2521 = vmatprep.subr.mxu0 0.0
      %2522 = vmatpush1.msra.mxu0 0.0
      %2523 = vmatprep.subr.mxu0 0.0
      %2524 = vmatpush1.msra.mxu0 0.0
      %2525 = vmatprep.mubr.f32.mxu0 0.0
      %2526 = vmatmul.mubr.f32.gmra.mrb[0].mxu0 %v2459
      %v2527 = vpop.f32.mrb[0].mxu0
      %v2528 = vadd.f32 0.0, %v2527
      %v2529 = vpop.f32.mrb[0].mxu0
      %v2530 = vadd.f32 0.0, %v2529
      %2531 = vdwg.mxu0
      %2532 = vmatprep.subr.mxu0 %v878
      %2533 = vmatpush1.msra.mxu0 %v875
      %2534 = vmatprep.subr.mxu0 0.0
      %2535 = vmatpush1.msra.mxu0 0.0
      %2536 = vmatprep.subr.mxu0 0.0
      %2537 = vmatpush1.msra.mxu0 0.0
      %2538 = vmatprep.subr.mxu0 0.0
      %2539 = vmatpush1.msra.mxu0 0.0
      %2540 = vmatprep.subr.mxu0 0.0
      %2541 = vmatpush1.msra.mxu0 0.0
      %2542 = vmatprep.subr.mxu0 0.0
      %2543 = vmatpush1.msra.mxu0 0.0
      %2544 = vmatprep.subr.mxu0 0.0
      %2545 = vmatpush1.msra.mxu0 0.0
      %2546 = vmatprep.subr.mxu0 0.0
      %2547 = vmatpush1.msra.mxu0 0.0
      %2548 = vmatprep.subr.mxu0 0.0
      %2549 = vmatpush1.msra.mxu0 0.0
      %2550 = vmatprep.subr.mxu0 0.0
      %2551 = vmatpush1.msra.mxu0 0.0
      %2552 = vmatprep.subr.mxu0 0.0
      %2553 = vmatpush1.msra.mxu0 0.0
      %2554 = vmatprep.subr.mxu0 0.0
      %2555 = vmatpush1.msra.mxu0 0.0
      %2556 = vmatprep.subr.mxu0 0.0
      %2557 = vmatpush1.msra.mxu0 0.0
      %2558 = vmatprep.subr.mxu0 0.0
      %2559 = vmatpush1.msra.mxu0 0.0
      %2560 = vmatprep.subr.mxu0 0.0
      %2561 = vmatpush1.msra.mxu0 0.0
      %2562 = vmatprep.subr.mxu0 0.0
      %2563 = vmatpush1.msra.mxu0 0.0
      %2564 = vmatprep.subr.mxu0 0.0
      %2565 = vmatpush1.msra.mxu0 0.0
      %2566 = vmatprep.subr.mxu0 0.0
      %2567 = vmatpush1.msra.mxu0 0.0
      %2568 = vmatprep.subr.mxu0 0.0
      %2569 = vmatpush1.msra.mxu0 0.0
      %2570 = vmatprep.subr.mxu0 0.0
      %2571 = vmatpush1.msra.mxu0 0.0
      %2572 = vmatprep.subr.mxu0 0.0
      %2573 = vmatpush1.msra.mxu0 0.0
      %2574 = vmatprep.subr.mxu0 0.0
      %2575 = vmatpush1.msra.mxu0 0.0
      %2576 = vmatprep.subr.mxu0 0.0
      %2577 = vmatpush1.msra.mxu0 0.0
      %2578 = vmatprep.subr.mxu0 0.0
      %2579 = vmatpush1.msra.mxu0 0.0
      %2580 = vmatprep.subr.mxu0 0.0
      %2581 = vmatpush1.msra.mxu0 0.0
      %2582 = vmatprep.subr.mxu0 0.0
      %2583 = vmatpush1.msra.mxu0 0.0
      %2584 = vmatprep.subr.mxu0 0.0
      %2585 = vmatpush1.msra.mxu0 0.0
      %2586 = vmatprep.subr.mxu0 0.0
      %2587 = vmatpush1.msra.mxu0 0.0
      %2588 = vmatprep.subr.mxu0 0.0
      %2589 = vmatpush1.msra.mxu0 0.0
      %2590 = vmatprep.subr.mxu0 0.0
      %2591 = vmatpush1.msra.mxu0 0.0
      %2592 = vmatprep.subr.mxu0 0.0
      %2593 = vmatpush1.msra.mxu0 0.0
      %2594 = vmatprep.subr.mxu0 0.0
      %2595 = vmatpush1.msra.mxu0 0.0
      %2596 = vmatprep.mubr.f32.mxu0 0.0
      %2597 = vmatmul.mubr.f32.gmra.mrb[0].mxu0 %v2459
      %v2598 = vpop.f32.mrb[0].mxu0
      %v2599 = vadd.f32 0.0, %v2598
      %v2600 = vpop.f32.mrb[0].mxu0
      %v2601 = vadd.f32 0.0, %v2600
      %2602 = vdwg.mxu0
      %2603 = vmatprep.subr.mxu0 %v884
      %2604 = vmatpush1.msra.mxu0 %v881
      %2605 = vmatprep.subr.mxu0 0.0
      %2606 = vmatpush1.msra.mxu0 0.0
      %2607 = vmatprep.subr.mxu0 0.0
      %2608 = vmatpush1.msra.mxu0 0.0
      %2609 = vmatprep.subr.mxu0 0.0
      %2610 = vmatpush1.msra.mxu0 0.0
      %2611 = vmatprep.subr.mxu0 0.0
      %2612 = vmatpush1.msra.mxu0 0.0
      %2613 = vmatprep.subr.mxu0 0.0
      %2614 = vmatpush1.msra.mxu0 0.0
      %2615 = vmatprep.subr.mxu0 0.0
      %2616 = vmatpush1.msra.mxu0 0.0
      %2617 = vmatprep.subr.mxu0 0.0
      %2618 = vmatpush1.msra.mxu0 0.0
      %2619 = vmatprep.subr.mxu0 0.0
      %2620 = vmatpush1.msra.mxu0 0.0
      %2621 = vmatprep.subr.mxu0 0.0
      %2622 = vmatpush1.msra.mxu0 0.0
      %2623 = vmatprep.subr.mxu0 0.0
      %2624 = vmatpush1.msra.mxu0 0.0
      %2625 = vmatprep.subr.mxu0 0.0
      %2626 = vmatpush1.msra.mxu0 0.0
      %2627 = vmatprep.subr.mxu0 0.0
      %2628 = vmatpush1.msra.mxu0 0.0
      %2629 = vmatprep.subr.mxu0 0.0
      %2630 = vmatpush1.msra.mxu0 0.0
      %2631 = vmatprep.subr.mxu0 0.0
      %2632 = vmatpush1.msra.mxu0 0.0
      %2633 = vmatprep.subr.mxu0 0.0
      %2634 = vmatpush1.msra.mxu0 0.0
      %2635 = vmatprep.subr.mxu0 0.0
      %2636 = vmatpush1.msra.mxu0 0.0
      %2637 = vmatprep.subr.mxu0 0.0
      %2638 = vmatpush1.msra.mxu0 0.0
      %2639 = vmatprep.subr.mxu0 0.0
      %2640 = vmatpush1.msra.mxu0 0.0
      %2641 = vmatprep.subr.mxu0 0.0
      %2642 = vmatpush1.msra.mxu0 0.0
      %2643 = vmatprep.subr.mxu0 0.0
      %2644 = vmatpush1.msra.mxu0 0.0
      %2645 = vmatprep.subr.mxu0 0.0
      %2646 = vmatpush1.msra.mxu0 0.0
      %2647 = vmatprep.subr.mxu0 0.0
      %2648 = vmatpush1.msra.mxu0 0.0
      %2649 = vmatprep.subr.mxu0 0.0
      %2650 = vmatpush1.msra.mxu0 0.0
      %2651 = vmatprep.subr.mxu0 0.0
      %2652 = vmatpush1.msra.mxu0 0.0
      %2653 = vmatprep.subr.mxu0 0.0
      %2654 = vmatpush1.msra.mxu0 0.0
      %2655 = vmatprep.subr.mxu0 0.0
      %2656 = vmatpush1.msra.mxu0 0.0
      %2657 = vmatprep.subr.mxu0 0.0
      %2658 = vmatpush1.msra.mxu0 0.0
      %2659 = vmatprep.subr.mxu0 0.0
      %2660 = vmatpush1.msra.mxu0 0.0
      %2661 = vmatprep.subr.mxu0 0.0
      %2662 = vmatpush1.msra.mxu0 0.0
      %2663 = vmatprep.subr.mxu0 0.0
      %2664 = vmatpush1.msra.mxu0 0.0
      %2665 = vmatprep.subr.mxu0 0.0
      %2666 = vmatpush1.msra.mxu0 0.0
      %2667 = vmatprep.mubr.f32.mxu0 0.0
      %2668 = vmatmul.mubr.f32.gmra.mrb[0].mxu0 %v2459
      %v2669 = vpop.f32.mrb[0].mxu0
      %v2670 = vadd.f32 0.0, %v2669
      %v2671 = vpop.f32.mrb[0].mxu0
      %v2672 = vadd.f32 0.0, %v2671
      %2673 = vdwg.mxu0
      %2674 = vmatprep.subr.mxu0 %v890
      %2675 = vmatpush1.msra.mxu0 %v887
      %2676 = vmatprep.subr.mxu0 0.0
      %2677 = vmatpush1.msra.mxu0 0.0
      %2678 = vmatprep.subr.mxu0 0.0
      %2679 = vmatpush1.msra.mxu0 0.0
      %2680 = vmatprep.subr.mxu0 0.0
      %2681 = vmatpush1.msra.mxu0 0.0
      %2682 = vmatprep.subr.mxu0 0.0
      %2683 = vmatpush1.msra.mxu0 0.0
      %2684 = vmatprep.subr.mxu0 0.0
      %2685 = vmatpush1.msra.mxu0 0.0
      %2686 = vmatprep.subr.mxu0 0.0
      %2687 = vmatpush1.msra.mxu0 0.0
      %2688 = vmatprep.subr.mxu0 0.0
      %2689 = vmatpush1.msra.mxu0 0.0
      %2690 = vmatprep.subr.mxu0 0.0
      %2691 = vmatpush1.msra.mxu0 0.0
      %2692 = vmatprep.subr.mxu0 0.0
      %2693 = vmatpush1.msra.mxu0 0.0
      %2694 = vmatprep.subr.mxu0 0.0
      %2695 = vmatpush1.msra.mxu0 0.0
      %2696 = vmatprep.subr.mxu0 0.0
      %2697 = vmatpush1.msra.mxu0 0.0
      %2698 = vmatprep.subr.mxu0 0.0
      %2699 = vmatpush1.msra.mxu0 0.0
      %2700 = vmatprep.subr.mxu0 0.0
      %2701 = vmatpush1.msra.mxu0 0.0
      %2702 = vmatprep.subr.mxu0 0.0
      %2703 = vmatpush1.msra.mxu0 0.0
      %2704 = vmatprep.subr.mxu0 0.0
      %2705 = vmatpush1.msra.mxu0 0.0
      %2706 = vmatprep.subr.mxu0 0.0
      %2707 = vmatpush1.msra.mxu0 0.0
      %2708 = vmatprep.subr.mxu0 0.0
      %2709 = vmatpush1.msra.mxu0 0.0
      %2710 = vmatprep.subr.mxu0 0.0
      %2711 = vmatpush1.msra.mxu0 0.0
      %2712 = vmatprep.subr.mxu0 0.0
      %2713 = vmatpush1.msra.mxu0 0.0
      %2714 = vmatprep.subr.mxu0 0.0
      %2715 = vmatpush1.msra.mxu0 0.0
      %2716 = vmatprep.subr.mxu0 0.0
      %2717 = vmatpush1.msra.mxu0 0.0
      %2718 = vmatprep.subr.mxu0 0.0
      %2719 = vmatpush1.msra.mxu0 0.0
      %2720 = vmatprep.subr.mxu0 0.0
      %2721 = vmatpush1.msra.mxu0 0.0
      %2722 = vmatprep.subr.mxu0 0.0
      %2723 = vmatpush1.msra.mxu0 0.0
      %2724 = vmatprep.subr.mxu0 0.0
      %2725 = vmatpush1.msra.mxu0 0.0
      %2726 = vmatprep.subr.mxu0 0.0
      %2727 = vmatpush1.msra.mxu0 0.0
      %2728 = vmatprep.subr.mxu0 0.0
      %2729 = vmatpush1.msra.mxu0 0.0
      %2730 = vmatprep.subr.mxu0 0.0
      %2731 = vmatpush1.msra.mxu0 0.0
      %2732 = vmatprep.subr.mxu0 0.0
      %2733 = vmatpush1.msra.mxu0 0.0
      %2734 = vmatprep.subr.mxu0 0.0
      %2735 = vmatpush1.msra.mxu0 0.0
      %2736 = vmatprep.subr.mxu0 0.0
      %2737 = vmatpush1.msra.mxu0 0.0
      %2738 = vmatprep.mubr.f32.mxu0 0.0
      %2739 = vmatmul.mubr.f32.gmra.mrb[0].mxu0 %v2459
      %v2740 = vpop.f32.mrb[0].mxu0
      %v2741 = vadd.f32 0.0, %v2740
      %v2742 = vpop.f32.mrb[0].mxu0
      %v2743 = vadd.f32 0.0, %v2742
      %2744 = vdwg.mxu0
      %2745 = vrot.lane.b32.xlu0 %v2528, 94
      %v2746 = vpop.permute.xlu0 %2745
      %2747 = vrot.lane.b32.xlu0 %v2530, 94
      %v2748 = vpop.permute.xlu0 %2747
      %2749 = vrot.lane.b32.xlu0 %v2599, 94
      %v2750 = vpop.permute.xlu0 %2749
      %2751 = vrot.lane.b32.xlu0 %v2601, 94
      %v2752 = vpop.permute.xlu0 %2751
      %2753 = vrot.lane.b32.xlu0 %v2670, 94
      %v2754 = vpop.permute.xlu0 %2753
      %2755 = vrot.lane.b32.xlu0 %v2672, 94
      %v2756 = vpop.permute.xlu0 %2755
      %2757 = vrot.lane.b32.xlu0 %v2741, 94
      %v2758 = vpop.permute.xlu0 %2757
      %2759 = vrot.lane.b32.xlu0 %v2743, 94
      %v2760 = vpop.permute.xlu0 %2759
      %vm2761 = vcmp.lt.s32.totalorder %v1193, 94
      %v2762 = vsel %vm2761, %v2758, %v2760
      %v2763 = vsel %vm2761, %v2756, %v2758
      %v2764 = vsel %vm2761, %v2754, %v2756
      %v2765 = vsel %vm2761, %v2752, %v2754
      %v2766 = vsel %vm2761, %v2750, %v2752
      %v2767 = vsel %vm2761, %v2748, %v2750
      %v2768 = vsel %vm2761, %v2746, %v2748
      %v2769 = vsel %vm2761, %v2760, %v2746
      %v2770 = vadd.f32 %v2448, %v2768
      %v2771 = vadd.f32 %v2449, %v2767
      %v2772 = vadd.f32 %v2450, %v2766
      %v2773 = vadd.f32 %v2451, %v2765
      %v2774 = vadd.f32 %v2452, %v2764
      %v2775 = vadd.f32 %v2453, %v2763
      %v2776 = vadd.f32 %v2454, %v2762
      %v2777 = vadd.f32 %v2455, %v2769
      %s2778 = scalar_lea.vmem %s7, 24
      %v2779 = vld [vmem:[%s2778] sm:$0xf]
      %v2781 = vsel %vm863, %v2779, 0
      %2783 = vmatprep.subr.mxu0 %v872
      %2784 = vmatpush1.msra.mxu0 %v869
      %2785 = vmatprep.subr.mxu0 0.0
      %2786 = vmatpush1.msra.mxu0 0.0
      %2787 = vmatprep.subr.mxu0 0.0
      %2788 = vmatpush1.msra.mxu0 0.0
      %2789 = vmatprep.subr.mxu0 0.0
      %2790 = vmatpush1.msra.mxu0 0.0
      %2791 = vmatprep.subr.mxu0 0.0
      %2792 = vmatpush1.msra.mxu0 0.0
      %2793 = vmatprep.subr.mxu0 0.0
      %2794 = vmatpush1.msra.mxu0 0.0
      %2795 = vmatprep.subr.mxu0 0.0
      %2796 = vmatpush1.msra.mxu0 0.0
      %2797 = vmatprep.subr.mxu0 0.0
      %2798 = vmatpush1.msra.mxu0 0.0
      %2799 = vmatprep.subr.mxu0 0.0
      %2800 = vmatpush1.msra.mxu0 0.0
      %2801 = vmatprep.subr.mxu0 0.0
      %2802 = vmatpush1.msra.mxu0 0.0
      %2803 = vmatprep.subr.mxu0 0.0
      %2804 = vmatpush1.msra.mxu0 0.0
      %2805 = vmatprep.subr.mxu0 0.0
      %2806 = vmatpush1.msra.mxu0 0.0
      %2807 = vmatprep.subr.mxu0 0.0
      %2808 = vmatpush1.msra.mxu0 0.0
      %2809 = vmatprep.subr.mxu0 0.0
      %2810 = vmatpush1.msra.mxu0 0.0
      %2811 = vmatprep.subr.mxu0 0.0
      %2812 = vmatpush1.msra.mxu0 0.0
      %2813 = vmatprep.subr.mxu0 0.0
      %2814 = vmatpush1.msra.mxu0 0.0
      %2815 = vmatprep.subr.mxu0 0.0
      %2816 = vmatpush1.msra.mxu0 0.0
      %2817 = vmatprep.subr.mxu0 0.0
      %2818 = vmatpush1.msra.mxu0 0.0
      %2819 = vmatprep.subr.mxu0 0.0
      %2820 = vmatpush1.msra.mxu0 0.0
      %2821 = vmatprep.subr.mxu0 0.0
      %2822 = vmatpush1.msra.mxu0 0.0
      %2823 = vmatprep.subr.mxu0 0.0
      %2824 = vmatpush1.msra.mxu0 0.0
      %2825 = vmatprep.subr.mxu0 0.0
      %2826 = vmatpush1.msra.mxu0 0.0
      %2827 = vmatprep.subr.mxu0 0.0
      %2828 = vmatpush1.msra.mxu0 0.0
      %2829 = vmatprep.subr.mxu0 0.0
      %2830 = vmatpush1.msra.mxu0 0.0
      %2831 = vmatprep.subr.mxu0 0.0
      %2832 = vmatpush1.msra.mxu0 0.0
      %2833 = vmatprep.subr.mxu0 0.0
      %2834 = vmatpush1.msra.mxu0 0.0
      %2835 = vmatprep.subr.mxu0 0.0
      %2836 = vmatpush1.msra.mxu0 0.0
      %2837 = vmatprep.subr.mxu0 0.0
      %2838 = vmatpush1.msra.mxu0 0.0
      %2839 = vmatprep.subr.mxu0 0.0
      %2840 = vmatpush1.msra.mxu0 0.0
      %2841 = vmatprep.subr.mxu0 0.0
      %2842 = vmatpush1.msra.mxu0 0.0
      %2843 = vmatprep.subr.mxu0 0.0
      %2844 = vmatpush1.msra.mxu0 0.0
      %2845 = vmatprep.subr.mxu0 0.0
      %2846 = vmatpush1.msra.mxu0 0.0
      %2847 = vmatprep.mubr.f32.mxu0 0.0
      %2848 = vmatmul.mubr.f32.gmra.mrb[0].mxu0 %v2781
      %v2849 = vpop.f32.mrb[0].mxu0
      %v2850 = vadd.f32 0.0, %v2849
      %v2851 = vpop.f32.mrb[0].mxu0
      %v2852 = vadd.f32 0.0, %v2851
      %2853 = vdwg.mxu0
      %2854 = vmatprep.subr.mxu0 %v878
      %2855 = vmatpush1.msra.mxu0 %v875
      %2856 = vmatprep.subr.mxu0 0.0
      %2857 = vmatpush1.msra.mxu0 0.0
      %2858 = vmatprep.subr.mxu0 0.0
      %2859 = vmatpush1.msra.mxu0 0.0
      %2860 = vmatprep.subr.mxu0 0.0
      %2861 = vmatpush1.msra.mxu0 0.0
      %2862 = vmatprep.subr.mxu0 0.0
      %2863 = vmatpush1.msra.mxu0 0.0
      %2864 = vmatprep.subr.mxu0 0.0
      %2865 = vmatpush1.msra.mxu0 0.0
      %2866 = vmatprep.subr.mxu0 0.0
      %2867 = vmatpush1.msra.mxu0 0.0
      %2868 = vmatprep.subr.mxu0 0.0
      %2869 = vmatpush1.msra.mxu0 0.0
      %2870 = vmatprep.subr.mxu0 0.0
      %2871 = vmatpush1.msra.mxu0 0.0
      %2872 = vmatprep.subr.mxu0 0.0
      %2873 = vmatpush1.msra.mxu0 0.0
      %2874 = vmatprep.subr.mxu0 0.0
      %2875 = vmatpush1.msra.mxu0 0.0
      %2876 = vmatprep.subr.mxu0 0.0
      %2877 = vmatpush1.msra.mxu0 0.0
      %2878 = vmatprep.subr.mxu0 0.0
      %2879 = vmatpush1.msra.mxu0 0.0
      %2880 = vmatprep.subr.mxu0 0.0
      %2881 = vmatpush1.msra.mxu0 0.0
      %2882 = vmatprep.subr.mxu0 0.0
      %2883 = vmatpush1.msra.mxu0 0.0
      %2884 = vmatprep.subr.mxu0 0.0
      %2885 = vmatpush1.msra.mxu0 0.0
      %2886 = vmatprep.subr.mxu0 0.0
      %2887 = vmatpush1.msra.mxu0 0.0
      %2888 = vmatprep.subr.mxu0 0.0
      %2889 = vmatpush1.msra.mxu0 0.0
      %2890 = vmatprep.subr.mxu0 0.0
      %2891 = vmatpush1.msra.mxu0 0.0
      %2892 = vmatprep.subr.mxu0 0.0
      %2893 = vmatpush1.msra.mxu0 0.0
      %2894 = vmatprep.subr.mxu0 0.0
      %2895 = vmatpush1.msra.mxu0 0.0
      %2896 = vmatprep.subr.mxu0 0.0
      %2897 = vmatpush1.msra.mxu0 0.0
      %2898 = vmatprep.subr.mxu0 0.0
      %2899 = vmatpush1.msra.mxu0 0.0
      %2900 = vmatprep.subr.mxu0 0.0
      %2901 = vmatpush1.msra.mxu0 0.0
      %2902 = vmatprep.subr.mxu0 0.0
      %2903 = vmatpush1.msra.mxu0 0.0
      %2904 = vmatprep.subr.mxu0 0.0
      %2905 = vmatpush1.msra.mxu0 0.0
      %2906 = vmatprep.subr.mxu0 0.0
      %2907 = vmatpush1.msra.mxu0 0.0
      %2908 = vmatprep.subr.mxu0 0.0
      %2909 = vmatpush1.msra.mxu0 0.0
      %2910 = vmatprep.subr.mxu0 0.0
      %2911 = vmatpush1.msra.mxu0 0.0
      %2912 = vmatprep.subr.mxu0 0.0
      %2913 = vmatpush1.msra.mxu0 0.0
      %2914 = vmatprep.subr.mxu0 0.0
      %2915 = vmatpush1.msra.mxu0 0.0
      %2916 = vmatprep.subr.mxu0 0.0
      %2917 = vmatpush1.msra.mxu0 0.0
      %2918 = vmatprep.mubr.f32.mxu0 0.0
      %2919 = vmatmul.mubr.f32.gmra.mrb[0].mxu0 %v2781
      %v2920 = vpop.f32.mrb[0].mxu0
      %v2921 = vadd.f32 0.0, %v2920
      %v2922 = vpop.f32.mrb[0].mxu0
      %v2923 = vadd.f32 0.0, %v2922
      %2924 = vdwg.mxu0
      %2925 = vmatprep.subr.mxu0 %v884
      %2926 = vmatpush1.msra.mxu0 %v881
      %2927 = vmatprep.subr.mxu0 0.0
      %2928 = vmatpush1.msra.mxu0 0.0
      %2929 = vmatprep.subr.mxu0 0.0
      %2930 = vmatpush1.msra.mxu0 0.0
      %2931 = vmatprep.subr.mxu0 0.0
      %2932 = vmatpush1.msra.mxu0 0.0
      %2933 = vmatprep.subr.mxu0 0.0
      %2934 = vmatpush1.msra.mxu0 0.0
      %2935 = vmatprep.subr.mxu0 0.0
      %2936 = vmatpush1.msra.mxu0 0.0
      %2937 = vmatprep.subr.mxu0 0.0
      %2938 = vmatpush1.msra.mxu0 0.0
      %2939 = vmatprep.subr.mxu0 0.0
      %2940 = vmatpush1.msra.mxu0 0.0
      %2941 = vmatprep.subr.mxu0 0.0
      %2942 = vmatpush1.msra.mxu0 0.0
      %2943 = vmatprep.subr.mxu0 0.0
      %2944 = vmatpush1.msra.mxu0 0.0
      %2945 = vmatprep.subr.mxu0 0.0
      %2946 = vmatpush1.msra.mxu0 0.0
      %2947 = vmatprep.subr.mxu0 0.0
      %2948 = vmatpush1.msra.mxu0 0.0
      %2949 = vmatprep.subr.mxu0 0.0
      %2950 = vmatpush1.msra.mxu0 0.0
      %2951 = vmatprep.subr.mxu0 0.0
      %2952 = vmatpush1.msra.mxu0 0.0
      %2953 = vmatprep.subr.mxu0 0.0
      %2954 = vmatpush1.msra.mxu0 0.0
      %2955 = vmatprep.subr.mxu0 0.0
      %2956 = vmatpush1.msra.mxu0 0.0
      %2957 = vmatprep.subr.mxu0 0.0
      %2958 = vmatpush1.msra.mxu0 0.0
      %2959 = vmatprep.subr.mxu0 0.0
      %2960 = vmatpush1.msra.mxu0 0.0
      %2961 = vmatprep.subr.mxu0 0.0
      %2962 = vmatpush1.msra.mxu0 0.0
      %2963 = vmatprep.subr.mxu0 0.0
      %2964 = vmatpush1.msra.mxu0 0.0
      %2965 = vmatprep.subr.mxu0 0.0
      %2966 = vmatpush1.msra.mxu0 0.0
      %2967 = vmatprep.subr.mxu0 0.0
      %2968 = vmatpush1.msra.mxu0 0.0
      %2969 = vmatprep.subr.mxu0 0.0
      %2970 = vmatpush1.msra.mxu0 0.0
      %2971 = vmatprep.subr.mxu0 0.0
      %2972 = vmatpush1.msra.mxu0 0.0
      %2973 = vmatprep.subr.mxu0 0.0
      %2974 = vmatpush1.msra.mxu0 0.0
      %2975 = vmatprep.subr.mxu0 0.0
      %2976 = vmatpush1.msra.mxu0 0.0
      %2977 = vmatprep.subr.mxu0 0.0
      %2978 = vmatpush1.msra.mxu0 0.0
      %2979 = vmatprep.subr.mxu0 0.0
      %2980 = vmatpush1.msra.mxu0 0.0
      %2981 = vmatprep.subr.mxu0 0.0
      %2982 = vmatpush1.msra.mxu0 0.0
      %2983 = vmatprep.subr.mxu0 0.0
      %2984 = vmatpush1.msra.mxu0 0.0
      %2985 = vmatprep.subr.mxu0 0.0
      %2986 = vmatpush1.msra.mxu0 0.0
      %2987 = vmatprep.subr.mxu0 0.0
      %2988 = vmatpush1.msra.mxu0 0.0
      %2989 = vmatprep.mubr.f32.mxu0 0.0
      %2990 = vmatmul.mubr.f32.gmra.mrb[0].mxu0 %v2781
      %v2991 = vpop.f32.mrb[0].mxu0
      %v2992 = vadd.f32 0.0, %v2991
      %v2993 = vpop.f32.mrb[0].mxu0
      %v2994 = vadd.f32 0.0, %v2993
      %2995 = vdwg.mxu0
      %2996 = vmatprep.subr.mxu0 %v890
      %2997 = vmatpush1.msra.mxu0 %v887
      %2998 = vmatprep.subr.mxu0 0.0
      %2999 = vmatpush1.msra.mxu0 0.0
      %3000 = vmatprep.subr.mxu0 0.0
      %3001 = vmatpush1.msra.mxu0 0.0
      %3002 = vmatprep.subr.mxu0 0.0
      %3003 = vmatpush1.msra.mxu0 0.0
      %3004 = vmatprep.subr.mxu0 0.0
      %3005 = vmatpush1.msra.mxu0 0.0
      %3006 = vmatprep.subr.mxu0 0.0
      %3007 = vmatpush1.msra.mxu0 0.0
      %3008 = vmatprep.subr.mxu0 0.0
      %3009 = vmatpush1.msra.mxu0 0.0
      %3010 = vmatprep.subr.mxu0 0.0
      %3011 = vmatpush1.msra.mxu0 0.0
      %3012 = vmatprep.subr.mxu0 0.0
      %3013 = vmatpush1.msra.mxu0 0.0
      %3014 = vmatprep.subr.mxu0 0.0
      %3015 = vmatpush1.msra.mxu0 0.0
      %3016 = vmatprep.subr.mxu0 0.0
      %3017 = vmatpush1.msra.mxu0 0.0
      %3018 = vmatprep.subr.mxu0 0.0
      %3019 = vmatpush1.msra.mxu0 0.0
      %3020 = vmatprep.subr.mxu0 0.0
      %3021 = vmatpush1.msra.mxu0 0.0
      %3022 = vmatprep.subr.mxu0 0.0
      %3023 = vmatpush1.msra.mxu0 0.0
      %3024 = vmatprep.subr.mxu0 0.0
      %3025 = vmatpush1.msra.mxu0 0.0
      %3026 = vmatprep.subr.mxu0 0.0
      %3027 = vmatpush1.msra.mxu0 0.0
      %3028 = vmatprep.subr.mxu0 0.0
      %3029 = vmatpush1.msra.mxu0 0.0
      %3030 = vmatprep.subr.mxu0 0.0
      %3031 = vmatpush1.msra.mxu0 0.0
      %3032 = vmatprep.subr.mxu0 0.0
      %3033 = vmatpush1.msra.mxu0 0.0
      %3034 = vmatprep.subr.mxu0 0.0
      %3035 = vmatpush1.msra.mxu0 0.0
      %3036 = vmatprep.subr.mxu0 0.0
      %3037 = vmatpush1.msra.mxu0 0.0
      %3038 = vmatprep.subr.mxu0 0.0
      %3039 = vmatpush1.msra.mxu0 0.0
      %3040 = vmatprep.subr.mxu0 0.0
      %3041 = vmatpush1.msra.mxu0 0.0
      %3042 = vmatprep.subr.mxu0 0.0
      %3043 = vmatpush1.msra.mxu0 0.0
      %3044 = vmatprep.subr.mxu0 0.0
      %3045 = vmatpush1.msra.mxu0 0.0
      %3046 = vmatprep.subr.mxu0 0.0
      %3047 = vmatpush1.msra.mxu0 0.0
      %3048 = vmatprep.subr.mxu0 0.0
      %3049 = vmatpush1.msra.mxu0 0.0
      %3050 = vmatprep.subr.mxu0 0.0
      %3051 = vmatpush1.msra.mxu0 0.0
      %3052 = vmatprep.subr.mxu0 0.0
      %3053 = vmatpush1.msra.mxu0 0.0
      %3054 = vmatprep.subr.mxu0 0.0
      %3055 = vmatpush1.msra.mxu0 0.0
      %3056 = vmatprep.subr.mxu0 0.0
      %3057 = vmatpush1.msra.mxu0 0.0
      %3058 = vmatprep.subr.mxu0 0.0
      %3059 = vmatpush1.msra.mxu0 0.0
      %3060 = vmatprep.mubr.f32.mxu0 0.0
      %3061 = vmatmul.mubr.f32.gmra.mrb[0].mxu0 %v2781
      %v3062 = vpop.f32.mrb[0].mxu0
      %v3063 = vadd.f32 0.0, %v3062
      %v3064 = vpop.f32.mrb[0].mxu0
      %v3065 = vadd.f32 0.0, %v3064
      %3066 = vdwg.mxu0
      %3067 = vrot.lane.b32.xlu0 %v2850, 64
      %v3068 = vpop.permute.xlu0 %3067
      %3069 = vrot.lane.b32.xlu0 %v2852, 64
      %v3070 = vpop.permute.xlu0 %3069
      %3071 = vrot.lane.b32.xlu0 %v2921, 64
      %v3072 = vpop.permute.xlu0 %3071
      %3073 = vrot.lane.b32.xlu0 %v2923, 64
      %v3074 = vpop.permute.xlu0 %3073
      %3075 = vrot.lane.b32.xlu0 %v2992, 64
      %v3076 = vpop.permute.xlu0 %3075
      %3077 = vrot.lane.b32.xlu0 %v2994, 64
      %v3078 = vpop.permute.xlu0 %3077
      %3079 = vrot.lane.b32.xlu0 %v3063, 64
      %v3080 = vpop.permute.xlu0 %3079
      %3081 = vrot.lane.b32.xlu0 %v3065, 64
      %v3082 = vpop.permute.xlu0 %3081
      %vm3083 = vcmp.lt.s32.totalorder %v1193, 64
      %v3084 = vsel %vm3083, %v3080, %v3082
      %v3085 = vsel %vm3083, %v3078, %v3080
      %v3086 = vsel %vm3083, %v3076, %v3078
      %v3087 = vsel %vm3083, %v3074, %v3076
      %v3088 = vsel %vm3083, %v3072, %v3074
      %v3089 = vsel %vm3083, %v3070, %v3072
      %v3090 = vsel %vm3083, %v3068, %v3070
      %v3091 = vsel %vm3083, %v3082, %v3068
      %v3092 = vadd.f32 %v2770, %v3090
      %v3093 = vadd.f32 %v2771, %v3089
      %v3094 = vadd.f32 %v2772, %v3088
      %v3095 = vadd.f32 %v2773, %v3087
      %v3096 = vadd.f32 %v2774, %v3086
      %v3097 = vadd.f32 %v2775, %v3085
      %v3098 = vadd.f32 %v2776, %v3084
      %v3099 = vadd.f32 %v2777, %v3091
      %s3100 = scalar_lea.vmem %s7, 28
      %v3101 = vld [vmem:[%s3100] sm:$0xf]
      %v3103 = vsel %vm863, %v3101, 0
      %3105 = vmatprep.subr.mxu0 %v872
      %3106 = vmatpush1.msra.mxu0 %v869
      %3107 = vmatprep.subr.mxu0 0.0
      %3108 = vmatpush1.msra.mxu0 0.0
      %3109 = vmatprep.subr.mxu0 0.0
      %3110 = vmatpush1.msra.mxu0 0.0
      %3111 = vmatprep.subr.mxu0 0.0
      %3112 = vmatpush1.msra.mxu0 0.0
      %3113 = vmatprep.subr.mxu0 0.0
      %3114 = vmatpush1.msra.mxu0 0.0
      %3115 = vmatprep.subr.mxu0 0.0
      %3116 = vmatpush1.msra.mxu0 0.0
      %3117 = vmatprep.subr.mxu0 0.0
      %3118 = vmatpush1.msra.mxu0 0.0
      %3119 = vmatprep.subr.mxu0 0.0
      %3120 = vmatpush1.msra.mxu0 0.0
      %3121 = vmatprep.subr.mxu0 0.0
      %3122 = vmatpush1.msra.mxu0 0.0
      %3123 = vmatprep.subr.mxu0 0.0
      %3124 = vmatpush1.msra.mxu0 0.0
      %3125 = vmatprep.subr.mxu0 0.0
      %3126 = vmatpush1.msra.mxu0 0.0
      %3127 = vmatprep.subr.mxu0 0.0
      %3128 = vmatpush1.msra.mxu0 0.0
      %3129 = vmatprep.subr.mxu0 0.0
      %3130 = vmatpush1.msra.mxu0 0.0
      %3131 = vmatprep.subr.mxu0 0.0
      %3132 = vmatpush1.msra.mxu0 0.0
      %3133 = vmatprep.subr.mxu0 0.0
      %3134 = vmatpush1.msra.mxu0 0.0
      %3135 = vmatprep.subr.mxu0 0.0
      %3136 = vmatpush1.msra.mxu0 0.0
      %3137 = vmatprep.subr.mxu0 0.0
      %3138 = vmatpush1.msra.mxu0 0.0
      %3139 = vmatprep.subr.mxu0 0.0
      %3140 = vmatpush1.msra.mxu0 0.0
      %3141 = vmatprep.subr.mxu0 0.0
      %3142 = vmatpush1.msra.mxu0 0.0
      %3143 = vmatprep.subr.mxu0 0.0
      %3144 = vmatpush1.msra.mxu0 0.0
      %3145 = vmatprep.subr.mxu0 0.0
      %3146 = vmatpush1.msra.mxu0 0.0
      %3147 = vmatprep.subr.mxu0 0.0
      %3148 = vmatpush1.msra.mxu0 0.0
      %3149 = vmatprep.subr.mxu0 0.0
      %3150 = vmatpush1.msra.mxu0 0.0
      %3151 = vmatprep.subr.mxu0 0.0
      %3152 = vmatpush1.msra.mxu0 0.0
      %3153 = vmatprep.subr.mxu0 0.0
      %3154 = vmatpush1.msra.mxu0 0.0
      %3155 = vmatprep.subr.mxu0 0.0
      %3156 = vmatpush1.msra.mxu0 0.0
      %3157 = vmatprep.subr.mxu0 0.0
      %3158 = vmatpush1.msra.mxu0 0.0
      %3159 = vmatprep.subr.mxu0 0.0
      %3160 = vmatpush1.msra.mxu0 0.0
      %3161 = vmatprep.subr.mxu0 0.0
      %3162 = vmatpush1.msra.mxu0 0.0
      %3163 = vmatprep.subr.mxu0 0.0
      %3164 = vmatpush1.msra.mxu0 0.0
      %3165 = vmatprep.subr.mxu0 0.0
      %3166 = vmatpush1.msra.mxu0 0.0
      %3167 = vmatprep.subr.mxu0 0.0
      %3168 = vmatpush1.msra.mxu0 0.0
      %3169 = vmatprep.mubr.f32.mxu0 0.0
      %3170 = vmatmul.mubr.f32.gmra.mrb[0].mxu0 %v3103
      %v3171 = vpop.f32.mrb[0].mxu0
      %v3172 = vadd.f32 0.0, %v3171
      %v3173 = vpop.f32.mrb[0].mxu0
      %v3174 = vadd.f32 0.0, %v3173
      %3175 = vdwg.mxu0
      %3176 = vmatprep.subr.mxu0 %v878
      %3177 = vmatpush1.msra.mxu0 %v875
      %3178 = vmatprep.subr.mxu0 0.0
      %3179 = vmatpush1.msra.mxu0 0.0
      %3180 = vmatprep.subr.mxu0 0.0
      %3181 = vmatpush1.msra.mxu0 0.0
      %3182 = vmatprep.subr.mxu0 0.0
      %3183 = vmatpush1.msra.mxu0 0.0
      %3184 = vmatprep.subr.mxu0 0.0
      %3185 = vmatpush1.msra.mxu0 0.0
      %3186 = vmatprep.subr.mxu0 0.0
      %3187 = vmatpush1.msra.mxu0 0.0
      %3188 = vmatprep.subr.mxu0 0.0
      %3189 = vmatpush1.msra.mxu0 0.0
      %3190 = vmatprep.subr.mxu0 0.0
      %3191 = vmatpush1.msra.mxu0 0.0
      %3192 = vmatprep.subr.mxu0 0.0
      %3193 = vmatpush1.msra.mxu0 0.0
      %3194 = vmatprep.subr.mxu0 0.0
      %3195 = vmatpush1.msra.mxu0 0.0
      %3196 = vmatprep.subr.mxu0 0.0
      %3197 = vmatpush1.msra.mxu0 0.0
      %3198 = vmatprep.subr.mxu0 0.0
      %3199 = vmatpush1.msra.mxu0 0.0
      %3200 = vmatprep.subr.mxu0 0.0
      %3201 = vmatpush1.msra.mxu0 0.0
      %3202 = vmatprep.subr.mxu0 0.0
      %3203 = vmatpush1.msra.mxu0 0.0
      %3204 = vmatprep.subr.mxu0 0.0
      %3205 = vmatpush1.msra.mxu0 0.0
      %3206 = vmatprep.subr.mxu0 0.0
      %3207 = vmatpush1.msra.mxu0 0.0
      %3208 = vmatprep.subr.mxu0 0.0
      %3209 = vmatpush1.msra.mxu0 0.0
      %3210 = vmatprep.subr.mxu0 0.0
      %3211 = vmatpush1.msra.mxu0 0.0
      %3212 = vmatprep.subr.mxu0 0.0
      %3213 = vmatpush1.msra.mxu0 0.0
      %3214 = vmatprep.subr.mxu0 0.0
      %3215 = vmatpush1.msra.mxu0 0.0
      %3216 = vmatprep.subr.mxu0 0.0
      %3217 = vmatpush1.msra.mxu0 0.0
      %3218 = vmatprep.subr.mxu0 0.0
      %3219 = vmatpush1.msra.mxu0 0.0
      %3220 = vmatprep.subr.mxu0 0.0
      %3221 = vmatpush1.msra.mxu0 0.0
      %3222 = vmatprep.subr.mxu0 0.0
      %3223 = vmatpush1.msra.mxu0 0.0
      %3224 = vmatprep.subr.mxu0 0.0
      %3225 = vmatpush1.msra.mxu0 0.0
      %3226 = vmatprep.subr.mxu0 0.0
      %3227 = vmatpush1.msra.mxu0 0.0
      %3228 = vmatprep.subr.mxu0 0.0
      %3229 = vmatpush1.msra.mxu0 0.0
      %3230 = vmatprep.subr.mxu0 0.0
      %3231 = vmatpush1.msra.mxu0 0.0
      %3232 = vmatprep.subr.mxu0 0.0
      %3233 = vmatpush1.msra.mxu0 0.0
      %3234 = vmatprep.subr.mxu0 0.0
      %3235 = vmatpush1.msra.mxu0 0.0
      %3236 = vmatprep.subr.mxu0 0.0
      %3237 = vmatpush1.msra.mxu0 0.0
      %3238 = vmatprep.subr.mxu0 0.0
      %3239 = vmatpush1.msra.mxu0 0.0
      %3240 = vmatprep.mubr.f32.mxu0 0.0
      %3241 = vmatmul.mubr.f32.gmra.mrb[0].mxu0 %v3103
      %v3242 = vpop.f32.mrb[0].mxu0
      %v3243 = vadd.f32 0.0, %v3242
      %v3244 = vpop.f32.mrb[0].mxu0
      %v3245 = vadd.f32 0.0, %v3244
      %3246 = vdwg.mxu0
      %3247 = vmatprep.subr.mxu0 %v884
      %3248 = vmatpush1.msra.mxu0 %v881
      %3249 = vmatprep.subr.mxu0 0.0
      %3250 = vmatpush1.msra.mxu0 0.0
      %3251 = vmatprep.subr.mxu0 0.0
      %3252 = vmatpush1.msra.mxu0 0.0
      %3253 = vmatprep.subr.mxu0 0.0
      %3254 = vmatpush1.msra.mxu0 0.0
      %3255 = vmatprep.subr.mxu0 0.0
      %3256 = vmatpush1.msra.mxu0 0.0
      %3257 = vmatprep.subr.mxu0 0.0
      %3258 = vmatpush1.msra.mxu0 0.0
      %3259 = vmatprep.subr.mxu0 0.0
      %3260 = vmatpush1.msra.mxu0 0.0
      %3261 = vmatprep.subr.mxu0 0.0
      %3262 = vmatpush1.msra.mxu0 0.0
      %3263 = vmatprep.subr.mxu0 0.0
      %3264 = vmatpush1.msra.mxu0 0.0
      %3265 = vmatprep.subr.mxu0 0.0
      %3266 = vmatpush1.msra.mxu0 0.0
      %3267 = vmatprep.subr.mxu0 0.0
      %3268 = vmatpush1.msra.mxu0 0.0
      %3269 = vmatprep.subr.mxu0 0.0
      %3270 = vmatpush1.msra.mxu0 0.0
      %3271 = vmatprep.subr.mxu0 0.0
      %3272 = vmatpush1.msra.mxu0 0.0
      %3273 = vmatprep.subr.mxu0 0.0
      %3274 = vmatpush1.msra.mxu0 0.0
      %3275 = vmatprep.subr.mxu0 0.0
      %3276 = vmatpush1.msra.mxu0 0.0
      %3277 = vmatprep.subr.mxu0 0.0
      %3278 = vmatpush1.msra.mxu0 0.0
      %3279 = vmatprep.subr.mxu0 0.0
      %3280 = vmatpush1.msra.mxu0 0.0
      %3281 = vmatprep.subr.mxu0 0.0
      %3282 = vmatpush1.msra.mxu0 0.0
      %3283 = vmatprep.subr.mxu0 0.0
      %3284 = vmatpush1.msra.mxu0 0.0
      %3285 = vmatprep.subr.mxu0 0.0
      %3286 = vmatpush1.msra.mxu0 0.0
      %3287 = vmatprep.subr.mxu0 0.0
      %3288 = vmatpush1.msra.mxu0 0.0
      %3289 = vmatprep.subr.mxu0 0.0
      %3290 = vmatpush1.msra.mxu0 0.0
      %3291 = vmatprep.subr.mxu0 0.0
      %3292 = vmatpush1.msra.mxu0 0.0
      %3293 = vmatprep.subr.mxu0 0.0
      %3294 = vmatpush1.msra.mxu0 0.0
      %3295 = vmatprep.subr.mxu0 0.0
      %3296 = vmatpush1.msra.mxu0 0.0
      %3297 = vmatprep.subr.mxu0 0.0
      %3298 = vmatpush1.msra.mxu0 0.0
      %3299 = vmatprep.subr.mxu0 0.0
      %3300 = vmatpush1.msra.mxu0 0.0
      %3301 = vmatprep.subr.mxu0 0.0
      %3302 = vmatpush1.msra.mxu0 0.0
      %3303 = vmatprep.subr.mxu0 0.0
      %3304 = vmatpush1.msra.mxu0 0.0
      %3305 = vmatprep.subr.mxu0 0.0
      %3306 = vmatpush1.msra.mxu0 0.0
      %3307 = vmatprep.subr.mxu0 0.0
      %3308 = vmatpush1.msra.mxu0 0.0
      %3309 = vmatprep.subr.mxu0 0.0
      %3310 = vmatpush1.msra.mxu0 0.0
      %3311 = vmatprep.mubr.f32.mxu0 0.0
      %3312 = vmatmul.mubr.f32.gmra.mrb[0].mxu0 %v3103
      %v3313 = vpop.f32.mrb[0].mxu0
      %v3314 = vadd.f32 0.0, %v3313
      %v3315 = vpop.f32.mrb[0].mxu0
      %v3316 = vadd.f32 0.0, %v3315
      %3317 = vdwg.mxu0
      %3318 = vmatprep.subr.mxu0 %v890
      %3319 = vmatpush1.msra.mxu0 %v887
      %3320 = vmatprep.subr.mxu0 0.0
      %3321 = vmatpush1.msra.mxu0 0.0
      %3322 = vmatprep.subr.mxu0 0.0
      %3323 = vmatpush1.msra.mxu0 0.0
      %3324 = vmatprep.subr.mxu0 0.0
      %3325 = vmatpush1.msra.mxu0 0.0
      %3326 = vmatprep.subr.mxu0 0.0
      %3327 = vmatpush1.msra.mxu0 0.0
      %3328 = vmatprep.subr.mxu0 0.0
      %3329 = vmatpush1.msra.mxu0 0.0
      %3330 = vmatprep.subr.mxu0 0.0
      %3331 = vmatpush1.msra.mxu0 0.0
      %3332 = vmatprep.subr.mxu0 0.0
      %3333 = vmatpush1.msra.mxu0 0.0
      %3334 = vmatprep.subr.mxu0 0.0
      %3335 = vmatpush1.msra.mxu0 0.0
      %3336 = vmatprep.subr.mxu0 0.0
      %3337 = vmatpush1.msra.mxu0 0.0
      %3338 = vmatprep.subr.mxu0 0.0
      %3339 = vmatpush1.msra.mxu0 0.0
      %3340 = vmatprep.subr.mxu0 0.0
      %3341 = vmatpush1.msra.mxu0 0.0
      %3342 = vmatprep.subr.mxu0 0.0
      %3343 = vmatpush1.msra.mxu0 0.0
      %3344 = vmatprep.subr.mxu0 0.0
      %3345 = vmatpush1.msra.mxu0 0.0
      %3346 = vmatprep.subr.mxu0 0.0
      %3347 = vmatpush1.msra.mxu0 0.0
      %3348 = vmatprep.subr.mxu0 0.0
      %3349 = vmatpush1.msra.mxu0 0.0
      %3350 = vmatprep.subr.mxu0 0.0
      %3351 = vmatpush1.msra.mxu0 0.0
      %3352 = vmatprep.subr.mxu0 0.0
      %3353 = vmatpush1.msra.mxu0 0.0
      %3354 = vmatprep.subr.mxu0 0.0
      %3355 = vmatpush1.msra.mxu0 0.0
      %3356 = vmatprep.subr.mxu0 0.0
      %3357 = vmatpush1.msra.mxu0 0.0
      %3358 = vmatprep.subr.mxu0 0.0
      %3359 = vmatpush1.msra.mxu0 0.0
      %3360 = vmatprep.subr.mxu0 0.0
      %3361 = vmatpush1.msra.mxu0 0.0
      %3362 = vmatprep.subr.mxu0 0.0
      %3363 = vmatpush1.msra.mxu0 0.0
      %3364 = vmatprep.subr.mxu0 0.0
      %3365 = vmatpush1.msra.mxu0 0.0
      %3366 = vmatprep.subr.mxu0 0.0
      %3367 = vmatpush1.msra.mxu0 0.0
      %3368 = vmatprep.subr.mxu0 0.0
      %3369 = vmatpush1.msra.mxu0 0.0
      %3370 = vmatprep.subr.mxu0 0.0
      %3371 = vmatpush1.msra.mxu0 0.0
      %3372 = vmatprep.subr.mxu0 0.0
      %3373 = vmatpush1.msra.mxu0 0.0
      %3374 = vmatprep.subr.mxu0 0.0
      %3375 = vmatpush1.msra.mxu0 0.0
      %3376 = vmatprep.subr.mxu0 0.0
      %3377 = vmatpush1.msra.mxu0 0.0
      %3378 = vmatprep.subr.mxu0 0.0
      %3379 = vmatpush1.msra.mxu0 0.0
      %3380 = vmatprep.subr.mxu0 0.0
      %3381 = vmatpush1.msra.mxu0 0.0
      %3382 = vmatprep.mubr.f32.mxu0 0.0
      %3383 = vmatmul.mubr.f32.gmra.mrb[0].mxu0 %v3103
      %v3384 = vpop.f32.mrb[0].mxu0
      %v3385 = vadd.f32 0.0, %v3384
      %v3386 = vpop.f32.mrb[0].mxu0
      %v3387 = vadd.f32 0.0, %v3386
      %3388 = vdwg.mxu0
      %3389 = vrot.lane.b32.xlu0 %v3172, 63
      %v3390 = vpop.permute.xlu0 %3389
      %3391 = vrot.lane.b32.xlu0 %v3174, 63
      %v3392 = vpop.permute.xlu0 %3391
      %3393 = vrot.lane.b32.xlu0 %v3243, 63
      %v3394 = vpop.permute.xlu0 %3393
      %3395 = vrot.lane.b32.xlu0 %v3245, 63
      %v3396 = vpop.permute.xlu0 %3395
      %3397 = vrot.lane.b32.xlu0 %v3314, 63
      %v3398 = vpop.permute.xlu0 %3397
      %3399 = vrot.lane.b32.xlu0 %v3316, 63
      %v3400 = vpop.permute.xlu0 %3399
      %3401 = vrot.lane.b32.xlu0 %v3385, 63
      %v3402 = vpop.permute.xlu0 %3401
      %3403 = vrot.lane.b32.xlu0 %v3387, 63
      %v3404 = vpop.permute.xlu0 %3403
      %vm3405 = vcmp.lt.s32.totalorder %v1193, 63
      %v3406 = vsel %vm3405, %v3402, %v3404
      %v3407 = vsel %vm3405, %v3400, %v3402
      %v3408 = vsel %vm3405, %v3398, %v3400
      %v3409 = vsel %vm3405, %v3396, %v3398
      %v3410 = vsel %vm3405, %v3394, %v3396
      %v3411 = vsel %vm3405, %v3392, %v3394
      %v3412 = vsel %vm3405, %v3390, %v3392
      %v3413 = vsel %vm3405, %v3404, %v3390
      %v3414 = vadd.f32 %v3092, %v3412
      %v3415 = vadd.f32 %v3093, %v3411
      %v3416 = vadd.f32 %v3094, %v3410
      %v3417 = vadd.f32 %v3095, %v3409
      %v3418 = vadd.f32 %v3096, %v3408
      %v3419 = vadd.f32 %v3097, %v3407
      %v3420 = vadd.f32 %v3098, %v3406
      %v3421 = vadd.f32 %v3099, %v3413
      %s3422 = scalar_lea.vmem %s7, 32
      %v3423 = vld [vmem:[%s3422] sm:$0xf]
      %v3425 = vsel %vm863, %v3423, 0
      %3427 = vmatprep.subr.mxu0 %v872
      %3428 = vmatpush1.msra.mxu0 %v869
      %3429 = vmatprep.subr.mxu0 0.0
      %3430 = vmatpush1.msra.mxu0 0.0
      %3431 = vmatprep.subr.mxu0 0.0
      %3432 = vmatpush1.msra.mxu0 0.0
      %3433 = vmatprep.subr.mxu0 0.0
      %3434 = vmatpush1.msra.mxu0 0.0
      %3435 = vmatprep.subr.mxu0 0.0
      %3436 = vmatpush1.msra.mxu0 0.0
      %3437 = vmatprep.subr.mxu0 0.0
      %3438 = vmatpush1.msra.mxu0 0.0
      %3439 = vmatprep.subr.mxu0 0.0
      %3440 = vmatpush1.msra.mxu0 0.0
      %3441 = vmatprep.subr.mxu0 0.0
      %3442 = vmatpush1.msra.mxu0 0.0
      %3443 = vmatprep.subr.mxu0 0.0
      %3444 = vmatpush1.msra.mxu0 0.0
      %3445 = vmatprep.subr.mxu0 0.0
      %3446 = vmatpush1.msra.mxu0 0.0
      %3447 = vmatprep.subr.mxu0 0.0
      %3448 = vmatpush1.msra.mxu0 0.0
      %3449 = vmatprep.subr.mxu0 0.0
      %3450 = vmatpush1.msra.mxu0 0.0
      %3451 = vmatprep.subr.mxu0 0.0
      %3452 = vmatpush1.msra.mxu0 0.0
      %3453 = vmatprep.subr.mxu0 0.0
      %3454 = vmatpush1.msra.mxu0 0.0
      %3455 = vmatprep.subr.mxu0 0.0
      %3456 = vmatpush1.msra.mxu0 0.0
      %3457 = vmatprep.subr.mxu0 0.0
      %3458 = vmatpush1.msra.mxu0 0.0
      %3459 = vmatprep.subr.mxu0 0.0
      %3460 = vmatpush1.msra.mxu0 0.0
      %3461 = vmatprep.subr.mxu0 0.0
      %3462 = vmatpush1.msra.mxu0 0.0
      %3463 = vmatprep.subr.mxu0 0.0
      %3464 = vmatpush1.msra.mxu0 0.0
      %3465 = vmatprep.subr.mxu0 0.0
      %3466 = vmatpush1.msra.mxu0 0.0
      %3467 = vmatprep.subr.mxu0 0.0
      %3468 = vmatpush1.msra.mxu0 0.0
      %3469 = vmatprep.subr.mxu0 0.0
      %3470 = vmatpush1.msra.mxu0 0.0
      %3471 = vmatprep.subr.mxu0 0.0
      %3472 = vmatpush1.msra.mxu0 0.0
      %3473 = vmatprep.subr.mxu0 0.0
      %3474 = vmatpush1.msra.mxu0 0.0
      %3475 = vmatprep.subr.mxu0 0.0
      %3476 = vmatpush1.msra.mxu0 0.0
      %3477 = vmatprep.subr.mxu0 0.0
      %3478 = vmatpush1.msra.mxu0 0.0
      %3479 = vmatprep.subr.mxu0 0.0
      %3480 = vmatpush1.msra.mxu0 0.0
      %3481 = vmatprep.subr.mxu0 0.0
      %3482 = vmatpush1.msra.mxu0 0.0
      %3483 = vmatprep.subr.mxu0 0.0
      %3484 = vmatpush1.msra.mxu0 0.0
      %3485 = vmatprep.subr.mxu0 0.0
      %3486 = vmatpush1.msra.mxu0 0.0
      %3487 = vmatprep.subr.mxu0 0.0
      %3488 = vmatpush1.msra.mxu0 0.0
      %3489 = vmatprep.subr.mxu0 0.0
      %3490 = vmatpush1.msra.mxu0 0.0
      %3491 = vmatprep.mubr.f32.mxu0 0.0
      %3492 = vmatmul.mubr.f32.gmra.mrb[0].mxu0 %v3425
      %v3493 = vpop.f32.mrb[0].mxu0
      %v3494 = vadd.f32 0.0, %v3493
      %v3495 = vpop.f32.mrb[0].mxu0
      %v3496 = vadd.f32 0.0, %v3495
      %3497 = vdwg.mxu0
      %3498 = vmatprep.subr.mxu0 %v878
      %3499 = vmatpush1.msra.mxu0 %v875
      %3500 = vmatprep.subr.mxu0 0.0
      %3501 = vmatpush1.msra.mxu0 0.0
      %3502 = vmatprep.subr.mxu0 0.0
      %3503 = vmatpush1.msra.mxu0 0.0
      %3504 = vmatprep.subr.mxu0 0.0
      %3505 = vmatpush1.msra.mxu0 0.0
      %3506 = vmatprep.subr.mxu0 0.0
      %3507 = vmatpush1.msra.mxu0 0.0
      %3508 = vmatprep.subr.mxu0 0.0
      %3509 = vmatpush1.msra.mxu0 0.0
      %3510 = vmatprep.subr.mxu0 0.0
      %3511 = vmatpush1.msra.mxu0 0.0
      %3512 = vmatprep.subr.mxu0 0.0
      %3513 = vmatpush1.msra.mxu0 0.0
      %3514 = vmatprep.subr.mxu0 0.0
      %3515 = vmatpush1.msra.mxu0 0.0
      %3516 = vmatprep.subr.mxu0 0.0
      %3517 = vmatpush1.msra.mxu0 0.0
      %3518 = vmatprep.subr.mxu0 0.0
      %3519 = vmatpush1.msra.mxu0 0.0
      %3520 = vmatprep.subr.mxu0 0.0
      %3521 = vmatpush1.msra.mxu0 0.0
      %3522 = vmatprep.subr.mxu0 0.0
      %3523 = vmatpush1.msra.mxu0 0.0
      %3524 = vmatprep.subr.mxu0 0.0
      %3525 = vmatpush1.msra.mxu0 0.0
      %3526 = vmatprep.subr.mxu0 0.0
      %3527 = vmatpush1.msra.mxu0 0.0
      %3528 = vmatprep.subr.mxu0 0.0
      %3529 = vmatpush1.msra.mxu0 0.0
      %3530 = vmatprep.subr.mxu0 0.0
      %3531 = vmatpush1.msra.mxu0 0.0
      %3532 = vmatprep.subr.mxu0 0.0
      %3533 = vmatpush1.msra.mxu0 0.0
      %3534 = vmatprep.subr.mxu0 0.0
      %3535 = vmatpush1.msra.mxu0 0.0
      %3536 = vmatprep.subr.mxu0 0.0
      %3537 = vmatpush1.msra.mxu0 0.0
      %3538 = vmatprep.subr.mxu0 0.0
      %3539 = vmatpush1.msra.mxu0 0.0
      %3540 = vmatprep.subr.mxu0 0.0
      %3541 = vmatpush1.msra.mxu0 0.0
      %3542 = vmatprep.subr.mxu0 0.0
      %3543 = vmatpush1.msra.mxu0 0.0
      %3544 = vmatprep.subr.mxu0 0.0
      %3545 = vmatpush1.msra.mxu0 0.0
      %3546 = vmatprep.subr.mxu0 0.0
      %3547 = vmatpush1.msra.mxu0 0.0
      %3548 = vmatprep.subr.mxu0 0.0
      %3549 = vmatpush1.msra.mxu0 0.0
      %3550 = vmatprep.subr.mxu0 0.0
      %3551 = vmatpush1.msra.mxu0 0.0
      %3552 = vmatprep.subr.mxu0 0.0
      %3553 = vmatpush1.msra.mxu0 0.0
      %3554 = vmatprep.subr.mxu0 0.0
      %3555 = vmatpush1.msra.mxu0 0.0
      %3556 = vmatprep.subr.mxu0 0.0
      %3557 = vmatpush1.msra.mxu0 0.0
      %3558 = vmatprep.subr.mxu0 0.0
      %3559 = vmatpush1.msra.mxu0 0.0
      %3560 = vmatprep.subr.mxu0 0.0
      %3561 = vmatpush1.msra.mxu0 0.0
      %3562 = vmatprep.mubr.f32.mxu0 0.0
      %3563 = vmatmul.mubr.f32.gmra.mrb[0].mxu0 %v3425
      %v3564 = vpop.f32.mrb[0].mxu0
      %v3565 = vadd.f32 0.0, %v3564
      %v3566 = vpop.f32.mrb[0].mxu0
      %v3567 = vadd.f32 0.0, %v3566
      %3568 = vdwg.mxu0
      %3569 = vmatprep.subr.mxu0 %v884
      %3570 = vmatpush1.msra.mxu0 %v881
      %3571 = vmatprep.subr.mxu0 0.0
      %3572 = vmatpush1.msra.mxu0 0.0
      %3573 = vmatprep.subr.mxu0 0.0
      %3574 = vmatpush1.msra.mxu0 0.0
      %3575 = vmatprep.subr.mxu0 0.0
      %3576 = vmatpush1.msra.mxu0 0.0
      %3577 = vmatprep.subr.mxu0 0.0
      %3578 = vmatpush1.msra.mxu0 0.0
      %3579 = vmatprep.subr.mxu0 0.0
      %3580 = vmatpush1.msra.mxu0 0.0
      %3581 = vmatprep.subr.mxu0 0.0
      %3582 = vmatpush1.msra.mxu0 0.0
      %3583 = vmatprep.subr.mxu0 0.0
      %3584 = vmatpush1.msra.mxu0 0.0
      %3585 = vmatprep.subr.mxu0 0.0
      %3586 = vmatpush1.msra.mxu0 0.0
      %3587 = vmatprep.subr.mxu0 0.0
      %3588 = vmatpush1.msra.mxu0 0.0
      %3589 = vmatprep.subr.mxu0 0.0
      %3590 = vmatpush1.msra.mxu0 0.0
      %3591 = vmatprep.subr.mxu0 0.0
      %3592 = vmatpush1.msra.mxu0 0.0
      %3593 = vmatprep.subr.mxu0 0.0
      %3594 = vmatpush1.msra.mxu0 0.0
      %3595 = vmatprep.subr.mxu0 0.0
      %3596 = vmatpush1.msra.mxu0 0.0
      %3597 = vmatprep.subr.mxu0 0.0
      %3598 = vmatpush1.msra.mxu0 0.0
      %3599 = vmatprep.subr.mxu0 0.0
      %3600 = vmatpush1.msra.mxu0 0.0
      %3601 = vmatprep.subr.mxu0 0.0
      %3602 = vmatpush1.msra.mxu0 0.0
      %3603 = vmatprep.subr.mxu0 0.0
      %3604 = vmatpush1.msra.mxu0 0.0
      %3605 = vmatprep.subr.mxu0 0.0
      %3606 = vmatpush1.msra.mxu0 0.0
      %3607 = vmatprep.subr.mxu0 0.0
      %3608 = vmatpush1.msra.mxu0 0.0
      %3609 = vmatprep.subr.mxu0 0.0
      %3610 = vmatpush1.msra.mxu0 0.0
      %3611 = vmatprep.subr.mxu0 0.0
      %3612 = vmatpush1.msra.mxu0 0.0
      %3613 = vmatprep.subr.mxu0 0.0
      %3614 = vmatpush1.msra.mxu0 0.0
      %3615 = vmatprep.subr.mxu0 0.0
      %3616 = vmatpush1.msra.mxu0 0.0
      %3617 = vmatprep.subr.mxu0 0.0
      %3618 = vmatpush1.msra.mxu0 0.0
      %3619 = vmatprep.subr.mxu0 0.0
      %3620 = vmatpush1.msra.mxu0 0.0
      %3621 = vmatprep.subr.mxu0 0.0
      %3622 = vmatpush1.msra.mxu0 0.0
      %3623 = vmatprep.subr.mxu0 0.0
      %3624 = vmatpush1.msra.mxu0 0.0
      %3625 = vmatprep.subr.mxu0 0.0
      %3626 = vmatpush1.msra.mxu0 0.0
      %3627 = vmatprep.subr.mxu0 0.0
      %3628 = vmatpush1.msra.mxu0 0.0
      %3629 = vmatprep.subr.mxu0 0.0
      %3630 = vmatpush1.msra.mxu0 0.0
      %3631 = vmatprep.subr.mxu0 0.0
      %3632 = vmatpush1.msra.mxu0 0.0
      %3633 = vmatprep.mubr.f32.mxu0 0.0
      %3634 = vmatmul.mubr.f32.gmra.mrb[0].mxu0 %v3425
      %v3635 = vpop.f32.mrb[0].mxu0
      %v3636 = vadd.f32 0.0, %v3635
      %v3637 = vpop.f32.mrb[0].mxu0
      %v3638 = vadd.f32 0.0, %v3637
      %3639 = vdwg.mxu0
      %3640 = vmatprep.subr.mxu0 %v890
      %3641 = vmatpush1.msra.mxu0 %v887
      %3642 = vmatprep.subr.mxu0 0.0
      %3643 = vmatpush1.msra.mxu0 0.0
      %3644 = vmatprep.subr.mxu0 0.0
      %3645 = vmatpush1.msra.mxu0 0.0
      %3646 = vmatprep.subr.mxu0 0.0
      %3647 = vmatpush1.msra.mxu0 0.0
      %3648 = vmatprep.subr.mxu0 0.0
      %3649 = vmatpush1.msra.mxu0 0.0
      %3650 = vmatprep.subr.mxu0 0.0
      %3651 = vmatpush1.msra.mxu0 0.0
      %3652 = vmatprep.subr.mxu0 0.0
      %3653 = vmatpush1.msra.mxu0 0.0
      %3654 = vmatprep.subr.mxu0 0.0
      %3655 = vmatpush1.msra.mxu0 0.0
      %3656 = vmatprep.subr.mxu0 0.0
      %3657 = vmatpush1.msra.mxu0 0.0
      %3658 = vmatprep.subr.mxu0 0.0
      %3659 = vmatpush1.msra.mxu0 0.0
      %3660 = vmatprep.subr.mxu0 0.0
      %3661 = vmatpush1.msra.mxu0 0.0
      %3662 = vmatprep.subr.mxu0 0.0
      %3663 = vmatpush1.msra.mxu0 0.0
      %3664 = vmatprep.subr.mxu0 0.0
      %3665 = vmatpush1.msra.mxu0 0.0
      %3666 = vmatprep.subr.mxu0 0.0
      %3667 = vmatpush1.msra.mxu0 0.0
      %3668 = vmatprep.subr.mxu0 0.0
      %3669 = vmatpush1.msra.mxu0 0.0
      %3670 = vmatprep.subr.mxu0 0.0
      %3671 = vmatpush1.msra.mxu0 0.0
      %3672 = vmatprep.subr.mxu0 0.0
      %3673 = vmatpush1.msra.mxu0 0.0
      %3674 = vmatprep.subr.mxu0 0.0
      %3675 = vmatpush1.msra.mxu0 0.0
      %3676 = vmatprep.subr.mxu0 0.0
      %3677 = vmatpush1.msra.mxu0 0.0
      %3678 = vmatprep.subr.mxu0 0.0
      %3679 = vmatpush1.msra.mxu0 0.0
      %3680 = vmatprep.subr.mxu0 0.0
      %3681 = vmatpush1.msra.mxu0 0.0
      %3682 = vmatprep.subr.mxu0 0.0
      %3683 = vmatpush1.msra.mxu0 0.0
      %3684 = vmatprep.subr.mxu0 0.0
      %3685 = vmatpush1.msra.mxu0 0.0
      %3686 = vmatprep.subr.mxu0 0.0
      %3687 = vmatpush1.msra.mxu0 0.0
      %3688 = vmatprep.subr.mxu0 0.0
      %3689 = vmatpush1.msra.mxu0 0.0
      %3690 = vmatprep.subr.mxu0 0.0
      %3691 = vmatpush1.msra.mxu0 0.0
      %3692 = vmatprep.subr.mxu0 0.0
      %3693 = vmatpush1.msra.mxu0 0.0
      %3694 = vmatprep.subr.mxu0 0.0
      %3695 = vmatpush1.msra.mxu0 0.0
      %3696 = vmatprep.subr.mxu0 0.0
      %3697 = vmatpush1.msra.mxu0 0.0
      %3698 = vmatprep.subr.mxu0 0.0
      %3699 = vmatpush1.msra.mxu0 0.0
      %3700 = vmatprep.subr.mxu0 0.0
      %3701 = vmatpush1.msra.mxu0 0.0
      %3702 = vmatprep.subr.mxu0 0.0
      %3703 = vmatpush1.msra.mxu0 0.0
      %3704 = vmatprep.mubr.f32.mxu0 0.0
      %3705 = vmatmul.mubr.f32.gmra.mrb[0].mxu0 %v3425
      %v3706 = vpop.f32.mrb[0].mxu0
      %v3707 = vadd.f32 0.0, %v3706
      %v3708 = vpop.f32.mrb[0].mxu0
      %v3709 = vadd.f32 0.0, %v3708
      %3710 = vdwg.mxu0
      %3711 = vrot.lane.b32.xlu0 %v3494, 62
      %v3712 = vpop.permute.xlu0 %3711
      %3713 = vrot.lane.b32.xlu0 %v3496, 62
      %v3714 = vpop.permute.xlu0 %3713
      %3715 = vrot.lane.b32.xlu0 %v3565, 62
      %v3716 = vpop.permute.xlu0 %3715
      %3717 = vrot.lane.b32.xlu0 %v3567, 62
      %v3718 = vpop.permute.xlu0 %3717
      %3719 = vrot.lane.b32.xlu0 %v3636, 62
      %v3720 = vpop.permute.xlu0 %3719
      %3721 = vrot.lane.b32.xlu0 %v3638, 62
      %v3722 = vpop.permute.xlu0 %3721
      %3723 = vrot.lane.b32.xlu0 %v3707, 62
      %v3724 = vpop.permute.xlu0 %3723
      %3725 = vrot.lane.b32.xlu0 %v3709, 62
      %v3726 = vpop.permute.xlu0 %3725
      %vm3727 = vcmp.lt.s32.totalorder %v1193, 62
      %v3728 = vsel %vm3727, %v3724, %v3726
      %v3729 = vsel %vm3727, %v3722, %v3724
      %v3730 = vsel %vm3727, %v3720, %v3722
      %v3731 = vsel %vm3727, %v3718, %v3720
      %v3732 = vsel %vm3727, %v3716, %v3718
      %v3733 = vsel %vm3727, %v3714, %v3716
      %v3734 = vsel %vm3727, %v3712, %v3714
      %v3735 = vsel %vm3727, %v3726, %v3712
      %v3736 = vadd.f32 %v3414, %v3734
      %v3737 = vadd.f32 %v3415, %v3733
      %v3738 = vadd.f32 %v3416, %v3732
      %v3739 = vadd.f32 %v3417, %v3731
      %v3740 = vadd.f32 %v3418, %v3730
      %v3741 = vadd.f32 %v3419, %v3729
      %v3742 = vadd.f32 %v3420, %v3728
      %v3743 = vadd.f32 %v3421, %v3735
      %v3744 = vld [vmem:[%s3] sm:$0xf]
      %v3745 = vld [vmem:[%s4] sm:$0xf]
      %3747 = vset.pattern.permute.xlu0 0
      %3748 = vperm.xlu0 %3747, %v3745
      %v3749 = vpop.permute.xlu0 %3748
      %v3752 = vsel %vm863, %v3744, 0
      %3754 = vmatprep.subr.mxu0 %v872
      %3755 = vmatpush1.msra.mxu0 %v869
      %3756 = vmatprep.subr.mxu0 0.0
      %3757 = vmatpush1.msra.mxu0 0.0
      %3758 = vmatprep.subr.mxu0 0.0
      %3759 = vmatpush1.msra.mxu0 0.0
      %3760 = vmatprep.subr.mxu0 0.0
      %3761 = vmatpush1.msra.mxu0 0.0
      %3762 = vmatprep.subr.mxu0 0.0
      %3763 = vmatpush1.msra.mxu0 0.0
      %3764 = vmatprep.subr.mxu0 0.0
      %3765 = vmatpush1.msra.mxu0 0.0
      %3766 = vmatprep.subr.mxu0 0.0
      %3767 = vmatpush1.msra.mxu0 0.0
      %3768 = vmatprep.subr.mxu0 0.0
      %3769 = vmatpush1.msra.mxu0 0.0
      %3770 = vmatprep.subr.mxu0 0.0
      %3771 = vmatpush1.msra.mxu0 0.0
      %3772 = vmatprep.subr.mxu0 0.0
      %3773 = vmatpush1.msra.mxu0 0.0
      %3774 = vmatprep.subr.mxu0 0.0
      %3775 = vmatpush1.msra.mxu0 0.0
      %3776 = vmatprep.subr.mxu0 0.0
      %3777 = vmatpush1.msra.mxu0 0.0
      %3778 = vmatprep.subr.mxu0 0.0
      %3779 = vmatpush1.msra.mxu0 0.0
      %3780 = vmatprep.subr.mxu0 0.0
      %3781 = vmatpush1.msra.mxu0 0.0
      %3782 = vmatprep.subr.mxu0 0.0
      %3783 = vmatpush1.msra.mxu0 0.0
      %3784 = vmatprep.subr.mxu0 0.0
      %3785 = vmatpush1.msra.mxu0 0.0
      %3786 = vmatprep.subr.mxu0 0.0
      %3787 = vmatpush1.msra.mxu0 0.0
      %3788 = vmatprep.subr.mxu0 0.0
      %3789 = vmatpush1.msra.mxu0 0.0
      %3790 = vmatprep.subr.mxu0 0.0
      %3791 = vmatpush1.msra.mxu0 0.0
      %3792 = vmatprep.subr.mxu0 0.0
      %3793 = vmatpush1.msra.mxu0 0.0
      %3794 = vmatprep.subr.mxu0 0.0
      %3795 = vmatpush1.msra.mxu0 0.0
      %3796 = vmatprep.subr.mxu0 0.0
      %3797 = vmatpush1.msra.mxu0 0.0
      %3798 = vmatprep.subr.mxu0 0.0
      %3799 = vmatpush1.msra.mxu0 0.0
      %3800 = vmatprep.subr.mxu0 0.0
      %3801 = vmatpush1.msra.mxu0 0.0
      %3802 = vmatprep.subr.mxu0 0.0
      %3803 = vmatpush1.msra.mxu0 0.0
      %3804 = vmatprep.subr.mxu0 0.0
      %3805 = vmatpush1.msra.mxu0 0.0
      %3806 = vmatprep.subr.mxu0 0.0
      %3807 = vmatpush1.msra.mxu0 0.0
      %3808 = vmatprep.subr.mxu0 0.0
      %3809 = vmatpush1.msra.mxu0 0.0
      %3810 = vmatprep.subr.mxu0 0.0
      %3811 = vmatpush1.msra.mxu0 0.0
      %3812 = vmatprep.subr.mxu0 0.0
      %3813 = vmatpush1.msra.mxu0 0.0
      %3814 = vmatprep.subr.mxu0 0.0
      %3815 = vmatpush1.msra.mxu0 0.0
      %3816 = vmatprep.subr.mxu0 0.0
      %3817 = vmatpush1.msra.mxu0 0.0
      %3818 = vmatprep.mubr.f32.mxu0 0.0
      %3819 = vmatmul.mubr.f32.gmra.mrb[0].mxu0 %v3752
      %v3820 = vpop.f32.mrb[0].mxu0
      %v3821 = vadd.f32 %v3749, %v3820
      %v3822 = vpop.f32.mrb[0].mxu0
      %v3823 = vadd.f32 %v3749, %v3822
      %3824 = vdwg.mxu0
      %3825 = vmatprep.subr.mxu0 %v878
      %3826 = vmatpush1.msra.mxu0 %v875
      %3827 = vmatprep.subr.mxu0 0.0
      %3828 = vmatpush1.msra.mxu0 0.0
      %3829 = vmatprep.subr.mxu0 0.0
      %3830 = vmatpush1.msra.mxu0 0.0
      %3831 = vmatprep.subr.mxu0 0.0
      %3832 = vmatpush1.msra.mxu0 0.0
      %3833 = vmatprep.subr.mxu0 0.0
      %3834 = vmatpush1.msra.mxu0 0.0
      %3835 = vmatprep.subr.mxu0 0.0
      %3836 = vmatpush1.msra.mxu0 0.0
      %3837 = vmatprep.subr.mxu0 0.0
      %3838 = vmatpush1.msra.mxu0 0.0
      %3839 = vmatprep.subr.mxu0 0.0
      %3840 = vmatpush1.msra.mxu0 0.0
      %3841 = vmatprep.subr.mxu0 0.0
      %3842 = vmatpush1.msra.mxu0 0.0
      %3843 = vmatprep.subr.mxu0 0.0
      %3844 = vmatpush1.msra.mxu0 0.0
      %3845 = vmatprep.subr.mxu0 0.0
      %3846 = vmatpush1.msra.mxu0 0.0
      %3847 = vmatprep.subr.mxu0 0.0
      %3848 = vmatpush1.msra.mxu0 0.0
      %3849 = vmatprep.subr.mxu0 0.0
      %3850 = vmatpush1.msra.mxu0 0.0
      %3851 = vmatprep.subr.mxu0 0.0
      %3852 = vmatpush1.msra.mxu0 0.0
      %3853 = vmatprep.subr.mxu0 0.0
      %3854 = vmatpush1.msra.mxu0 0.0
      %3855 = vmatprep.subr.mxu0 0.0
      %3856 = vmatpush1.msra.mxu0 0.0
      %3857 = vmatprep.subr.mxu0 0.0
      %3858 = vmatpush1.msra.mxu0 0.0
      %3859 = vmatprep.subr.mxu0 0.0
      %3860 = vmatpush1.msra.mxu0 0.0
      %3861 = vmatprep.subr.mxu0 0.0
      %3862 = vmatpush1.msra.mxu0 0.0
      %3863 = vmatprep.subr.mxu0 0.0
      %3864 = vmatpush1.msra.mxu0 0.0
      %3865 = vmatprep.subr.mxu0 0.0
      %3866 = vmatpush1.msra.mxu0 0.0
      %3867 = vmatprep.subr.mxu0 0.0
      %3868 = vmatpush1.msra.mxu0 0.0
      %3869 = vmatprep.subr.mxu0 0.0
      %3870 = vmatpush1.msra.mxu0 0.0
      %3871 = vmatprep.subr.mxu0 0.0
      %3872 = vmatpush1.msra.mxu0 0.0
      %3873 = vmatprep.subr.mxu0 0.0
      %3874 = vmatpush1.msra.mxu0 0.0
      %3875 = vmatprep.subr.mxu0 0.0
      %3876 = vmatpush1.msra.mxu0 0.0
      %3877 = vmatprep.subr.mxu0 0.0
      %3878 = vmatpush1.msra.mxu0 0.0
      %3879 = vmatprep.subr.mxu0 0.0
      %3880 = vmatpush1.msra.mxu0 0.0
      %3881 = vmatprep.subr.mxu0 0.0
      %3882 = vmatpush1.msra.mxu0 0.0
      %3883 = vmatprep.subr.mxu0 0.0
      %3884 = vmatpush1.msra.mxu0 0.0
      %3885 = vmatprep.subr.mxu0 0.0
      %3886 = vmatpush1.msra.mxu0 0.0
      %3887 = vmatprep.subr.mxu0 0.0
      %3888 = vmatpush1.msra.mxu0 0.0
      %3889 = vmatprep.mubr.f32.mxu0 0.0
      %3890 = vmatmul.mubr.f32.gmra.mrb[0].mxu0 %v3752
      %v3891 = vpop.f32.mrb[0].mxu0
      %v3892 = vadd.f32 %v3749, %v3891
      %v3893 = vpop.f32.mrb[0].mxu0
      %v3894 = vadd.f32 %v3749, %v3893
      %3895 = vdwg.mxu0
      %3896 = vmatprep.subr.mxu0 %v884
      %3897 = vmatpush1.msra.mxu0 %v881
      %3898 = vmatprep.subr.mxu0 0.0
      %3899 = vmatpush1.msra.mxu0 0.0
      %3900 = vmatprep.subr.mxu0 0.0
      %3901 = vmatpush1.msra.mxu0 0.0
      %3902 = vmatprep.subr.mxu0 0.0
      %3903 = vmatpush1.msra.mxu0 0.0
      %3904 = vmatprep.subr.mxu0 0.0
      %3905 = vmatpush1.msra.mxu0 0.0
      %3906 = vmatprep.subr.mxu0 0.0
      %3907 = vmatpush1.msra.mxu0 0.0
      %3908 = vmatprep.subr.mxu0 0.0
      %3909 = vmatpush1.msra.mxu0 0.0
      %3910 = vmatprep.subr.mxu0 0.0
      %3911 = vmatpush1.msra.mxu0 0.0
      %3912 = vmatprep.subr.mxu0 0.0
      %3913 = vmatpush1.msra.mxu0 0.0
      %3914 = vmatprep.subr.mxu0 0.0
      %3915 = vmatpush1.msra.mxu0 0.0
      %3916 = vmatprep.subr.mxu0 0.0
      %3917 = vmatpush1.msra.mxu0 0.0
      %3918 = vmatprep.subr.mxu0 0.0
      %3919 = vmatpush1.msra.mxu0 0.0
      %3920 = vmatprep.subr.mxu0 0.0
      %3921 = vmatpush1.msra.mxu0 0.0
      %3922 = vmatprep.subr.mxu0 0.0
      %3923 = vmatpush1.msra.mxu0 0.0
      %3924 = vmatprep.subr.mxu0 0.0
      %3925 = vmatpush1.msra.mxu0 0.0
      %3926 = vmatprep.subr.mxu0 0.0
      %3927 = vmatpush1.msra.mxu0 0.0
      %3928 = vmatprep.subr.mxu0 0.0
      %3929 = vmatpush1.msra.mxu0 0.0
      %3930 = vmatprep.subr.mxu0 0.0
      %3931 = vmatpush1.msra.mxu0 0.0
      %3932 = vmatprep.subr.mxu0 0.0
      %3933 = vmatpush1.msra.mxu0 0.0
      %3934 = vmatprep.subr.mxu0 0.0
      %3935 = vmatpush1.msra.mxu0 0.0
      %3936 = vmatprep.subr.mxu0 0.0
      %3937 = vmatpush1.msra.mxu0 0.0
      %3938 = vmatprep.subr.mxu0 0.0
      %3939 = vmatpush1.msra.mxu0 0.0
      %3940 = vmatprep.subr.mxu0 0.0
      %3941 = vmatpush1.msra.mxu0 0.0
      %3942 = vmatprep.subr.mxu0 0.0
      %3943 = vmatpush1.msra.mxu0 0.0
      %3944 = vmatprep.subr.mxu0 0.0
      %3945 = vmatpush1.msra.mxu0 0.0
      %3946 = vmatprep.subr.mxu0 0.0
      %3947 = vmatpush1.msra.mxu0 0.0
      %3948 = vmatprep.subr.mxu0 0.0
      %3949 = vmatpush1.msra.mxu0 0.0
      %3950 = vmatprep.subr.mxu0 0.0
      %3951 = vmatpush1.msra.mxu0 0.0
      %3952 = vmatprep.subr.mxu0 0.0
      %3953 = vmatpush1.msra.mxu0 0.0
      %3954 = vmatprep.subr.mxu0 0.0
      %3955 = vmatpush1.msra.mxu0 0.0
      %3956 = vmatprep.subr.mxu0 0.0
      %3957 = vmatpush1.msra.mxu0 0.0
      %3958 = vmatprep.subr.mxu0 0.0
      %3959 = vmatpush1.msra.mxu0 0.0
      %3960 = vmatprep.mubr.f32.mxu0 0.0
      %3961 = vmatmul.mubr.f32.gmra.mrb[0].mxu0 %v3752
      %v3962 = vpop.f32.mrb[0].mxu0
      %v3963 = vadd.f32 %v3749, %v3962
      %v3964 = vpop.f32.mrb[0].mxu0
      %v3965 = vadd.f32 %v3749, %v3964
      %3966 = vdwg.mxu0
      %3967 = vmatprep.subr.mxu0 %v890
      %3968 = vmatpush1.msra.mxu0 %v887
      %3969 = vmatprep.subr.mxu0 0.0
      %3970 = vmatpush1.msra.mxu0 0.0
      %3971 = vmatprep.subr.mxu0 0.0
      %3972 = vmatpush1.msra.mxu0 0.0
      %3973 = vmatprep.subr.mxu0 0.0
      %3974 = vmatpush1.msra.mxu0 0.0
      %3975 = vmatprep.subr.mxu0 0.0
      %3976 = vmatpush1.msra.mxu0 0.0
      %3977 = vmatprep.subr.mxu0 0.0
      %3978 = vmatpush1.msra.mxu0 0.0
      %3979 = vmatprep.subr.mxu0 0.0
      %3980 = vmatpush1.msra.mxu0 0.0
      %3981 = vmatprep.subr.mxu0 0.0
      %3982 = vmatpush1.msra.mxu0 0.0
      %3983 = vmatprep.subr.mxu0 0.0
      %3984 = vmatpush1.msra.mxu0 0.0
      %3985 = vmatprep.subr.mxu0 0.0
      %3986 = vmatpush1.msra.mxu0 0.0
      %3987 = vmatprep.subr.mxu0 0.0
      %3988 = vmatpush1.msra.mxu0 0.0
      %3989 = vmatprep.subr.mxu0 0.0
      %3990 = vmatpush1.msra.mxu0 0.0
      %3991 = vmatprep.subr.mxu0 0.0
      %3992 = vmatpush1.msra.mxu0 0.0
      %3993 = vmatprep.subr.mxu0 0.0
      %3994 = vmatpush1.msra.mxu0 0.0
      %3995 = vmatprep.subr.mxu0 0.0
      %3996 = vmatpush1.msra.mxu0 0.0
      %3997 = vmatprep.subr.mxu0 0.0
      %3998 = vmatpush1.msra.mxu0 0.0
      %3999 = vmatprep.subr.mxu0 0.0
      %4000 = vmatpush1.msra.mxu0 0.0
      %4001 = vmatprep.subr.mxu0 0.0
      %4002 = vmatpush1.msra.mxu0 0.0
      %4003 = vmatprep.subr.mxu0 0.0
      %4004 = vmatpush1.msra.mxu0 0.0
      %4005 = vmatprep.subr.mxu0 0.0
      %4006 = vmatpush1.msra.mxu0 0.0
      %4007 = vmatprep.subr.mxu0 0.0
      %4008 = vmatpush1.msra.mxu0 0.0
      %4009 = vmatprep.subr.mxu0 0.0
      %4010 = vmatpush1.msra.mxu0 0.0
      %4011 = vmatprep.subr.mxu0 0.0
      %4012 = vmatpush1.msra.mxu0 0.0
      %4013 = vmatprep.subr.mxu0 0.0
      %4014 = vmatpush1.msra.mxu0 0.0
      %4015 = vmatprep.subr.mxu0 0.0
      %4016 = vmatpush1.msra.mxu0 0.0
      %4017 = vmatprep.subr.mxu0 0.0
      %4018 = vmatpush1.msra.mxu0 0.0
      %4019 = vmatprep.subr.mxu0 0.0
      %4020 = vmatpush1.msra.mxu0 0.0
      %4021 = vmatprep.subr.mxu0 0.0
      %4022 = vmatpush1.msra.mxu0 0.0
      %4023 = vmatprep.subr.mxu0 0.0
      %4024 = vmatpush1.msra.mxu0 0.0
      %4025 = vmatprep.subr.mxu0 0.0
      %4026 = vmatpush1.msra.mxu0 0.0
      %4027 = vmatprep.subr.mxu0 0.0
      %4028 = vmatpush1.msra.mxu0 0.0
      %4029 = vmatprep.subr.mxu0 0.0
      %4030 = vmatpush1.msra.mxu0 0.0
      %4031 = vmatprep.mubr.f32.mxu0 0.0
      %4032 = vmatmul.mubr.f32.gmra.mrb[0].mxu0 %v3752
      %v4033 = vpop.f32.mrb[0].mxu0
      %v4034 = vadd.f32 %v3749, %v4033
      %v4035 = vpop.f32.mrb[0].mxu0
      %v4036 = vadd.f32 %v3749, %v4035
      %4037 = vdwg.mxu0
      %4038 = vrot.lane.b32.xlu0 %v3736, 64
      %v4039 = vpop.permute.xlu0 %4038
      %4040 = vrot.lane.b32.xlu0 %v3737, 64
      %v4041 = vpop.permute.xlu0 %4040
      %4042 = vrot.lane.b32.xlu0 %v3738, 64
      %v4043 = vpop.permute.xlu0 %4042
      %4044 = vrot.lane.b32.xlu0 %v3739, 64
      %v4045 = vpop.permute.xlu0 %4044
      %4046 = vrot.lane.b32.xlu0 %v3740, 64
      %v4047 = vpop.permute.xlu0 %4046
      %4048 = vrot.lane.b32.xlu0 %v3741, 64
      %v4049 = vpop.permute.xlu0 %4048
      %4050 = vrot.lane.b32.xlu0 %v3742, 64
      %v4051 = vpop.permute.xlu0 %4050
      %4052 = vrot.lane.b32.xlu0 %v3743, 64
      %v4053 = vpop.permute.xlu0 %4052
      %v4054 = vsel %vm3083, %v4051, %v4053
      %v4055 = vsel %vm3083, %v4049, %v4051
      %v4056 = vsel %vm3083, %v4047, %v4049
      %v4057 = vsel %vm3083, %v4045, %v4047
      %v4058 = vsel %vm3083, %v4043, %v4045
      %v4059 = vsel %vm3083, %v4041, %v4043
      %v4060 = vsel %vm3083, %v4039, %v4041
      %v4061 = vsel %vm3083, %v4053, %v4039
      %v4062 = vmax.f32 %v3736, %v4060
      %v4063 = vmax.f32 %v3737, %v4059
      %v4064 = vmax.f32 %v3738, %v4058
      %v4065 = vmax.f32 %v3739, %v4057
      %v4066 = vmax.f32 %v3740, %v4056
      %v4067 = vmax.f32 %v3741, %v4055
      %v4068 = vmax.f32 %v3742, %v4054
      %v4069 = vmax.f32 %v3743, %v4061
      %v4070 = vmax.f32 %v4062, %v3737
      %v4071 = vmax.f32 %v4063, %v3738
      %v4072 = vmax.f32 %v4064, %v3739
      %v4073 = vmax.f32 %v4065, %v3740
      %v4074 = vmax.f32 %v4066, %v3741
      %v4075 = vmax.f32 %v4067, %v3742
      %v4076 = vmax.f32 %v4068, %v3743
      %v4077 = vmax.f32 %v4069, %v3736
      %v4078 = vmax.f32 %v4070, %v4059
      %v4079 = vmax.f32 %v4071, %v4058
      %v4080 = vmax.f32 %v4072, %v4057
      %v4081 = vmax.f32 %v4073, %v4056
      %v4082 = vmax.f32 %v4074, %v4055
      %v4083 = vmax.f32 %v4075, %v4054
      %v4084 = vmax.f32 %v4076, %v4061
      %v4085 = vmax.f32 %v4077, %v4060
      %v4086 = vmax.f32 %v4078, %v3738
      %v4087 = vmax.f32 %v4079, %v3739
      %v4088 = vmax.f32 %v4080, %v3740
      %v4089 = vmax.f32 %v4081, %v3741
      %v4090 = vmax.f32 %v4082, %v3742
      %v4091 = vmax.f32 %v4083, %v3743
      %v4092 = vmax.f32 %v4084, %v3736
      %v4093 = vmax.f32 %v4085, %v3737
      %v4094 = vmax.f32 %v4086, %v4058
      %v4095 = vmax.f32 %v4087, %v4057
      %v4096 = vmax.f32 %v4088, %v4056
      %v4097 = vmax.f32 %v4089, %v4055
      %v4098 = vmax.f32 %v4090, %v4054
      %v4099 = vmax.f32 %v4091, %v4061
      %v4100 = vmax.f32 %v4092, %v4060
      %v4101 = vmax.f32 %v4093, %v4059
      %v4102 = vmax.f32 %v4094, %v3739
      %v4103 = vmax.f32 %v4095, %v3740
      %v4104 = vmax.f32 %v4096, %v3741
      %v4105 = vmax.f32 %v4097, %v3742
      %v4106 = vmax.f32 %v4098, %v3743
      %v4107 = vmax.f32 %v4099, %v3736
      %v4108 = vmax.f32 %v4100, %v3737
      %v4109 = vmax.f32 %v4101, %v3738
      %4110 = vrot.lane.b32.xlu0 %v4102, 126
      %v4111 = vpop.permute.xlu0 %4110
      %4112 = vrot.lane.b32.xlu0 %v4103, 126
      %v4113 = vpop.permute.xlu0 %4112
      %4114 = vrot.lane.b32.xlu0 %v4104, 126
      %v4115 = vpop.permute.xlu0 %4114
      %4116 = vrot.lane.b32.xlu0 %v4105, 126
      %v4117 = vpop.permute.xlu0 %4116
      %4118 = vrot.lane.b32.xlu0 %v4106, 126
      %v4119 = vpop.permute.xlu0 %4118
      %4120 = vrot.lane.b32.xlu0 %v4107, 126
      %v4121 = vpop.permute.xlu0 %4120
      %4122 = vrot.lane.b32.xlu0 %v4108, 126
      %v4123 = vpop.permute.xlu0 %4122
      %4124 = vrot.lane.b32.xlu0 %v4109, 126
      %v4125 = vpop.permute.xlu0 %4124
      %v4126 = vsel %vm1795, %v4123, %v4125
      %v4127 = vsel %vm1795, %v4121, %v4123
      %v4128 = vsel %vm1795, %v4119, %v4121
      %v4129 = vsel %vm1795, %v4117, %v4119
      %v4130 = vsel %vm1795, %v4115, %v4117
      %v4131 = vsel %vm1795, %v4113, %v4115
      %v4132 = vsel %vm1795, %v4111, %v4113
      %v4133 = vsel %vm1795, %v4125, %v4111
      %v4134 = vmax.f32 %v4102, %v4132
      %v4135 = vmax.f32 %v4103, %v4131
      %v4136 = vmax.f32 %v4104, %v4130
      %v4137 = vmax.f32 %v4105, %v4129
      %v4138 = vmax.f32 %v4106, %v4128
      %v4139 = vmax.f32 %v4107, %v4127
      %v4140 = vmax.f32 %v4108, %v4126
      %v4141 = vmax.f32 %v4109, %v4133
      %4142 = vrot.lane.b32.xlu0 %v4102, 124
      %v4143 = vpop.permute.xlu0 %4142
      %4144 = vrot.lane.b32.xlu0 %v4103, 124
      %v4145 = vpop.permute.xlu0 %4144
      %4146 = vrot.lane.b32.xlu0 %v4104, 124
      %v4147 = vpop.permute.xlu0 %4146
      %4148 = vrot.lane.b32.xlu0 %v4105, 124
      %v4149 = vpop.permute.xlu0 %4148
      %4150 = vrot.lane.b32.xlu0 %v4106, 124
      %v4151 = vpop.permute.xlu0 %4150
      %4152 = vrot.lane.b32.xlu0 %v4107, 124
      %v4153 = vpop.permute.xlu0 %4152
      %4154 = vrot.lane.b32.xlu0 %v4108, 124
      %v4155 = vpop.permute.xlu0 %4154
      %4156 = vrot.lane.b32.xlu0 %v4109, 124
      %v4157 = vpop.permute.xlu0 %4156
      %vm4158 = vcmp.lt.s32.totalorder %v1193, 124
      %v4159 = vsel %vm4158, %v4155, %v4157
      %v4160 = vsel %vm4158, %v4153, %v4155
      %v4161 = vsel %vm4158, %v4151, %v4153
      %v4162 = vsel %vm4158, %v4149, %v4151
      %v4163 = vsel %vm4158, %v4147, %v4149
      %v4164 = vsel %vm4158, %v4145, %v4147
      %v4165 = vsel %vm4158, %v4143, %v4145
      %v4166 = vsel %vm4158, %v4157, %v4143
      %v4167 = vmax.f32 %v4134, %v4165
      %v4168 = vmax.f32 %v4135, %v4164
      %v4169 = vmax.f32 %v4136, %v4163
      %v4170 = vmax.f32 %v4137, %v4162
      %v4171 = vmax.f32 %v4138, %v4161
      %v4172 = vmax.f32 %v4139, %v4160
      %v4173 = vmax.f32 %v4140, %v4159
      %v4174 = vmax.f32 %v4141, %v4166
      %4175 = vrot.lane.b32.xlu0 %v4102, 122
      %v4176 = vpop.permute.xlu0 %4175
      %4177 = vrot.lane.b32.xlu0 %v4103, 122
      %v4178 = vpop.permute.xlu0 %4177
      %4179 = vrot.lane.b32.xlu0 %v4104, 122
      %v4180 = vpop.permute.xlu0 %4179
      %4181 = vrot.lane.b32.xlu0 %v4105, 122
      %v4182 = vpop.permute.xlu0 %4181
      %4183 = vrot.lane.b32.xlu0 %v4106, 122
      %v4184 = vpop.permute.xlu0 %4183
      %4185 = vrot.lane.b32.xlu0 %v4107, 122
      %v4186 = vpop.permute.xlu0 %4185
      %4187 = vrot.lane.b32.xlu0 %v4108, 122
      %v4188 = vpop.permute.xlu0 %4187
      %4189 = vrot.lane.b32.xlu0 %v4109, 122
      %v4190 = vpop.permute.xlu0 %4189
      %vm4191 = vcmp.lt.s32.totalorder %v1193, 122
      %v4192 = vsel %vm4191, %v4188, %v4190
      %v4193 = vsel %vm4191, %v4186, %v4188
      %v4194 = vsel %vm4191, %v4184, %v4186
      %v4195 = vsel %vm4191, %v4182, %v4184
      %v4196 = vsel %vm4191, %v4180, %v4182
      %v4197 = vsel %vm4191, %v4178, %v4180
      %v4198 = vsel %vm4191, %v4176, %v4178
      %v4199 = vsel %vm4191, %v4190, %v4176
      %v4200 = vmax.f32 %v4167, %v4198
      %v4201 = vmax.f32 %v4168, %v4197
      %v4202 = vmax.f32 %v4169, %v4196
      %v4203 = vmax.f32 %v4170, %v4195
      %v4204 = vmax.f32 %v4171, %v4194
      %v4205 = vmax.f32 %v4172, %v4193
      %v4206 = vmax.f32 %v4173, %v4192
      %v4207 = vmax.f32 %v4174, %v4199
      %4208 = vrot.lane.b32.xlu0 %v4102, 120
      %v4209 = vpop.permute.xlu0 %4208
      %4210 = vrot.lane.b32.xlu0 %v4103, 120
      %v4211 = vpop.permute.xlu0 %4210
      %4212 = vrot.lane.b32.xlu0 %v4104, 120
      %v4213 = vpop.permute.xlu0 %4212
      %4214 = vrot.lane.b32.xlu0 %v4105, 120
      %v4215 = vpop.permute.xlu0 %4214
      %4216 = vrot.lane.b32.xlu0 %v4106, 120
      %v4217 = vpop.permute.xlu0 %4216
      %4218 = vrot.lane.b32.xlu0 %v4107, 120
      %v4219 = vpop.permute.xlu0 %4218
      %4220 = vrot.lane.b32.xlu0 %v4108, 120
      %v4221 = vpop.permute.xlu0 %4220
      %4222 = vrot.lane.b32.xlu0 %v4109, 120
      %v4223 = vpop.permute.xlu0 %4222
      %vm4224 = vcmp.lt.s32.totalorder %v1193, 120
      %v4225 = vsel %vm4224, %v4221, %v4223
      %v4226 = vsel %vm4224, %v4219, %v4221
      %v4227 = vsel %vm4224, %v4217, %v4219
      %v4228 = vsel %vm4224, %v4215, %v4217
      %v4229 = vsel %vm4224, %v4213, %v4215
      %v4230 = vsel %vm4224, %v4211, %v4213
      %v4231 = vsel %vm4224, %v4209, %v4211
      %v4232 = vsel %vm4224, %v4223, %v4209
      %v4233 = vmax.f32 %v4200, %v4231
      %v4234 = vmax.f32 %v4201, %v4230
      %v4235 = vmax.f32 %v4202, %v4229
      %v4236 = vmax.f32 %v4203, %v4228
      %v4237 = vmax.f32 %v4204, %v4227
      %v4238 = vmax.f32 %v4205, %v4226
      %v4239 = vmax.f32 %v4206, %v4225
      %v4240 = vmax.f32 %v4207, %v4232
      %4241 = vrot.lane.b32.xlu0 %v4102, 118
      %v4242 = vpop.permute.xlu0 %4241
      %4243 = vrot.lane.b32.xlu0 %v4103, 118
      %v4244 = vpop.permute.xlu0 %4243
      %4245 = vrot.lane.b32.xlu0 %v4104, 118
      %v4246 = vpop.permute.xlu0 %4245
      %4247 = vrot.lane.b32.xlu0 %v4105, 118
      %v4248 = vpop.permute.xlu0 %4247
      %4249 = vrot.lane.b32.xlu0 %v4106, 118
      %v4250 = vpop.permute.xlu0 %4249
      %4251 = vrot.lane.b32.xlu0 %v4107, 118
      %v4252 = vpop.permute.xlu0 %4251
      %4253 = vrot.lane.b32.xlu0 %v4108, 118
      %v4254 = vpop.permute.xlu0 %4253
      %4255 = vrot.lane.b32.xlu0 %v4109, 118
      %v4256 = vpop.permute.xlu0 %4255
      %vm4257 = vcmp.lt.s32.totalorder %v1193, 118
      %v4258 = vsel %vm4257, %v4254, %v4256
      %v4259 = vsel %vm4257, %v4252, %v4254
      %v4260 = vsel %vm4257, %v4250, %v4252
      %v4261 = vsel %vm4257, %v4248, %v4250
      %v4262 = vsel %vm4257, %v4246, %v4248
      %v4263 = vsel %vm4257, %v4244, %v4246
      %v4264 = vsel %vm4257, %v4242, %v4244
      %v4265 = vsel %vm4257, %v4256, %v4242
      %v4266 = vmax.f32 %v4233, %v4264
      %v4267 = vmax.f32 %v4234, %v4263
      %v4268 = vmax.f32 %v4235, %v4262
      %v4269 = vmax.f32 %v4236, %v4261
      %v4270 = vmax.f32 %v4237, %v4260
      %v4271 = vmax.f32 %v4238, %v4259
      %v4272 = vmax.f32 %v4239, %v4258
      %v4273 = vmax.f32 %v4240, %v4265
      %4274 = vrot.lane.b32.xlu0 %v4102, 116
      %v4275 = vpop.permute.xlu0 %4274
      %4276 = vrot.lane.b32.xlu0 %v4103, 116
      %v4277 = vpop.permute.xlu0 %4276
      %4278 = vrot.lane.b32.xlu0 %v4104, 116
      %v4279 = vpop.permute.xlu0 %4278
      %4280 = vrot.lane.b32.xlu0 %v4105, 116
      %v4281 = vpop.permute.xlu0 %4280
      %4282 = vrot.lane.b32.xlu0 %v4106, 116
      %v4283 = vpop.permute.xlu0 %4282
      %4284 = vrot.lane.b32.xlu0 %v4107, 116
      %v4285 = vpop.permute.xlu0 %4284
      %4286 = vrot.lane.b32.xlu0 %v4108, 116
      %v4287 = vpop.permute.xlu0 %4286
      %4288 = vrot.lane.b32.xlu0 %v4109, 116
      %v4289 = vpop.permute.xlu0 %4288
      %vm4290 = vcmp.lt.s32.totalorder %v1193, 116
      %v4291 = vsel %vm4290, %v4287, %v4289
      %v4292 = vsel %vm4290, %v4285, %v4287
      %v4293 = vsel %vm4290, %v4283, %v4285
      %v4294 = vsel %vm4290, %v4281, %v4283
      %v4295 = vsel %vm4290, %v4279, %v4281
      %v4296 = vsel %vm4290, %v4277, %v4279
      %v4297 = vsel %vm4290, %v4275, %v4277
      %v4298 = vsel %vm4290, %v4289, %v4275
      %v4299 = vmax.f32 %v4266, %v4297
      %v4300 = vmax.f32 %v4267, %v4296
      %v4301 = vmax.f32 %v4268, %v4295
      %v4302 = vmax.f32 %v4269, %v4294
      %v4303 = vmax.f32 %v4270, %v4293
      %v4304 = vmax.f32 %v4271, %v4292
      %v4305 = vmax.f32 %v4272, %v4291
      %v4306 = vmax.f32 %v4273, %v4298
      %v4307 = vld [vmem:[%s9] sm:$0xff]
      %v4308 = vld [vmem:[%s9 + $0x8] sm:$0xff]
      %v4309 = vld [vmem:[%s9 + $0x10] sm:$0xff]
      %v4310 = vld [vmem:[%s9 + $0x18] sm:$0xff]
      %v4311 = vld [vmem:[%s9 + $0x20] sm:$0xff]
      %v4312 = vld [vmem:[%s9 + $0x28] sm:$0xff]
      %v4313 = vld [vmem:[%s9 + $0x30] sm:$0xff]
      %v4314 = vld [vmem:[%s9 + $0x38] sm:$0xff]
      %v4315 = vld [vmem:[%s9 + $0x40] sm:$0xff]
      %v4316 = vld [vmem:[%s9 + $0x48] sm:$0xff]
      %v4317 = vld [vmem:[%s9 + $0x50] sm:$0xff]
      %v4318 = vld [vmem:[%s9 + $0x58] sm:$0xff]
      %v4319 = vld [vmem:[%s9 + $0x60] sm:$0xff]
      %v4320 = vld [vmem:[%s9 + $0x68] sm:$0xff]
      %v4321 = vld [vmem:[%s9 + $0x70] sm:$0xff]
      %v4322 = vld [vmem:[%s9 + $0x78] sm:$0xff]
      %v4323 = vld [vmem:[%s9 + $0x80] sm:$0xff]
      %v4324 = vld [vmem:[%s9 + $0x88] sm:$0xff]
      %v4325 = vld [vmem:[%s9 + $0x90] sm:$0xff]
      %v4326 = vld [vmem:[%s9 + $0x98] sm:$0xff]
      %v4327 = vld [vmem:[%s9 + $0xa0] sm:$0xff]
      %v4328 = vld [vmem:[%s9 + $0xa8] sm:$0xff]
      %v4329 = vld [vmem:[%s9 + $0xb0] sm:$0xff]
      %v4330 = vld [vmem:[%s9 + $0xb8] sm:$0xff]
      %v4331 = vld [vmem:[%s9 + $0xc0] sm:$0xff]
      %v4332 = vld [vmem:[%s9 + $0xc8] sm:$0xff]
      %v4333 = vld [vmem:[%s9 + $0xd0] sm:$0xff]
      %v4334 = vld [vmem:[%s9 + $0xd8] sm:$0xff]
      %v4335 = vld [vmem:[%s9 + $0xe0] sm:$0xff]
      %v4336 = vld [vmem:[%s9 + $0xe8] sm:$0xff]
      %v4337 = vld [vmem:[%s9 + $0xf0] sm:$0xff]
      %v4338 = vld [vmem:[%s9 + $0xf8] sm:$0xff]
      %v4339 = vld [vmem:[%s9 + $0x100] sm:$0xff]
      %v4340 = vld [vmem:[%s9 + $0x108] sm:$0xff]
      %v4341 = vld [vmem:[%s9 + $0x110] sm:$0xff]
      %v4342 = vld [vmem:[%s9 + $0x118] sm:$0xff]
      %v4343 = vld [vmem:[%s9 + $0x120] sm:$0xff]
      %v4344 = vld [vmem:[%s9 + $0x128] sm:$0xff]
      %v4345 = vld [vmem:[%s9 + $0x130] sm:$0xff]
      %v4346 = vld [vmem:[%s9 + $0x138] sm:$0xff]
      %v4347 = vld [vmem:[%s9 + $0x140] sm:$0xff]
      %v4348 = vld [vmem:[%s9 + $0x148] sm:$0xff]
      %v4349 = vld [vmem:[%s9 + $0x150] sm:$0xff]
      %v4350 = vld [vmem:[%s9 + $0x158] sm:$0xff]
      %v4351 = vld [vmem:[%s9 + $0x160] sm:$0xff]
      %v4352 = vld [vmem:[%s9 + $0x168] sm:$0xff]
      %v4353 = vld [vmem:[%s9 + $0x170] sm:$0xff]
      %v4354 = vld [vmem:[%s9 + $0x178] sm:$0xff]
      %v4355 = vld [vmem:[%s9 + $0x180] sm:$0xff]
      %v4356 = vld [vmem:[%s9 + $0x188] sm:$0xff]
      %v4357 = vld [vmem:[%s9 + $0x190] sm:$0xff]
      %v4358 = vld [vmem:[%s9 + $0x198] sm:$0xff]
      %v4359 = vld [vmem:[%s9 + $0x1a0] sm:$0xff]
      %v4360 = vld [vmem:[%s9 + $0x1a8] sm:$0xff]
      %v4361 = vld [vmem:[%s9 + $0x1b0] sm:$0xff]
      %v4362 = vld [vmem:[%s9 + $0x1b8] sm:$0xff]
      %v4363 = vld [vmem:[%s9 + $0x1c0] sm:$0xff]
      %v4364 = vld [vmem:[%s9 + $0x1c8] sm:$0xff]
      %v4365 = vld [vmem:[%s9 + $0x1d0] sm:$0xff]
      %v4366 = vld [vmem:[%s9 + $0x1d8] sm:$0xff]
      %v4367 = vld [vmem:[%s9 + $0x1e0] sm:$0xff]
      %v4368 = vld [vmem:[%s9 + $0x1e8] sm:$0xff]
      %v4369 = vld [vmem:[%s9 + $0x1f0] sm:$0xff]
      %v4370 = vld [vmem:[%s9 + $0x1f8] sm:$0xff]
      %v4371 = vld [vmem:[%s9 + $0x200] sm:$0xff]
      %v4372 = vld [vmem:[%s9 + $0x208] sm:$0xff]
      %v4373 = vld [vmem:[%s9 + $0x210] sm:$0xff]
      %v4374 = vld [vmem:[%s9 + $0x218] sm:$0xff]
      %v4375 = vld [vmem:[%s9 + $0x220] sm:$0xff]
      %v4376 = vld [vmem:[%s9 + $0x228] sm:$0xff]
      %v4377 = vld [vmem:[%s9 + $0x230] sm:$0xff]
      %v4378 = vld [vmem:[%s9 + $0x238] sm:$0xff]
      %v4379 = vld [vmem:[%s9 + $0x240] sm:$0xff]
      %v4380 = vld [vmem:[%s9 + $0x248] sm:$0xff]
      %v4381 = vld [vmem:[%s9 + $0x250] sm:$0xff]
      %v4382 = vld [vmem:[%s9 + $0x258] sm:$0xff]
      %v4383 = vld [vmem:[%s9 + $0x260] sm:$0xff]
      %v4384 = vld [vmem:[%s9 + $0x268] sm:$0xff]
      %v4385 = vld [vmem:[%s9 + $0x270] sm:$0xff]
      %v4386 = vld [vmem:[%s9 + $0x278] sm:$0xff]
      %v4387 = vld [vmem:[%s9 + $0x280] sm:$0xff]
      %v4388 = vld [vmem:[%s9 + $0x288] sm:$0xff]
      %v4389 = vld [vmem:[%s9 + $0x290] sm:$0xff]
      %v4390 = vld [vmem:[%s9 + $0x298] sm:$0xff]
      %v4391 = vld [vmem:[%s9 + $0x2a0] sm:$0xff]
      %v4392 = vld [vmem:[%s9 + $0x2a8] sm:$0xff]
      %v4393 = vld [vmem:[%s9 + $0x2b0] sm:$0xff]
      %v4394 = vld [vmem:[%s9 + $0x2b8] sm:$0xff]
      %v4395 = vld [vmem:[%s9 + $0x2c0] sm:$0xff]
      %v4396 = vld [vmem:[%s9 + $0x2c8] sm:$0xff]
      %v4397 = vld [vmem:[%s9 + $0x2d0] sm:$0xff]
      %v4398 = vld [vmem:[%s9 + $0x2d8] sm:$0xff]
      %v4399 = vld [vmem:[%s9 + $0x2e0] sm:$0xff]
      %v4400 = vld [vmem:[%s9 + $0x2e8] sm:$0xff]
      %v4401 = vld [vmem:[%s9 + $0x2f0] sm:$0xff]
      %v4402 = vld [vmem:[%s9 + $0x2f8] sm:$0xff]
      %v4403 = vld [vmem:[%s9 + $0x300] sm:$0xff]
      %v4404 = vld [vmem:[%s9 + $0x308] sm:$0xff]
      %v4405 = vld [vmem:[%s9 + $0x310] sm:$0xff]
      %v4406 = vld [vmem:[%s9 + $0x318] sm:$0xff]
      %v4407 = vld [vmem:[%s9 + $0x320] sm:$0xff]
      %v4408 = vld [vmem:[%s9 + $0x328] sm:$0xff]
      %v4409 = vld [vmem:[%s9 + $0x330] sm:$0xff]
      %v4410 = vld [vmem:[%s9 + $0x338] sm:$0xff]
      %v4411 = vld [vmem:[%s9 + $0x340] sm:$0xff]
      %v4412 = vld [vmem:[%s9 + $0x348] sm:$0xff]
      %v4413 = vld [vmem:[%s9 + $0x350] sm:$0xff]
      %v4414 = vld [vmem:[%s9 + $0x358] sm:$0xff]
      %v4415 = vld [vmem:[%s9 + $0x360] sm:$0xff]
      %v4416 = vld [vmem:[%s9 + $0x368] sm:$0xff]
      %v4417 = vld [vmem:[%s9 + $0x370] sm:$0xff]
      %v4418 = vld [vmem:[%s9 + $0x378] sm:$0xff]
      %v4419 = vld [vmem:[%s9 + $0x380] sm:$0xff]
      %v4420 = vld [vmem:[%s9 + $0x388] sm:$0xff]
      %v4421 = vld [vmem:[%s9 + $0x390] sm:$0xff]
      %v4422 = vld [vmem:[%s9 + $0x398] sm:$0xff]
      %v4423 = vld [vmem:[%s9 + $0x3a0] sm:$0xff]
      %v4424 = vld [vmem:[%s9 + $0x3a8] sm:$0xff]
      %v4425 = vld [vmem:[%s9 + $0x3b0] sm:$0xff]
      %v4426 = vld [vmem:[%s9 + $0x3b8] sm:$0xff]
      %v4427 = vld [vmem:[%s9 + $0x3c0] sm:$0xff]
      %v4428 = vld [vmem:[%s9 + $0x3c8] sm:$0xff]
      %v4429 = vld [vmem:[%s9 + $0x3d0] sm:$0xff]
      %v4430 = vld [vmem:[%s9 + $0x3d8] sm:$0xff]
      %v4431 = vld [vmem:[%s9 + $0x3e0] sm:$0xff]
      %v4432 = vld [vmem:[%s9 + $0x3e8] sm:$0xff]
      %v4433 = vld [vmem:[%s9 + $0x3f0] sm:$0xff]
      %v4434 = vld [vmem:[%s9 + $0x3f8] sm:$0xff]
      %v4435 = vld [vmem:[%s8] sm:$0xf]
      %4437 = vset.pattern.permute.xlu0 0
      %4438 = vperm.xlu0 %4437, %v4435
      %v4439 = vpop.permute.xlu0 %4438
      %4441 = vmatprep.subr.mxu0 0.0
      %4442 = vmatpush1.msra.mxu0 %v4307
      %4443 = vmatprep.subr.mxu0 0.0
      %4444 = vmatpush1.msra.mxu0 %v4308
      %4445 = vmatprep.subr.mxu0 0.0
      %4446 = vmatpush1.msra.mxu0 %v4309
      %4447 = vmatprep.subr.mxu0 0.0
      %4448 = vmatpush1.msra.mxu0 %v4310
      %4449 = vmatprep.subr.mxu0 0.0
      %4450 = vmatpush1.msra.mxu0 %v4311
      %4451 = vmatprep.subr.mxu0 0.0
      %4452 = vmatpush1.msra.mxu0 %v4312
      %4453 = vmatprep.subr.mxu0 0.0
      %4454 = vmatpush1.msra.mxu0 %v4313
      %4455 = vmatprep.subr.mxu0 0.0
      %4456 = vmatpush1.msra.mxu0 %v4314
      %4457 = vmatprep.subr.mxu0 0.0
      %4458 = vmatpush1.msra.mxu0 %v4315
      %4459 = vmatprep.subr.mxu0 0.0
      %4460 = vmatpush1.msra.mxu0 %v4316
      %4461 = vmatprep.subr.mxu0 0.0
      %4462 = vmatpush1.msra.mxu0 %v4317
      %4463 = vmatprep.subr.mxu0 0.0
      %4464 = vmatpush1.msra.mxu0 %v4318
      %4465 = vmatprep.subr.mxu0 0.0
      %4466 = vmatpush1.msra.mxu0 %v4319
      %4467 = vmatprep.subr.mxu0 0.0
      %4468 = vmatpush1.msra.mxu0 %v4320
      %4469 = vmatprep.subr.mxu0 0.0
      %4470 = vmatpush1.msra.mxu0 %v4321
      %4471 = vmatprep.subr.mxu0 0.0
      %4472 = vmatpush1.msra.mxu0 %v4322
      %4473 = vmatprep.subr.mxu0 0.0
      %4474 = vmatpush1.msra.mxu0 %v4323
      %4475 = vmatprep.subr.mxu0 0.0
      %4476 = vmatpush1.msra.mxu0 %v4324
      %4477 = vmatprep.subr.mxu0 0.0
      %4478 = vmatpush1.msra.mxu0 %v4325
      %4479 = vmatprep.subr.mxu0 0.0
      %4480 = vmatpush1.msra.mxu0 %v4326
      %4481 = vmatprep.subr.mxu0 0.0
      %4482 = vmatpush1.msra.mxu0 %v4327
      %4483 = vmatprep.subr.mxu0 0.0
      %4484 = vmatpush1.msra.mxu0 %v4328
      %4485 = vmatprep.subr.mxu0 0.0
      %4486 = vmatpush1.msra.mxu0 %v4329
      %4487 = vmatprep.subr.mxu0 0.0
      %4488 = vmatpush1.msra.mxu0 %v4330
      %4489 = vmatprep.subr.mxu0 0.0
      %4490 = vmatpush1.msra.mxu0 %v4331
      %4491 = vmatprep.subr.mxu0 0.0
      %4492 = vmatpush1.msra.mxu0 %v4332
      %4493 = vmatprep.subr.mxu0 0.0
      %4494 = vmatpush1.msra.mxu0 %v4333
      %4495 = vmatprep.subr.mxu0 0.0
      %4496 = vmatpush1.msra.mxu0 %v4334
      %4497 = vmatprep.subr.mxu0 0.0
      %4498 = vmatpush1.msra.mxu0 %v4335
      %4499 = vmatprep.subr.mxu0 0.0
      %4500 = vmatpush1.msra.mxu0 %v4336
      %4501 = vmatprep.subr.mxu0 0.0
      %4502 = vmatpush1.msra.mxu0 %v4337
      %4503 = vmatprep.subr.mxu0 0.0
      %4504 = vmatpush1.msra.mxu0 %v4338
      %4505 = vmatprep.mubr.f32.mxu0 %v4300
      %4506 = vmatmul.mubr.f32.gmra.mrb[0].mxu0 %v4299
      %v4507 = vpop.f32.mrb[0].mxu0
      %v4508 = vadd.f32 %v4439, %v4507
      %v4509 = vpop.f32.mrb[0].mxu0
      %4510 = vdwg.mxu0
      %4511 = vmatprep.subr.mxu0 0.0
      %4512 = vmatpush1.msra.mxu0 %v4339
      %4513 = vmatprep.subr.mxu0 0.0
      %4514 = vmatpush1.msra.mxu0 %v4340
      %4515 = vmatprep.subr.mxu0 0.0
      %4516 = vmatpush1.msra.mxu0 %v4341
      %4517 = vmatprep.subr.mxu0 0.0
      %4518 = vmatpush1.msra.mxu0 %v4342
      %4519 = vmatprep.subr.mxu0 0.0
      %4520 = vmatpush1.msra.mxu0 %v4343
      %4521 = vmatprep.subr.mxu0 0.0
      %4522 = vmatpush1.msra.mxu0 %v4344
      %4523 = vmatprep.subr.mxu0 0.0
      %4524 = vmatpush1.msra.mxu0 %v4345
      %4525 = vmatprep.subr.mxu0 0.0
      %4526 = vmatpush1.msra.mxu0 %v4346
      %4527 = vmatprep.subr.mxu0 0.0
      %4528 = vmatpush1.msra.mxu0 %v4347
      %4529 = vmatprep.subr.mxu0 0.0
      %4530 = vmatpush1.msra.mxu0 %v4348
      %4531 = vmatprep.subr.mxu0 0.0
      %4532 = vmatpush1.msra.mxu0 %v4349
      %4533 = vmatprep.subr.mxu0 0.0
      %4534 = vmatpush1.msra.mxu0 %v4350
      %4535 = vmatprep.subr.mxu0 0.0
      %4536 = vmatpush1.msra.mxu0 %v4351
      %4537 = vmatprep.subr.mxu0 0.0
      %4538 = vmatpush1.msra.mxu0 %v4352
      %4539 = vmatprep.subr.mxu0 0.0
      %4540 = vmatpush1.msra.mxu0 %v4353
      %4541 = vmatprep.subr.mxu0 0.0
      %4542 = vmatpush1.msra.mxu0 %v4354
      %4543 = vmatprep.subr.mxu0 0.0
      %4544 = vmatpush1.msra.mxu0 %v4355
      %4545 = vmatprep.subr.mxu0 0.0
      %4546 = vmatpush1.msra.mxu0 %v4356
      %4547 = vmatprep.subr.mxu0 0.0
      %4548 = vmatpush1.msra.mxu0 %v4357
      %4549 = vmatprep.subr.mxu0 0.0
      %4550 = vmatpush1.msra.mxu0 %v4358
      %4551 = vmatprep.subr.mxu0 0.0
      %4552 = vmatpush1.msra.mxu0 %v4359
      %4553 = vmatprep.subr.mxu0 0.0
      %4554 = vmatpush1.msra.mxu0 %v4360
      %4555 = vmatprep.subr.mxu0 0.0
      %4556 = vmatpush1.msra.mxu0 %v4361
      %4557 = vmatprep.subr.mxu0 0.0
      %4558 = vmatpush1.msra.mxu0 %v4362
      %4559 = vmatprep.subr.mxu0 0.0
      %4560 = vmatpush1.msra.mxu0 %v4363
      %4561 = vmatprep.subr.mxu0 0.0
      %4562 = vmatpush1.msra.mxu0 %v4364
      %4563 = vmatprep.subr.mxu0 0.0
      %4564 = vmatpush1.msra.mxu0 %v4365
      %4565 = vmatprep.subr.mxu0 0.0
      %4566 = vmatpush1.msra.mxu0 %v4366
      %4567 = vmatprep.subr.mxu0 0.0
      %4568 = vmatpush1.msra.mxu0 %v4367
      %4569 = vmatprep.subr.mxu0 0.0
      %4570 = vmatpush1.msra.mxu0 %v4368
      %4571 = vmatprep.subr.mxu0 0.0
      %4572 = vmatpush1.msra.mxu0 %v4369
      %4573 = vmatprep.subr.mxu0 0.0
      %4574 = vmatpush1.msra.mxu0 %v4370
      %4575 = vmatprep.mubr.f32.mxu0 %v4302
      %4576 = vmatmul.mubr.f32.gmra.mrb[0].mxu0 %v4301
      %v4577 = vpop.f32.mrb[0].mxu0
      %v4578 = vadd.f32 %v4508, %v4577
      %v4579 = vpop.f32.mrb[0].mxu0
      %4580 = vdwg.mxu0
      %4581 = vmatprep.subr.mxu0 0.0
      %4582 = vmatpush1.msra.mxu0 %v4371
      %4583 = vmatprep.subr.mxu0 0.0
      %4584 = vmatpush1.msra.mxu0 %v4372
      %4585 = vmatprep.subr.mxu0 0.0
      %4586 = vmatpush1.msra.mxu0 %v4373
      %4587 = vmatprep.subr.mxu0 0.0
      %4588 = vmatpush1.msra.mxu0 %v4374
      %4589 = vmatprep.subr.mxu0 0.0
      %4590 = vmatpush1.msra.mxu0 %v4375
      %4591 = vmatprep.subr.mxu0 0.0
      %4592 = vmatpush1.msra.mxu0 %v4376
      %4593 = vmatprep.subr.mxu0 0.0
      %4594 = vmatpush1.msra.mxu0 %v4377
      %4595 = vmatprep.subr.mxu0 0.0
      %4596 = vmatpush1.msra.mxu0 %v4378
      %4597 = vmatprep.subr.mxu0 0.0
      %4598 = vmatpush1.msra.mxu0 %v4379
      %4599 = vmatprep.subr.mxu0 0.0
      %4600 = vmatpush1.msra.mxu0 %v4380
      %4601 = vmatprep.subr.mxu0 0.0
      %4602 = vmatpush1.msra.mxu0 %v4381
      %4603 = vmatprep.subr.mxu0 0.0
      %4604 = vmatpush1.msra.mxu0 %v4382
      %4605 = vmatprep.subr.mxu0 0.0
      %4606 = vmatpush1.msra.mxu0 %v4383
      %4607 = vmatprep.subr.mxu0 0.0
      %4608 = vmatpush1.msra.mxu0 %v4384
      %4609 = vmatprep.subr.mxu0 0.0
      %4610 = vmatpush1.msra.mxu0 %v4385
      %4611 = vmatprep.subr.mxu0 0.0
      %4612 = vmatpush1.msra.mxu0 %v4386
      %4613 = vmatprep.subr.mxu0 0.0
      %4614 = vmatpush1.msra.mxu0 %v4387
      %4615 = vmatprep.subr.mxu0 0.0
      %4616 = vmatpush1.msra.mxu0 %v4388
      %4617 = vmatprep.subr.mxu0 0.0
      %4618 = vmatpush1.msra.mxu0 %v4389
      %4619 = vmatprep.subr.mxu0 0.0
      %4620 = vmatpush1.msra.mxu0 %v4390
      %4621 = vmatprep.subr.mxu0 0.0
      %4622 = vmatpush1.msra.mxu0 %v4391
      %4623 = vmatprep.subr.mxu0 0.0
      %4624 = vmatpush1.msra.mxu0 %v4392
      %4625 = vmatprep.subr.mxu0 0.0
      %4626 = vmatpush1.msra.mxu0 %v4393
      %4627 = vmatprep.subr.mxu0 0.0
      %4628 = vmatpush1.msra.mxu0 %v4394
      %4629 = vmatprep.subr.mxu0 0.0
      %4630 = vmatpush1.msra.mxu0 %v4395
      %4631 = vmatprep.subr.mxu0 0.0
      %4632 = vmatpush1.msra.mxu0 %v4396
      %4633 = vmatprep.subr.mxu0 0.0
      %4634 = vmatpush1.msra.mxu0 %v4397
      %4635 = vmatprep.subr.mxu0 0.0
      %4636 = vmatpush1.msra.mxu0 %v4398
      %4637 = vmatprep.subr.mxu0 0.0
      %4638 = vmatpush1.msra.mxu0 %v4399
      %4639 = vmatprep.subr.mxu0 0.0
      %4640 = vmatpush1.msra.mxu0 %v4400
      %4641 = vmatprep.subr.mxu0 0.0
      %4642 = vmatpush1.msra.mxu0 %v4401
      %4643 = vmatprep.subr.mxu0 0.0
      %4644 = vmatpush1.msra.mxu0 %v4402
      %4645 = vmatprep.mubr.f32.mxu0 %v4304
      %4646 = vmatmul.mubr.f32.gmra.mrb[0].mxu0 %v4303
      %v4647 = vpop.f32.mrb[0].mxu0
      %v4648 = vadd.f32 %v4578, %v4647
      %v4649 = vpop.f32.mrb[0].mxu0
      %4650 = vdwg.mxu0
      %4651 = vmatprep.subr.mxu0 0.0
      %4652 = vmatpush1.msra.mxu0 %v4403
      %4653 = vmatprep.subr.mxu0 0.0
      %4654 = vmatpush1.msra.mxu0 %v4404
      %4655 = vmatprep.subr.mxu0 0.0
      %4656 = vmatpush1.msra.mxu0 %v4405
      %4657 = vmatprep.subr.mxu0 0.0
      %4658 = vmatpush1.msra.mxu0 %v4406
      %4659 = vmatprep.subr.mxu0 0.0
      %4660 = vmatpush1.msra.mxu0 %v4407
      %4661 = vmatprep.subr.mxu0 0.0
      %4662 = vmatpush1.msra.mxu0 %v4408
      %4663 = vmatprep.subr.mxu0 0.0
      %4664 = vmatpush1.msra.mxu0 %v4409
      %4665 = vmatprep.subr.mxu0 0.0
      %4666 = vmatpush1.msra.mxu0 %v4410
      %4667 = vmatprep.subr.mxu0 0.0
      %4668 = vmatpush1.msra.mxu0 %v4411
      %4669 = vmatprep.subr.mxu0 0.0
      %4670 = vmatpush1.msra.mxu0 %v4412
      %4671 = vmatprep.subr.mxu0 0.0
      %4672 = vmatpush1.msra.mxu0 %v4413
      %4673 = vmatprep.subr.mxu0 0.0
      %4674 = vmatpush1.msra.mxu0 %v4414
      %4675 = vmatprep.subr.mxu0 0.0
      %4676 = vmatpush1.msra.mxu0 %v4415
      %4677 = vmatprep.subr.mxu0 0.0
      %4678 = vmatpush1.msra.mxu0 %v4416
      %4679 = vmatprep.subr.mxu0 0.0
      %4680 = vmatpush1.msra.mxu0 %v4417
      %4681 = vmatprep.subr.mxu0 0.0
      %4682 = vmatpush1.msra.mxu0 %v4418
      %4683 = vmatprep.subr.mxu0 0.0
      %4684 = vmatpush1.msra.mxu0 %v4419
      %4685 = vmatprep.subr.mxu0 0.0
      %4686 = vmatpush1.msra.mxu0 %v4420
      %4687 = vmatprep.subr.mxu0 0.0
      %4688 = vmatpush1.msra.mxu0 %v4421
      %4689 = vmatprep.subr.mxu0 0.0
      %4690 = vmatpush1.msra.mxu0 %v4422
      %4691 = vmatprep.subr.mxu0 0.0
      %4692 = vmatpush1.msra.mxu0 %v4423
      %4693 = vmatprep.subr.mxu0 0.0
      %4694 = vmatpush1.msra.mxu0 %v4424
      %4695 = vmatprep.subr.mxu0 0.0
      %4696 = vmatpush1.msra.mxu0 %v4425
      %4697 = vmatprep.subr.mxu0 0.0
      %4698 = vmatpush1.msra.mxu0 %v4426
      %4699 = vmatprep.subr.mxu0 0.0
      %4700 = vmatpush1.msra.mxu0 %v4427
      %4701 = vmatprep.subr.mxu0 0.0
      %4702 = vmatpush1.msra.mxu0 %v4428
      %4703 = vmatprep.subr.mxu0 0.0
      %4704 = vmatpush1.msra.mxu0 %v4429
      %4705 = vmatprep.subr.mxu0 0.0
      %4706 = vmatpush1.msra.mxu0 %v4430
      %4707 = vmatprep.subr.mxu0 0.0
      %4708 = vmatpush1.msra.mxu0 %v4431
      %4709 = vmatprep.subr.mxu0 0.0
      %4710 = vmatpush1.msra.mxu0 %v4432
      %4711 = vmatprep.subr.mxu0 0.0
      %4712 = vmatpush1.msra.mxu0 %v4433
      %4713 = vmatprep.subr.mxu0 0.0
      %4714 = vmatpush1.msra.mxu0 %v4434
      %4715 = vmatprep.mubr.f32.mxu0 %v4306
      %4716 = vmatmul.mubr.f32.gmra.mrb[0].mxu0 %v4305
      %v4717 = vpop.f32.mrb[0].mxu0
      %v4718 = vadd.f32 %v4648, %v4717
      %v4719 = vpop.f32.mrb[0].mxu0
      %4720 = vdwg.mxu0
      %v4722 = vrot.slane %v4718, 1
      %4723 = vrot.lane.b32.xlu0 %v4722, 9
      %v4724 = vpop.permute.xlu0 %4723
      %v4726 = vrot.slane %v4718, 2
      %4727 = vrot.lane.b32.xlu0 %v4726, 18
      %v4728 = vpop.permute.xlu0 %4727
      %v4730 = vrot.slane %v4718, 3
      %4731 = vrot.lane.b32.xlu0 %v4730, 27
      %v4732 = vpop.permute.xlu0 %4731
      %vm4734 = vcmask 72704
      %v4735 = vsel %vm4734, %v4718, %v4724
      %vm4736 = vcmask 146432
      %v4737 = vsel %vm4736, %v4735, %v4728
      %vm4738 = vcmask 220160
      %v4739 = vsel %vm4738, %v4737, %v4732
      %v4740 = vld [vmem:[%s10] sm:$0xff]
      %v4741 = vld [vmem:[%s10 + $0x8] sm:$0xff]
      %v4742 = vld [vmem:[%s10 + $0x10] sm:$0xff]
      %v4743 = vld [vmem:[%s10 + $0x18] sm:$0xff]
      %v4744 = vld [vmem:[%s10 + $0x20] sm:$0xf]
      %v4745 = vld [vmem:[%s11] sm:$0x1]
      %vm4746 = vcmask 293888
      %v4748 = vsel %vm4746, %v4739, 0
      %v4751 = vsel %vm867, %v4744, 0
      %4753 = vmatprep.subr.mxu0 0.0
      %4754 = vmatpush1.msra.mxu0 %v4740
      %4755 = vmatprep.subr.mxu0 0.0
      %4756 = vmatpush1.msra.mxu0 %v4741
      %4757 = vmatprep.subr.mxu0 0.0
      %4758 = vmatpush1.msra.mxu0 %v4742
      %4759 = vmatprep.subr.mxu0 0.0
      %4760 = vmatpush1.msra.mxu0 %v4743
      %4761 = vmatprep.subr.mxu0 0.0
      %4762 = vmatpush1.msra.mxu0 %v4751
      %4763 = vmatprep.subr.mxu0 0.0
      %4764 = vmatpush1.msra.mxu0 0.0
      %4765 = vmatprep.subr.mxu0 0.0
      %4766 = vmatpush1.msra.mxu0 0.0
      %4767 = vmatprep.subr.mxu0 0.0
      %4768 = vmatpush1.msra.mxu0 0.0
      %4769 = vmatprep.subr.mxu0 0.0
      %4770 = vmatpush1.msra.mxu0 0.0
      %4771 = vmatprep.subr.mxu0 0.0
      %4772 = vmatpush1.msra.mxu0 0.0
      %4773 = vmatprep.subr.mxu0 0.0
      %4774 = vmatpush1.msra.mxu0 0.0
      %4775 = vmatprep.subr.mxu0 0.0
      %4776 = vmatpush1.msra.mxu0 0.0
      %4777 = vmatprep.subr.mxu0 0.0
      %4778 = vmatpush1.msra.mxu0 0.0
      %4779 = vmatprep.subr.mxu0 0.0
      %4780 = vmatpush1.msra.mxu0 0.0
      %4781 = vmatprep.subr.mxu0 0.0
      %4782 = vmatpush1.msra.mxu0 0.0
      %4783 = vmatprep.subr.mxu0 0.0
      %4784 = vmatpush1.msra.mxu0 0.0
      %4785 = vmatprep.subr.mxu0 0.0
      %4786 = vmatpush1.msra.mxu0 0.0
      %4787 = vmatprep.subr.mxu0 0.0
      %4788 = vmatpush1.msra.mxu0 0.0
      %4789 = vmatprep.subr.mxu0 0.0
      %4790 = vmatpush1.msra.mxu0 0.0
      %4791 = vmatprep.subr.mxu0 0.0
      %4792 = vmatpush1.msra.mxu0 0.0
      %4793 = vmatprep.subr.mxu0 0.0
      %4794 = vmatpush1.msra.mxu0 0.0
      %4795 = vmatprep.subr.mxu0 0.0
      %4796 = vmatpush1.msra.mxu0 0.0
      %4797 = vmatprep.subr.mxu0 0.0
      %4798 = vmatpush1.msra.mxu0 0.0
      %4799 = vmatprep.subr.mxu0 0.0
      %4800 = vmatpush1.msra.mxu0 0.0
      %4801 = vmatprep.subr.mxu0 0.0
      %4802 = vmatpush1.msra.mxu0 0.0
      %4803 = vmatprep.subr.mxu0 0.0
      %4804 = vmatpush1.msra.mxu0 0.0
      %4805 = vmatprep.subr.mxu0 0.0
      %4806 = vmatpush1.msra.mxu0 0.0
      %4807 = vmatprep.subr.mxu0 0.0
      %4808 = vmatpush1.msra.mxu0 0.0
      %4809 = vmatprep.subr.mxu0 0.0
      %4810 = vmatpush1.msra.mxu0 0.0
      %4811 = vmatprep.subr.mxu0 0.0
      %4812 = vmatpush1.msra.mxu0 0.0
      %4813 = vmatprep.subr.mxu0 0.0
      %4814 = vmatpush1.msra.mxu0 0.0
      %4815 = vmatprep.subr.mxu0 0.0
      %4816 = vmatpush1.msra.mxu0 0.0
      %4817 = vmatprep.mubr.f32.mxu0 0.0
      %4818 = vmatmul.mubr.f32.gmra.mrb[0].mxu0 %v4748
      %v4819 = vpop.f32.mrb[0].mxu0
      %v4820 = vadd.f32 %v4745, %v4819
      %v4821 = vpop.f32.mrb[0].mxu0
      %4822 = vdwg.mxu0
      %v4823 = vmax.f32 %v4820, 0.0
      %v4824 = vld [vmem:[%s12] sm:$0xff]
      %v4825 = vld [vmem:[%s12 + $0x8] sm:$0xff]
      %v4826 = vld [vmem:[%s12 + $0x10] sm:$0xff]
      %v4827 = vld [vmem:[%s12 + $0x18] sm:$0xff]
      %v4828 = vld [vmem:[%s12 + $0x20] sm:$0xf]
      %v4829 = vld [vmem:[%s13] sm:$0x1]
      %v4831 = vsel %vm4746, %v4823, 0
      %v4834 = vsel %vm867, %v4828, 0
      %4836 = vmatprep.subr.mxu0 0.0
      %4837 = vmatpush1.msra.mxu0 %v4824
      %4838 = vmatprep.subr.mxu0 0.0
      %4839 = vmatpush1.msra.mxu0 %v4825
      %4840 = vmatprep.subr.mxu0 0.0
      %4841 = vmatpush1.msra.mxu0 %v4826
      %4842 = vmatprep.subr.mxu0 0.0
      %4843 = vmatpush1.msra.mxu0 %v4827
      %4844 = vmatprep.subr.mxu0 0.0
      %4845 = vmatpush1.msra.mxu0 %v4834
      %4846 = vmatprep.subr.mxu0 0.0
      %4847 = vmatpush1.msra.mxu0 0.0
      %4848 = vmatprep.subr.mxu0 0.0
      %4849 = vmatpush1.msra.mxu0 0.0
      %4850 = vmatprep.subr.mxu0 0.0
      %4851 = vmatpush1.msra.mxu0 0.0
      %4852 = vmatprep.subr.mxu0 0.0
      %4853 = vmatpush1.msra.mxu0 0.0
      %4854 = vmatprep.subr.mxu0 0.0
      %4855 = vmatpush1.msra.mxu0 0.0
      %4856 = vmatprep.subr.mxu0 0.0
      %4857 = vmatpush1.msra.mxu0 0.0
      %4858 = vmatprep.subr.mxu0 0.0
      %4859 = vmatpush1.msra.mxu0 0.0
      %4860 = vmatprep.subr.mxu0 0.0
      %4861 = vmatpush1.msra.mxu0 0.0
      %4862 = vmatprep.subr.mxu0 0.0
      %4863 = vmatpush1.msra.mxu0 0.0
      %4864 = vmatprep.subr.mxu0 0.0
      %4865 = vmatpush1.msra.mxu0 0.0
      %4866 = vmatprep.subr.mxu0 0.0
      %4867 = vmatpush1.msra.mxu0 0.0
      %4868 = vmatprep.subr.mxu0 0.0
      %4869 = vmatpush1.msra.mxu0 0.0
      %4870 = vmatprep.subr.mxu0 0.0
      %4871 = vmatpush1.msra.mxu0 0.0
      %4872 = vmatprep.subr.mxu0 0.0
      %4873 = vmatpush1.msra.mxu0 0.0
      %4874 = vmatprep.subr.mxu0 0.0
      %4875 = vmatpush1.msra.mxu0 0.0
      %4876 = vmatprep.subr.mxu0 0.0
      %4877 = vmatpush1.msra.mxu0 0.0
      %4878 = vmatprep.subr.mxu0 0.0
      %4879 = vmatpush1.msra.mxu0 0.0
      %4880 = vmatprep.subr.mxu0 0.0
      %4881 = vmatpush1.msra.mxu0 0.0
      %4882 = vmatprep.subr.mxu0 0.0
      %4883 = vmatpush1.msra.mxu0 0.0
      %4884 = vmatprep.subr.mxu0 0.0
      %4885 = vmatpush1.msra.mxu0 0.0
      %4886 = vmatprep.subr.mxu0 0.0
      %4887 = vmatpush1.msra.mxu0 0.0
      %4888 = vmatprep.subr.mxu0 0.0
      %4889 = vmatpush1.msra.mxu0 0.0
      %4890 = vmatprep.subr.mxu0 0.0
      %4891 = vmatpush1.msra.mxu0 0.0
      %4892 = vmatprep.subr.mxu0 0.0
      %4893 = vmatpush1.msra.mxu0 0.0
      %4894 = vmatprep.subr.mxu0 0.0
      %4895 = vmatpush1.msra.mxu0 0.0
      %4896 = vmatprep.subr.mxu0 0.0
      %4897 = vmatpush1.msra.mxu0 0.0
      %4898 = vmatprep.subr.mxu0 0.0
      %4899 = vmatpush1.msra.mxu0 0.0
      %4900 = vmatprep.mubr.f32.mxu0 0.0
      %4901 = vmatmul.mubr.f32.gmra.mrb[0].mxu0 %v4831
      %v4902 = vpop.f32.mrb[0].mxu0
      %v4903 = vadd.f32 %v4829, %v4902
      %v4904 = vpop.f32.mrb[0].mxu0
      %4905 = vdwg.mxu0
      %v4906 = vmax.f32 %v4903, 0.0
      %v4907 = vld [vmem:[%s14] sm:$0xff]
      %v4908 = vld [vmem:[%s14 + $0x8] sm:$0xff]
      %v4909 = vld [vmem:[%s14 + $0x10] sm:$0xff]
      %v4910 = vld [vmem:[%s14 + $0x18] sm:$0xff]
      %v4911 = vld [vmem:[%s14 + $0x20] sm:$0xf]
      %v4912 = vld [vmem:[%s15] sm:$0x1]
      %v4914 = vsel %vm4746, %v4906, 0
      %v4917 = vsel %vm867, %v4911, 0
      %4919 = vmatprep.subr.mxu0 0.0
      %4920 = vmatpush1.msra.mxu0 %v4907
      %4921 = vmatprep.subr.mxu0 0.0
      %4922 = vmatpush1.msra.mxu0 %v4908
      %4923 = vmatprep.subr.mxu0 0.0
      %4924 = vmatpush1.msra.mxu0 %v4909
      %4925 = vmatprep.subr.mxu0 0.0
      %4926 = vmatpush1.msra.mxu0 %v4910
      %4927 = vmatprep.subr.mxu0 0.0
      %4928 = vmatpush1.msra.mxu0 %v4917
      %4929 = vmatprep.subr.mxu0 0.0
      %4930 = vmatpush1.msra.mxu0 0.0
      %4931 = vmatprep.subr.mxu0 0.0
      %4932 = vmatpush1.msra.mxu0 0.0
      %4933 = vmatprep.subr.mxu0 0.0
      %4934 = vmatpush1.msra.mxu0 0.0
      %4935 = vmatprep.subr.mxu0 0.0
      %4936 = vmatpush1.msra.mxu0 0.0
      %4937 = vmatprep.subr.mxu0 0.0
      %4938 = vmatpush1.msra.mxu0 0.0
      %4939 = vmatprep.subr.mxu0 0.0
      %4940 = vmatpush1.msra.mxu0 0.0
      %4941 = vmatprep.subr.mxu0 0.0
      %4942 = vmatpush1.msra.mxu0 0.0
      %4943 = vmatprep.subr.mxu0 0.0
      %4944 = vmatpush1.msra.mxu0 0.0
      %4945 = vmatprep.subr.mxu0 0.0
      %4946 = vmatpush1.msra.mxu0 0.0
      %4947 = vmatprep.subr.mxu0 0.0
      %4948 = vmatpush1.msra.mxu0 0.0
      %4949 = vmatprep.subr.mxu0 0.0
      %4950 = vmatpush1.msra.mxu0 0.0
      %4951 = vmatprep.subr.mxu0 0.0
      %4952 = vmatpush1.msra.mxu0 0.0
      %4953 = vmatprep.subr.mxu0 0.0
      %4954 = vmatpush1.msra.mxu0 0.0
      %4955 = vmatprep.subr.mxu0 0.0
      %4956 = vmatpush1.msra.mxu0 0.0
      %4957 = vmatprep.subr.mxu0 0.0
      %4958 = vmatpush1.msra.mxu0 0.0
      %4959 = vmatprep.subr.mxu0 0.0
      %4960 = vmatpush1.msra.mxu0 0.0
      %4961 = vmatprep.subr.mxu0 0.0
      %4962 = vmatpush1.msra.mxu0 0.0
      %4963 = vmatprep.subr.mxu0 0.0
      %4964 = vmatpush1.msra.mxu0 0.0
      %4965 = vmatprep.subr.mxu0 0.0
      %4966 = vmatpush1.msra.mxu0 0.0
      %4967 = vmatprep.subr.mxu0 0.0
      %4968 = vmatpush1.msra.mxu0 0.0
      %4969 = vmatprep.subr.mxu0 0.0
      %4970 = vmatpush1.msra.mxu0 0.0
      %4971 = vmatprep.subr.mxu0 0.0
      %4972 = vmatpush1.msra.mxu0 0.0
      %4973 = vmatprep.subr.mxu0 0.0
      %4974 = vmatpush1.msra.mxu0 0.0
      %4975 = vmatprep.subr.mxu0 0.0
      %4976 = vmatpush1.msra.mxu0 0.0
      %4977 = vmatprep.subr.mxu0 0.0
      %4978 = vmatpush1.msra.mxu0 0.0
      %4979 = vmatprep.subr.mxu0 0.0
      %4980 = vmatpush1.msra.mxu0 0.0
      %4981 = vmatprep.subr.mxu0 0.0
      %4982 = vmatpush1.msra.mxu0 0.0
      %4983 = vmatprep.mubr.f32.mxu0 0.0
      %4984 = vmatmul.mubr.f32.gmra.mrb[0].mxu0 %v4914
      %v4985 = vpop.f32.mrb[0].mxu0
      %v4986 = vadd.f32 %v4912, %v4985
      %v4987 = vpop.f32.mrb[0].mxu0
      %4988 = vdwg.mxu0
      %v4990 = vrot.slane %v4986, 7
      %4991 = vrot.lane.b32.xlu0 %v4990, 119
      %v4992 = vpop.permute.xlu0 %4991
      %v4994 = vrot.slane %v4986, 6
      %4995 = vrot.lane.b32.xlu0 %v4994, 110
      %v4996 = vpop.permute.xlu0 %4995
      %v4998 = vrot.slane %v4986, 5
      %4999 = vrot.lane.b32.xlu0 %v4998, 101
      %v5000 = vpop.permute.xlu0 %4999
      %vm5002 = vcmask 1040384
      %v5003 = vsel %vm5002, %v4986, %v4992
      %vm5004 = vcmask 1041408
      %v5005 = vsel %vm5004, %v5003, %v4996
      %vm5006 = vcmask 1042432
      %v5007 = vsel %vm5006, %v5005, %v5000
      %v5008 = vld [vmem:[%s16] sm:$0xff]
      %v5009 = vld [vmem:[%s16 + $0x8] sm:$0xff]
      %v5010 = vld [vmem:[%s16 + $0x10] sm:$0xff]
      %v5011 = vld [vmem:[%s16 + $0x18] sm:$0xff]
      %v5012 = vld [vmem:[%s16 + $0x20] sm:$0xff]
      %v5013 = vld [vmem:[%s16 + $0x28] sm:$0xff]
      %v5014 = vld [vmem:[%s16 + $0x30] sm:$0xff]
      %v5015 = vld [vmem:[%s16 + $0x38] sm:$0xff]
      %v5016 = vld [vmem:[%s16 + $0x40] sm:$0x1]
      %v5017 = vld [vmem:[%s16 + $0x48] sm:$0x1]
      %v5018 = vld [vmem:[%s16 + $0x50] sm:$0x1]
      %v5019 = vld [vmem:[%s16 + $0x58] sm:$0x1]
      %v5020 = vld [vmem:[%s16 + $0x60] sm:$0x1]
      %v5021 = vld [vmem:[%s16 + $0x68] sm:$0x1]
      %v5022 = vld [vmem:[%s16 + $0x70] sm:$0x1]
      %v5023 = vld [vmem:[%s16 + $0x78] sm:$0x1]
      %v5024 = vld [vmem:[%s5] sm:$0xff]
      %v5025 = vld [vmem:[%s5 + $0x8] sm:$0xff]
      %v5027 = vsel %vm4734, %v5007, 0
      %v5030 = vsel %vm5002, %v5016, 0
      %v5033 = vsel %vm5002, %v5017, 0
      %v5036 = vsel %vm5002, %v5018, 0
      %v5039 = vsel %vm5002, %v5019, 0
      %v5042 = vsel %vm5002, %v5020, 0
      %v5045 = vsel %vm5002, %v5021, 0
      %v5048 = vsel %vm5002, %v5022, 0
      %v5051 = vsel %vm5002, %v5023, 0
      %5053 = vmatprep.subr.mxu0 %v5009
      %5054 = vmatpush1.msra.mxu0 %v5008
      %5055 = vmatprep.subr.mxu0 %v5033
      %5056 = vmatpush1.msra.mxu0 %v5030
      %5057 = vmatprep.subr.mxu0 0.0
      %5058 = vmatpush1.msra.mxu0 0.0
      %5059 = vmatprep.subr.mxu0 0.0
      %5060 = vmatpush1.msra.mxu0 0.0
      %5061 = vmatprep.subr.mxu0 0.0
      %5062 = vmatpush1.msra.mxu0 0.0
      %5063 = vmatprep.subr.mxu0 0.0
      %5064 = vmatpush1.msra.mxu0 0.0
      %5065 = vmatprep.subr.mxu0 0.0
      %5066 = vmatpush1.msra.mxu0 0.0
      %5067 = vmatprep.subr.mxu0 0.0
      %5068 = vmatpush1.msra.mxu0 0.0
      %5069 = vmatprep.subr.mxu0 0.0
      %5070 = vmatpush1.msra.mxu0 0.0
      %5071 = vmatprep.subr.mxu0 0.0
      %5072 = vmatpush1.msra.mxu0 0.0
      %5073 = vmatprep.subr.mxu0 0.0
      %5074 = vmatpush1.msra.mxu0 0.0
      %5075 = vmatprep.subr.mxu0 0.0
      %5076 = vmatpush1.msra.mxu0 0.0
      %5077 = vmatprep.subr.mxu0 0.0
      %5078 = vmatpush1.msra.mxu0 0.0
      %5079 = vmatprep.subr.mxu0 0.0
      %5080 = vmatpush1.msra.mxu0 0.0
      %5081 = vmatprep.subr.mxu0 0.0
      %5082 = vmatpush1.msra.mxu0 0.0
      %5083 = vmatprep.subr.mxu0 0.0
      %5084 = vmatpush1.msra.mxu0 0.0
      %5085 = vmatprep.subr.mxu0 0.0
      %5086 = vmatpush1.msra.mxu0 0.0
      %5087 = vmatprep.subr.mxu0 0.0
      %5088 = vmatpush1.msra.mxu0 0.0
      %5089 = vmatprep.subr.mxu0 0.0
      %5090 = vmatpush1.msra.mxu0 0.0
      %5091 = vmatprep.subr.mxu0 0.0
      %5092 = vmatpush1.msra.mxu0 0.0
      %5093 = vmatprep.subr.mxu0 0.0
      %5094 = vmatpush1.msra.mxu0 0.0
      %5095 = vmatprep.subr.mxu0 0.0
      %5096 = vmatpush1.msra.mxu0 0.0
      %5097 = vmatprep.subr.mxu0 0.0
      %5098 = vmatpush1.msra.mxu0 0.0
      %5099 = vmatprep.subr.mxu0 0.0
      %5100 = vmatpush1.msra.mxu0 0.0
      %5101 = vmatprep.subr.mxu0 0.0
      %5102 = vmatpush1.msra.mxu0 0.0
      %5103 = vmatprep.subr.mxu0 0.0
      %5104 = vmatpush1.msra.mxu0 0.0
      %5105 = vmatprep.subr.mxu0 0.0
      %5106 = vmatpush1.msra.mxu0 0.0
      %5107 = vmatprep.subr.mxu0 0.0
      %5108 = vmatpush1.msra.mxu0 0.0
      %5109 = vmatprep.subr.mxu0 0.0
      %5110 = vmatpush1.msra.mxu0 0.0
      %5111 = vmatprep.subr.mxu0 0.0
      %5112 = vmatpush1.msra.mxu0 0.0
      %5113 = vmatprep.subr.mxu0 0.0
      %5114 = vmatpush1.msra.mxu0 0.0
      %5115 = vmatprep.subr.mxu0 0.0
      %5116 = vmatpush1.msra.mxu0 0.0
      %5117 = vmatprep.mubr.f32.mxu0 0.0
      %5118 = vmatmul.mubr.f32.gmra.mrb[0].mxu0 %v5027
      %v5119 = vpop.f32.mrb[0].mxu0
      %v5120 = vadd.f32 %v3821, %v5119
      %v5121 = vpop.f32.mrb[0].mxu0
      %v5122 = vadd.f32 %v3823, %v5121
      %5123 = vdwg.mxu0
      %5124 = vmatprep.subr.mxu0 %v5011
      %5125 = vmatpush1.msra.mxu0 %v5010
      %5126 = vmatprep.subr.mxu0 %v5039
      %5127 = vmatpush1.msra.mxu0 %v5036
      %5128 = vmatprep.subr.mxu0 0.0
      %5129 = vmatpush1.msra.mxu0 0.0
      %5130 = vmatprep.subr.mxu0 0.0
      %5131 = vmatpush1.msra.mxu0 0.0
      %5132 = vmatprep.subr.mxu0 0.0
      %5133 = vmatpush1.msra.mxu0 0.0
      %5134 = vmatprep.subr.mxu0 0.0
      %5135 = vmatpush1.msra.mxu0 0.0
      %5136 = vmatprep.subr.mxu0 0.0
      %5137 = vmatpush1.msra.mxu0 0.0
      %5138 = vmatprep.subr.mxu0 0.0
      %5139 = vmatpush1.msra.mxu0 0.0
      %5140 = vmatprep.subr.mxu0 0.0
      %5141 = vmatpush1.msra.mxu0 0.0
      %5142 = vmatprep.subr.mxu0 0.0
      %5143 = vmatpush1.msra.mxu0 0.0
      %5144 = vmatprep.subr.mxu0 0.0
      %5145 = vmatpush1.msra.mxu0 0.0
      %5146 = vmatprep.subr.mxu0 0.0
      %5147 = vmatpush1.msra.mxu0 0.0
      %5148 = vmatprep.subr.mxu0 0.0
      %5149 = vmatpush1.msra.mxu0 0.0
      %5150 = vmatprep.subr.mxu0 0.0
      %5151 = vmatpush1.msra.mxu0 0.0
      %5152 = vmatprep.subr.mxu0 0.0
      %5153 = vmatpush1.msra.mxu0 0.0
      %5154 = vmatprep.subr.mxu0 0.0
      %5155 = vmatpush1.msra.mxu0 0.0
      %5156 = vmatprep.subr.mxu0 0.0
      %5157 = vmatpush1.msra.mxu0 0.0
      %5158 = vmatprep.subr.mxu0 0.0
      %5159 = vmatpush1.msra.mxu0 0.0
      %5160 = vmatprep.subr.mxu0 0.0
      %5161 = vmatpush1.msra.mxu0 0.0
      %5162 = vmatprep.subr.mxu0 0.0
      %5163 = vmatpush1.msra.mxu0 0.0
      %5164 = vmatprep.subr.mxu0 0.0
      %5165 = vmatpush1.msra.mxu0 0.0
      %5166 = vmatprep.subr.mxu0 0.0
      %5167 = vmatpush1.msra.mxu0 0.0
      %5168 = vmatprep.subr.mxu0 0.0
      %5169 = vmatpush1.msra.mxu0 0.0
      %5170 = vmatprep.subr.mxu0 0.0
      %5171 = vmatpush1.msra.mxu0 0.0
      %5172 = vmatprep.subr.mxu0 0.0
      %5173 = vmatpush1.msra.mxu0 0.0
      %5174 = vmatprep.subr.mxu0 0.0
      %5175 = vmatpush1.msra.mxu0 0.0
      %5176 = vmatprep.subr.mxu0 0.0
      %5177 = vmatpush1.msra.mxu0 0.0
      %5178 = vmatprep.subr.mxu0 0.0
      %5179 = vmatpush1.msra.mxu0 0.0
      %5180 = vmatprep.subr.mxu0 0.0
      %5181 = vmatpush1.msra.mxu0 0.0
      %5182 = vmatprep.subr.mxu0 0.0
      %5183 = vmatpush1.msra.mxu0 0.0
      %5184 = vmatprep.subr.mxu0 0.0
      %5185 = vmatpush1.msra.mxu0 0.0
      %5186 = vmatprep.subr.mxu0 0.0
      %5187 = vmatpush1.msra.mxu0 0.0
      %5188 = vmatprep.mubr.f32.mxu0 0.0
      %5189 = vmatmul.mubr.f32.gmra.mrb[0].mxu0 %v5027
      %v5190 = vpop.f32.mrb[0].mxu0
      %v5191 = vadd.f32 %v3892, %v5190
      %v5192 = vpop.f32.mrb[0].mxu0
      %v5193 = vadd.f32 %v3894, %v5192
      %5194 = vdwg.mxu0
      %5195 = vmatprep.subr.mxu0 %v5013
      %5196 = vmatpush1.msra.mxu0 %v5012
      %5197 = vmatprep.subr.mxu0 %v5045
      %5198 = vmatpush1.msra.mxu0 %v5042
      %5199 = vmatprep.subr.mxu0 0.0
      %5200 = vmatpush1.msra.mxu0 0.0
      %5201 = vmatprep.subr.mxu0 0.0
      %5202 = vmatpush1.msra.mxu0 0.0
      %5203 = vmatprep.subr.mxu0 0.0
      %5204 = vmatpush1.msra.mxu0 0.0
      %5205 = vmatprep.subr.mxu0 0.0
      %5206 = vmatpush1.msra.mxu0 0.0
      %5207 = vmatprep.subr.mxu0 0.0
      %5208 = vmatpush1.msra.mxu0 0.0
      %5209 = vmatprep.subr.mxu0 0.0
      %5210 = vmatpush1.msra.mxu0 0.0
      %5211 = vmatprep.subr.mxu0 0.0
      %5212 = vmatpush1.msra.mxu0 0.0
      %5213 = vmatprep.subr.mxu0 0.0
      %5214 = vmatpush1.msra.mxu0 0.0
      %5215 = vmatprep.subr.mxu0 0.0
      %5216 = vmatpush1.msra.mxu0 0.0
      %5217 = vmatprep.subr.mxu0 0.0
      %5218 = vmatpush1.msra.mxu0 0.0
      %5219 = vmatprep.subr.mxu0 0.0
      %5220 = vmatpush1.msra.mxu0 0.0
      %5221 = vmatprep.subr.mxu0 0.0
      %5222 = vmatpush1.msra.mxu0 0.0
      %5223 = vmatprep.subr.mxu0 0.0
      %5224 = vmatpush1.msra.mxu0 0.0
      %5225 = vmatprep.subr.mxu0 0.0
      %5226 = vmatpush1.msra.mxu0 0.0
      %5227 = vmatprep.subr.mxu0 0.0
      %5228 = vmatpush1.msra.mxu0 0.0
      %5229 = vmatprep.subr.mxu0 0.0
      %5230 = vmatpush1.msra.mxu0 0.0
      %5231 = vmatprep.subr.mxu0 0.0
      %5232 = vmatpush1.msra.mxu0 0.0
      %5233 = vmatprep.subr.mxu0 0.0
      %5234 = vmatpush1.msra.mxu0 0.0
      %5235 = vmatprep.subr.mxu0 0.0
      %5236 = vmatpush1.msra.mxu0 0.0
      %5237 = vmatprep.subr.mxu0 0.0
      %5238 = vmatpush1.msra.mxu0 0.0
      %5239 = vmatprep.subr.mxu0 0.0
      %5240 = vmatpush1.msra.mxu0 0.0
      %5241 = vmatprep.subr.mxu0 0.0
      %5242 = vmatpush1.msra.mxu0 0.0
      %5243 = vmatprep.subr.mxu0 0.0
      %5244 = vmatpush1.msra.mxu0 0.0
      %5245 = vmatprep.subr.mxu0 0.0
      %5246 = vmatpush1.msra.mxu0 0.0
      %5247 = vmatprep.subr.mxu0 0.0
      %5248 = vmatpush1.msra.mxu0 0.0
      %5249 = vmatprep.subr.mxu0 0.0
      %5250 = vmatpush1.msra.mxu0 0.0
      %5251 = vmatprep.subr.mxu0 0.0
      %5252 = vmatpush1.msra.mxu0 0.0
      %5253 = vmatprep.subr.mxu0 0.0
      %5254 = vmatpush1.msra.mxu0 0.0
      %5255 = vmatprep.subr.mxu0 0.0
      %5256 = vmatpush1.msra.mxu0 0.0
      %5257 = vmatprep.subr.mxu0 0.0
      %5258 = vmatpush1.msra.mxu0 0.0
      %5259 = vmatprep.mubr.f32.mxu0 0.0
      %5260 = vmatmul.mubr.f32.gmra.mrb[0].mxu0 %v5027
      %v5261 = vpop.f32.mrb[0].mxu0
      %v5262 = vadd.f32 %v3963, %v5261
      %v5263 = vpop.f32.mrb[0].mxu0
      %v5264 = vadd.f32 %v3965, %v5263
      %5265 = vdwg.mxu0
      %5266 = vmatprep.subr.mxu0 %v5015
      %5267 = vmatpush1.msra.mxu0 %v5014
      %5268 = vmatprep.subr.mxu0 %v5051
      %5269 = vmatpush1.msra.mxu0 %v5048
      %5270 = vmatprep.subr.mxu0 0.0
      %5271 = vmatpush1.msra.mxu0 0.0
      %5272 = vmatprep.subr.mxu0 0.0
      %5273 = vmatpush1.msra.mxu0 0.0
      %5274 = vmatprep.subr.mxu0 0.0
      %5275 = vmatpush1.msra.mxu0 0.0
      %5276 = vmatprep.subr.mxu0 0.0
      %5277 = vmatpush1.msra.mxu0 0.0
      %5278 = vmatprep.subr.mxu0 0.0
      %5279 = vmatpush1.msra.mxu0 0.0
      %5280 = vmatprep.subr.mxu0 0.0
      %5281 = vmatpush1.msra.mxu0 0.0
      %5282 = vmatprep.subr.mxu0 0.0
      %5283 = vmatpush1.msra.mxu0 0.0
      %5284 = vmatprep.subr.mxu0 0.0
      %5285 = vmatpush1.msra.mxu0 0.0
      %5286 = vmatprep.subr.mxu0 0.0
      %5287 = vmatpush1.msra.mxu0 0.0
      %5288 = vmatprep.subr.mxu0 0.0
      %5289 = vmatpush1.msra.mxu0 0.0
      %5290 = vmatprep.subr.mxu0 0.0
      %5291 = vmatpush1.msra.mxu0 0.0
      %5292 = vmatprep.subr.mxu0 0.0
      %5293 = vmatpush1.msra.mxu0 0.0
      %5294 = vmatprep.subr.mxu0 0.0
      %5295 = vmatpush1.msra.mxu0 0.0
      %5296 = vmatprep.subr.mxu0 0.0
      %5297 = vmatpush1.msra.mxu0 0.0
      %5298 = vmatprep.subr.mxu0 0.0
      %5299 = vmatpush1.msra.mxu0 0.0
      %5300 = vmatprep.subr.mxu0 0.0
      %5301 = vmatpush1.msra.mxu0 0.0
      %5302 = vmatprep.subr.mxu0 0.0
      %5303 = vmatpush1.msra.mxu0 0.0
      %5304 = vmatprep.subr.mxu0 0.0
      %5305 = vmatpush1.msra.mxu0 0.0
      %5306 = vmatprep.subr.mxu0 0.0
      %5307 = vmatpush1.msra.mxu0 0.0
      %5308 = vmatprep.subr.mxu0 0.0
      %5309 = vmatpush1.msra.mxu0 0.0
      %5310 = vmatprep.subr.mxu0 0.0
      %5311 = vmatpush1.msra.mxu0 0.0
      %5312 = vmatprep.subr.mxu0 0.0
      %5313 = vmatpush1.msra.mxu0 0.0
      %5314 = vmatprep.subr.mxu0 0.0
      %5315 = vmatpush1.msra.mxu0 0.0
      %5316 = vmatprep.subr.mxu0 0.0
      %5317 = vmatpush1.msra.mxu0 0.0
      %5318 = vmatprep.subr.mxu0 0.0
      %5319 = vmatpush1.msra.mxu0 0.0
      %5320 = vmatprep.subr.mxu0 0.0
      %5321 = vmatpush1.msra.mxu0 0.0
      %5322 = vmatprep.subr.mxu0 0.0
      %5323 = vmatpush1.msra.mxu0 0.0
      %5324 = vmatprep.subr.mxu0 0.0
      %5325 = vmatpush1.msra.mxu0 0.0
      %5326 = vmatprep.subr.mxu0 0.0
      %5327 = vmatpush1.msra.mxu0 0.0
      %5328 = vmatprep.subr.mxu0 0.0
      %5329 = vmatpush1.msra.mxu0 0.0
      %5330 = vmatprep.mubr.f32.mxu0 0.0
      %5331 = vmatmul.mubr.f32.gmra.mrb[0].mxu0 %v5027
      %v5332 = vpop.f32.mrb[0].mxu0
      %v5333 = vadd.f32 %v4034, %v5332
      %v5334 = vpop.f32.mrb[0].mxu0
      %v5335 = vadd.f32 %v4036, %v5334
      %5336 = vdwg.mxu0
      %v5337 = vld [vmem:[%s6] sm:$0xff]
      %v5338 = vld [vmem:[%s6 + $0x8] sm:$0xff]
      %5340 = vset.pattern.permute.xlu0 0
      %5341 = vperm.xlu0 %5340, %v5337
      %v5342 = vpop.permute.xlu0 %5341
      %5345 = vset.pattern.permute.xlu0 0
      %5346 = vperm.xlu0 %5345, %v5338
      %v5347 = vpop.permute.xlu0 %5346
      %v5350 = vsel %vm863, %v5024, 0
      %v5353 = vsel %vm863, %v5025, 0
      %v5356 = vsel %vm867, %v5120, 0
      %v5359 = vsel %vm867, %v5122, 0
      %v5362 = vsel %vm867, %v5191, 0
      %v5365 = vsel %vm867, %v5193, 0
      %v5368 = vsel %vm867, %v5262, 0
      %v5371 = vsel %vm867, %v5264, 0
      %v5374 = vsel %vm867, %v5333, 0
      %v5377 = vsel %vm867, %v5335, 0
      %5379 = vmatprep.subr.mxu0 %v5359
      %5380 = vmatpush1.msra.mxu0 %v5356
      %5381 = vmatprep.subr.mxu0 0.0
      %5382 = vmatpush1.msra.mxu0 0.0
      %5383 = vmatprep.subr.mxu0 0.0
      %5384 = vmatpush1.msra.mxu0 0.0
      %5385 = vmatprep.subr.mxu0 0.0
      %5386 = vmatpush1.msra.mxu0 0.0
      %5387 = vmatprep.subr.mxu0 0.0
      %5388 = vmatpush1.msra.mxu0 0.0
      %5389 = vmatprep.subr.mxu0 0.0
      %5390 = vmatpush1.msra.mxu0 0.0
      %5391 = vmatprep.subr.mxu0 0.0
      %5392 = vmatpush1.msra.mxu0 0.0
      %5393 = vmatprep.subr.mxu0 0.0
      %5394 = vmatpush1.msra.mxu0 0.0
      %5395 = vmatprep.subr.mxu0 0.0
      %5396 = vmatpush1.msra.mxu0 0.0
      %5397 = vmatprep.subr.mxu0 0.0
      %5398 = vmatpush1.msra.mxu0 0.0
      %5399 = vmatprep.subr.mxu0 0.0
      %5400 = vmatpush1.msra.mxu0 0.0
      %5401 = vmatprep.subr.mxu0 0.0
      %5402 = vmatpush1.msra.mxu0 0.0
      %5403 = vmatprep.subr.mxu0 0.0
      %5404 = vmatpush1.msra.mxu0 0.0
      %5405 = vmatprep.subr.mxu0 0.0
      %5406 = vmatpush1.msra.mxu0 0.0
      %5407 = vmatprep.subr.mxu0 0.0
      %5408 = vmatpush1.msra.mxu0 0.0
      %5409 = vmatprep.subr.mxu0 0.0
      %5410 = vmatpush1.msra.mxu0 0.0
      %5411 = vmatprep.subr.mxu0 0.0
      %5412 = vmatpush1.msra.mxu0 0.0
      %5413 = vmatprep.subr.mxu0 0.0
      %5414 = vmatpush1.msra.mxu0 0.0
      %5415 = vmatprep.subr.mxu0 0.0
      %5416 = vmatpush1.msra.mxu0 0.0
      %5417 = vmatprep.subr.mxu0 0.0
      %5418 = vmatpush1.msra.mxu0 0.0
      %5419 = vmatprep.subr.mxu0 0.0
      %5420 = vmatpush1.msra.mxu0 0.0
      %5421 = vmatprep.subr.mxu0 0.0
      %5422 = vmatpush1.msra.mxu0 0.0
      %5423 = vmatprep.subr.mxu0 0.0
      %5424 = vmatpush1.msra.mxu0 0.0
      %5425 = vmatprep.subr.mxu0 0.0
      %5426 = vmatpush1.msra.mxu0 0.0
      %5427 = vmatprep.subr.mxu0 0.0
      %5428 = vmatpush1.msra.mxu0 0.0
      %5429 = vmatprep.subr.mxu0 0.0
      %5430 = vmatpush1.msra.mxu0 0.0
      %5431 = vmatprep.subr.mxu0 0.0
      %5432 = vmatpush1.msra.mxu0 0.0
      %5433 = vmatprep.subr.mxu0 0.0
      %5434 = vmatpush1.msra.mxu0 0.0
      %5435 = vmatprep.subr.mxu0 0.0
      %5436 = vmatpush1.msra.mxu0 0.0
      %5437 = vmatprep.subr.mxu0 0.0
      %5438 = vmatpush1.msra.mxu0 0.0
      %5439 = vmatprep.subr.mxu0 0.0
      %5440 = vmatpush1.msra.mxu0 0.0
      %5441 = vmatprep.subr.mxu0 0.0
      %5442 = vmatpush1.msra.mxu0 0.0
      %5443 = vmatprep.mubr.f32.mxu0 0.0
      %5444 = vmatmul.mubr.f32.gmra.mrb[0].mxu0 %v5350
      %v5445 = vpop.f32.mrb[0].mxu0
      %v5446 = vadd.f32 %v5342, %v5445
      %v5447 = vpop.f32.mrb[0].mxu0
      %v5448 = vadd.f32 %v5342, %v5447
      %5449 = vmatprep.mubr.f32.mxu0 0.0
      %5450 = vmatmul.mubr.f32.gmra.mrb[0].mxu0 %v5353
      %v5451 = vpop.f32.mrb[0].mxu0
      %v5452 = vadd.f32 %v5347, %v5451
      %v5453 = vpop.f32.mrb[0].mxu0
      %v5454 = vadd.f32 %v5347, %v5453
      %5455 = vdwg.mxu0
      %5456 = vmatprep.subr.mxu0 %v5365
      %5457 = vmatpush1.msra.mxu0 %v5362
      %5458 = vmatprep.subr.mxu0 0.0
      %5459 = vmatpush1.msra.mxu0 0.0
      %5460 = vmatprep.subr.mxu0 0.0
      %5461 = vmatpush1.msra.mxu0 0.0
      %5462 = vmatprep.subr.mxu0 0.0
      %5463 = vmatpush1.msra.mxu0 0.0
      %5464 = vmatprep.subr.mxu0 0.0
      %5465 = vmatpush1.msra.mxu0 0.0
      %5466 = vmatprep.subr.mxu0 0.0
      %5467 = vmatpush1.msra.mxu0 0.0
      %5468 = vmatprep.subr.mxu0 0.0
      %5469 = vmatpush1.msra.mxu0 0.0
      %5470 = vmatprep.subr.mxu0 0.0
      %5471 = vmatpush1.msra.mxu0 0.0
      %5472 = vmatprep.subr.mxu0 0.0
      %5473 = vmatpush1.msra.mxu0 0.0
      %5474 = vmatprep.subr.mxu0 0.0
      %5475 = vmatpush1.msra.mxu0 0.0
      %5476 = vmatprep.subr.mxu0 0.0
      %5477 = vmatpush1.msra.mxu0 0.0
      %5478 = vmatprep.subr.mxu0 0.0
      %5479 = vmatpush1.msra.mxu0 0.0
      %5480 = vmatprep.subr.mxu0 0.0
      %5481 = vmatpush1.msra.mxu0 0.0
      %5482 = vmatprep.subr.mxu0 0.0
      %5483 = vmatpush1.msra.mxu0 0.0
      %5484 = vmatprep.subr.mxu0 0.0
      %5485 = vmatpush1.msra.mxu0 0.0
      %5486 = vmatprep.subr.mxu0 0.0
      %5487 = vmatpush1.msra.mxu0 0.0
      %5488 = vmatprep.subr.mxu0 0.0
      %5489 = vmatpush1.msra.mxu0 0.0
      %5490 = vmatprep.subr.mxu0 0.0
      %5491 = vmatpush1.msra.mxu0 0.0
      %5492 = vmatprep.subr.mxu0 0.0
      %5493 = vmatpush1.msra.mxu0 0.0
      %5494 = vmatprep.subr.mxu0 0.0
      %5495 = vmatpush1.msra.mxu0 0.0
      %5496 = vmatprep.subr.mxu0 0.0
      %5497 = vmatpush1.msra.mxu0 0.0
      %5498 = vmatprep.subr.mxu0 0.0
      %5499 = vmatpush1.msra.mxu0 0.0
      %5500 = vmatprep.subr.mxu0 0.0
      %5501 = vmatpush1.msra.mxu0 0.0
      %5502 = vmatprep.subr.mxu0 0.0
      %5503 = vmatpush1.msra.mxu0 0.0
      %5504 = vmatprep.subr.mxu0 0.0
      %5505 = vmatpush1.msra.mxu0 0.0
      %5506 = vmatprep.subr.mxu0 0.0
      %5507 = vmatpush1.msra.mxu0 0.0
      %5508 = vmatprep.subr.mxu0 0.0
      %5509 = vmatpush1.msra.mxu0 0.0
      %5510 = vmatprep.subr.mxu0 0.0
      %5511 = vmatpush1.msra.mxu0 0.0
      %5512 = vmatprep.subr.mxu0 0.0
      %5513 = vmatpush1.msra.mxu0 0.0
      %5514 = vmatprep.subr.mxu0 0.0
      %5515 = vmatpush1.msra.mxu0 0.0
      %5516 = vmatprep.subr.mxu0 0.0
      %5517 = vmatpush1.msra.mxu0 0.0
      %5518 = vmatprep.subr.mxu0 0.0
      %5519 = vmatpush1.msra.mxu0 0.0
      %5520 = vmatprep.mubr.f32.mxu0 0.0
      %5521 = vmatmul.mubr.f32.gmra.mrb[0].mxu0 %v5350
      %v5522 = vpop.f32.mrb[0].mxu0
      %v5523 = vadd.f32 %v5342, %v5522
      %v5524 = vpop.f32.mrb[0].mxu0
      %v5525 = vadd.f32 %v5342, %v5524
      %5526 = vmatprep.mubr.f32.mxu0 0.0
      %5527 = vmatmul.mubr.f32.gmra.mrb[0].mxu0 %v5353
      %v5528 = vpop.f32.mrb[0].mxu0
      %v5529 = vadd.f32 %v5347, %v5528
      %v5530 = vpop.f32.mrb[0].mxu0
      %v5531 = vadd.f32 %v5347, %v5530
      %5532 = vdwg.mxu0
      %5533 = vmatprep.subr.mxu0 %v5371
      %5534 = vmatpush1.msra.mxu0 %v5368
      %5535 = vmatprep.subr.mxu0 0.0
      %5536 = vmatpush1.msra.mxu0 0.0
      %5537 = vmatprep.subr.mxu0 0.0
      %5538 = vmatpush1.msra.mxu0 0.0
      %5539 = vmatprep.subr.mxu0 0.0
      %5540 = vmatpush1.msra.mxu0 0.0
      %5541 = vmatprep.subr.mxu0 0.0
      %5542 = vmatpush1.msra.mxu0 0.0
      %5543 = vmatprep.subr.mxu0 0.0
      %5544 = vmatpush1.msra.mxu0 0.0
      %5545 = vmatprep.subr.mxu0 0.0
      %5546 = vmatpush1.msra.mxu0 0.0
      %5547 = vmatprep.subr.mxu0 0.0
      %5548 = vmatpush1.msra.mxu0 0.0
      %5549 = vmatprep.subr.mxu0 0.0
      %5550 = vmatpush1.msra.mxu0 0.0
      %5551 = vmatprep.subr.mxu0 0.0
      %5552 = vmatpush1.msra.mxu0 0.0
      %5553 = vmatprep.subr.mxu0 0.0
      %5554 = vmatpush1.msra.mxu0 0.0
      %5555 = vmatprep.subr.mxu0 0.0
      %5556 = vmatpush1.msra.mxu0 0.0
      %5557 = vmatprep.subr.mxu0 0.0
      %5558 = vmatpush1.msra.mxu0 0.0
      %5559 = vmatprep.subr.mxu0 0.0
      %5560 = vmatpush1.msra.mxu0 0.0
      %5561 = vmatprep.subr.mxu0 0.0
      %5562 = vmatpush1.msra.mxu0 0.0
      %5563 = vmatprep.subr.mxu0 0.0
      %5564 = vmatpush1.msra.mxu0 0.0
      %5565 = vmatprep.subr.mxu0 0.0
      %5566 = vmatpush1.msra.mxu0 0.0
      %5567 = vmatprep.subr.mxu0 0.0
      %5568 = vmatpush1.msra.mxu0 0.0
      %5569 = vmatprep.subr.mxu0 0.0
      %5570 = vmatpush1.msra.mxu0 0.0
      %5571 = vmatprep.subr.mxu0 0.0
      %5572 = vmatpush1.msra.mxu0 0.0
      %5573 = vmatprep.subr.mxu0 0.0
      %5574 = vmatpush1.msra.mxu0 0.0
      %5575 = vmatprep.subr.mxu0 0.0
      %5576 = vmatpush1.msra.mxu0 0.0
      %5577 = vmatprep.subr.mxu0 0.0
      %5578 = vmatpush1.msra.mxu0 0.0
      %5579 = vmatprep.subr.mxu0 0.0
      %5580 = vmatpush1.msra.mxu0 0.0
      %5581 = vmatprep.subr.mxu0 0.0
      %5582 = vmatpush1.msra.mxu0 0.0
      %5583 = vmatprep.subr.mxu0 0.0
      %5584 = vmatpush1.msra.mxu0 0.0
      %5585 = vmatprep.subr.mxu0 0.0
      %5586 = vmatpush1.msra.mxu0 0.0
      %5587 = vmatprep.subr.mxu0 0.0
      %5588 = vmatpush1.msra.mxu0 0.0
      %5589 = vmatprep.subr.mxu0 0.0
      %5590 = vmatpush1.msra.mxu0 0.0
      %5591 = vmatprep.subr.mxu0 0.0
      %5592 = vmatpush1.msra.mxu0 0.0
      %5593 = vmatprep.subr.mxu0 0.0
      %5594 = vmatpush1.msra.mxu0 0.0
      %5595 = vmatprep.subr.mxu0 0.0
      %5596 = vmatpush1.msra.mxu0 0.0
      %5597 = vmatprep.mubr.f32.mxu0 0.0
      %5598 = vmatmul.mubr.f32.gmra.mrb[0].mxu0 %v5350
      %v5599 = vpop.f32.mrb[0].mxu0
      %v5600 = vadd.f32 %v5342, %v5599
      %v5601 = vpop.f32.mrb[0].mxu0
      %v5602 = vadd.f32 %v5342, %v5601
      %5603 = vmatprep.mubr.f32.mxu0 0.0
      %5604 = vmatmul.mubr.f32.gmra.mrb[0].mxu0 %v5353
      %v5605 = vpop.f32.mrb[0].mxu0
      %v5606 = vadd.f32 %v5347, %v5605
      %v5607 = vpop.f32.mrb[0].mxu0
      %v5608 = vadd.f32 %v5347, %v5607
      %5609 = vdwg.mxu0
      %5610 = vmatprep.subr.mxu0 %v5377
      %5611 = vmatpush1.msra.mxu0 %v5374
      %5612 = vmatprep.subr.mxu0 0.0
      %5613 = vmatpush1.msra.mxu0 0.0
      %5614 = vmatprep.subr.mxu0 0.0
      %5615 = vmatpush1.msra.mxu0 0.0
      %5616 = vmatprep.subr.mxu0 0.0
      %5617 = vmatpush1.msra.mxu0 0.0
      %5618 = vmatprep.subr.mxu0 0.0
      %5619 = vmatpush1.msra.mxu0 0.0
      %5620 = vmatprep.subr.mxu0 0.0
      %5621 = vmatpush1.msra.mxu0 0.0
      %5622 = vmatprep.subr.mxu0 0.0
      %5623 = vmatpush1.msra.mxu0 0.0
      %5624 = vmatprep.subr.mxu0 0.0
      %5625 = vmatpush1.msra.mxu0 0.0
      %5626 = vmatprep.subr.mxu0 0.0
      %5627 = vmatpush1.msra.mxu0 0.0
      %5628 = vmatprep.subr.mxu0 0.0
      %5629 = vmatpush1.msra.mxu0 0.0
      %5630 = vmatprep.subr.mxu0 0.0
      %5631 = vmatpush1.msra.mxu0 0.0
      %5632 = vmatprep.subr.mxu0 0.0
      %5633 = vmatpush1.msra.mxu0 0.0
      %5634 = vmatprep.subr.mxu0 0.0
      %5635 = vmatpush1.msra.mxu0 0.0
      %5636 = vmatprep.subr.mxu0 0.0
      %5637 = vmatpush1.msra.mxu0 0.0
      %5638 = vmatprep.subr.mxu0 0.0
      %5639 = vmatpush1.msra.mxu0 0.0
      %5640 = vmatprep.subr.mxu0 0.0
      %5641 = vmatpush1.msra.mxu0 0.0
      %5642 = vmatprep.subr.mxu0 0.0
      %5643 = vmatpush1.msra.mxu0 0.0
      %5644 = vmatprep.subr.mxu0 0.0
      %5645 = vmatpush1.msra.mxu0 0.0
      %5646 = vmatprep.subr.mxu0 0.0
      %5647 = vmatpush1.msra.mxu0 0.0
      %5648 = vmatprep.subr.mxu0 0.0
      %5649 = vmatpush1.msra.mxu0 0.0
      %5650 = vmatprep.subr.mxu0 0.0
      %5651 = vmatpush1.msra.mxu0 0.0
      %5652 = vmatprep.subr.mxu0 0.0
      %5653 = vmatpush1.msra.mxu0 0.0
      %5654 = vmatprep.subr.mxu0 0.0
      %5655 = vmatpush1.msra.mxu0 0.0
      %5656 = vmatprep.subr.mxu0 0.0
      %5657 = vmatpush1.msra.mxu0 0.0
      %5658 = vmatprep.subr.mxu0 0.0
      %5659 = vmatpush1.msra.mxu0 0.0
      %5660 = vmatprep.subr.mxu0 0.0
      %5661 = vmatpush1.msra.mxu0 0.0
      %5662 = vmatprep.subr.mxu0 0.0
      %5663 = vmatpush1.msra.mxu0 0.0
      %5664 = vmatprep.subr.mxu0 0.0
      %5665 = vmatpush1.msra.mxu0 0.0
      %5666 = vmatprep.subr.mxu0 0.0
      %5667 = vmatpush1.msra.mxu0 0.0
      %5668 = vmatprep.subr.mxu0 0.0
      %5669 = vmatpush1.msra.mxu0 0.0
      %5670 = vmatprep.subr.mxu0 0.0
      %5671 = vmatpush1.msra.mxu0 0.0
      %5672 = vmatprep.subr.mxu0 0.0
      %5673 = vmatpush1.msra.mxu0 0.0
      %5674 = vmatprep.mubr.f32.mxu0 0.0
      %5675 = vmatmul.mubr.f32.gmra.mrb[0].mxu0 %v5350
      %v5676 = vpop.f32.mrb[0].mxu0
      %v5677 = vadd.f32 %v5342, %v5676
      %v5678 = vpop.f32.mrb[0].mxu0
      %v5679 = vadd.f32 %v5342, %v5678
      %5680 = vmatprep.mubr.f32.mxu0 0.0
      %5681 = vmatmul.mubr.f32.gmra.mrb[0].mxu0 %v5353
      %v5682 = vpop.f32.mrb[0].mxu0
      %v5683 = vadd.f32 %v5347, %v5682
      %v5684 = vpop.f32.mrb[0].mxu0
      %v5685 = vadd.f32 %v5347, %v5684
      %5686 = vdwg.mxu0
      %v5687 = vxor.u32 %v5446, 2147483648
      %v5688 = vxor.u32 %v5448, 2147483648
      %v5689 = vxor.u32 %v5523, 2147483648
      %v5690 = vxor.u32 %v5525, 2147483648
      %v5691 = vxor.u32 %v5600, 2147483648
      %v5692 = vxor.u32 %v5602, 2147483648
      %v5693 = vxor.u32 %v5677, 2147483648
      %v5694 = vxor.u32 %v5679, 2147483648
      %v5695 = vxor.u32 %v5452, 2147483648
      %v5696 = vxor.u32 %v5454, 2147483648
      %v5697 = vxor.u32 %v5529, 2147483648
      %v5698 = vxor.u32 %v5531, 2147483648
      %v5699 = vxor.u32 %v5606, 2147483648
      %v5700 = vxor.u32 %v5608, 2147483648
      %v5701 = vxor.u32 %v5683, 2147483648
      %v5702 = vxor.u32 %v5685, 2147483648
      %v5703 = vmul.f32 %v5687, 1.442695
      %v5704 = vpow.pop %v5703
      %v5705 = vmul.f32 %v5688, 1.442695
      %v5706 = vpow.pop %v5705
      %v5707 = vmul.f32 %v5689, 1.442695
      %v5708 = vpow.pop %v5707
      %v5709 = vmul.f32 %v5690, 1.442695
      %v5710 = vpow.pop %v5709
      %v5711 = vmul.f32 %v5691, 1.442695
      %v5712 = vpow.pop %v5711
      %v5713 = vmul.f32 %v5692, 1.442695
      %v5714 = vpow.pop %v5713
      %v5715 = vmul.f32 %v5693, 1.442695
      %v5716 = vpow.pop %v5715
      %v5717 = vmul.f32 %v5694, 1.442695
      %v5718 = vpow.pop %v5717
      %v5719 = vmul.f32 %v5695, 1.442695
      %v5720 = vpow.pop %v5719
      %v5721 = vmul.f32 %v5696, 1.442695
      %v5722 = vpow.pop %v5721
      %v5723 = vmul.f32 %v5697, 1.442695
      %v5724 = vpow.pop %v5723
      %v5725 = vmul.f32 %v5698, 1.442695
      %v5726 = vpow.pop %v5725
      %v5727 = vmul.f32 %v5699, 1.442695
      %v5728 = vpow.pop %v5727
      %v5729 = vmul.f32 %v5700, 1.442695
      %v5730 = vpow.pop %v5729
      %v5731 = vmul.f32 %v5701, 1.442695
      %v5732 = vpow.pop %v5731
      %v5733 = vmul.f32 %v5702, 1.442695
      %v5734 = vpow.pop %v5733
      %v5735 = vadd.f32 %v5704, 1.0
      %v5736 = vadd.f32 %v5706, 1.0
      %v5737 = vadd.f32 %v5708, 1.0
      %v5738 = vadd.f32 %v5710, 1.0
      %v5739 = vadd.f32 %v5712, 1.0
      %v5740 = vadd.f32 %v5714, 1.0
      %v5741 = vadd.f32 %v5716, 1.0
      %v5742 = vadd.f32 %v5718, 1.0
      %v5743 = vadd.f32 %v5720, 1.0
      %v5744 = vadd.f32 %v5722, 1.0
      %v5745 = vadd.f32 %v5724, 1.0
      %v5746 = vadd.f32 %v5726, 1.0
      %v5747 = vadd.f32 %v5728, 1.0
      %v5748 = vadd.f32 %v5730, 1.0
      %v5749 = vadd.f32 %v5732, 1.0
      %v5750 = vadd.f32 %v5734, 1.0
      %v5751 = vrcp.pop %v5735
      %v5752 = vmul.f32 1.0, %v5751
      %v5753 = vrcp.pop %v5736
      %v5754 = vmul.f32 1.0, %v5753
      %v5755 = vrcp.pop %v5737
      %v5756 = vmul.f32 1.0, %v5755
      %v5757 = vrcp.pop %v5738
      %v5758 = vmul.f32 1.0, %v5757
      %v5759 = vrcp.pop %v5739
      %v5760 = vmul.f32 1.0, %v5759
      %v5761 = vrcp.pop %v5740
      %v5762 = vmul.f32 1.0, %v5761
      %v5763 = vrcp.pop %v5741
      %v5764 = vmul.f32 1.0, %v5763
      %v5765 = vrcp.pop %v5742
      %v5766 = vmul.f32 1.0, %v5765
      %v5767 = vrcp.pop %v5743
      %v5768 = vmul.f32 1.0, %v5767
      %v5769 = vrcp.pop %v5744
      %v5770 = vmul.f32 1.0, %v5769
      %v5771 = vrcp.pop %v5745
      %v5772 = vmul.f32 1.0, %v5771
      %v5773 = vrcp.pop %v5746
      %v5774 = vmul.f32 1.0, %v5773
      %v5775 = vrcp.pop %v5747
      %v5776 = vmul.f32 1.0, %v5775
      %v5777 = vrcp.pop %v5748
      %v5778 = vmul.f32 1.0, %v5777
      %v5779 = vrcp.pop %v5749
      %v5780 = vmul.f32 1.0, %v5779
      %v5781 = vrcp.pop %v5750
      %v5782 = vmul.f32 1.0, %v5781
      %v5783 = vmul.f32 %v550, %v5752
      %v5784 = vmul.f32 %v551, %v5754
      %v5785 = vmul.f32 %v552, %v5756
      %v5786 = vmul.f32 %v553, %v5758
      %v5787 = vmul.f32 %v554, %v5760
      %v5788 = vmul.f32 %v555, %v5762
      %v5789 = vmul.f32 %v556, %v5764
      %v5790 = vmul.f32 %v557, %v5766
      %v5791 = vmul.f32 %v558, %v5768
      %v5792 = vmul.f32 %v559, %v5770
      %v5793 = vmul.f32 %v560, %v5772
      %v5794 = vmul.f32 %v561, %v5774
      %v5795 = vmul.f32 %v562, %v5776
      %v5796 = vmul.f32 %v563, %v5778
      %v5797 = vmul.f32 %v564, %v5780
      %v5798 = vmul.f32 %v565, %v5782
      %5799 = vst [vmem:[%s548] sm:$0xff] %v5783
      %5800 = vst [vmem:[%s548 + $0x8] sm:$0xff] %v5784
      %5801 = vst [vmem:[%s548 + $0x10] sm:$0xff] %v5785
      %5802 = vst [vmem:[%s548 + $0x18] sm:$0xff] %v5786
      %5803 = vst [vmem:[%s548 + $0x20] sm:$0xff] %v5787
      %5804 = vst [vmem:[%s548 + $0x28] sm:$0xff] %v5788
      %5805 = vst [vmem:[%s548 + $0x30] sm:$0xff] %v5789
      %5806 = vst [vmem:[%s548 + $0x38] sm:$0xff] %v5790
      %5807 = vst [vmem:[%s548 + $0x40] sm:$0xff] %v5791
      %5808 = vst [vmem:[%s548 + $0x48] sm:$0xff] %v5792
      %5809 = vst [vmem:[%s548 + $0x50] sm:$0xff] %v5793
      %5810 = vst [vmem:[%s548 + $0x58] sm:$0xff] %v5794
      %5811 = vst [vmem:[%s548 + $0x60] sm:$0xff] %v5795
      %5812 = vst [vmem:[%s548 + $0x68] sm:$0xff] %v5796
      %5813 = vst [vmem:[%s548 + $0x70] sm:$0xff] %v5797
      %5814 = vst [vmem:[%s548 + $0x78] sm:$0xff] %v5798
      %p5815 = scmp.lt.s32.totalorder %s28, 1
      %s5816 = scalar_select %p5815, %s28, 1
      %s5817 = smul.addr %s5816, 16
      %s5818 = smul.addr %s5817, 8
      %s5819 = scalar_lea.vmem %s17, %s5818
      // Predicated region
      $region89: #{esa_forward_pallas.1} parent=87 // pred_check
        %p5820 = pneg %p408
      $region90: #{esa_forward_pallas.1} parent=87 // pred_check_branch
        %5822 = sbr.rel (%p5820) target = $region92
      $region91: #{esa_forward_pallas.1} parent=87 // pred_region
        _
      $region92: #{esa_forward_pallas.1} parent=87 // pred_fallthru
        _
    $region88: #{esa_forward_pallas.1} parent=5 // pred_fallthru
      _
    %p5823 = scmp.le.s32.totalorder 2, %s23
    // Predicated region
    $region93: #{esa_forward_pallas.1} parent=5 // pred_check
      %p5824 = pneg %p5823
    $region94: #{esa_forward_pallas.1} parent=5 // pred_check_branch
      %5826 = sbr.rel (%p5824) target = $region96
    $region95: #{esa_forward_pallas.1} parent=5 // pred_region
      %s5827 = ssub.s32 %s23, 2
      // Predicated region
      $region97: #{esa_forward_pallas.1} parent=95 // pred_check
        %p5828 = pneg %p414
      $region98: #{esa_forward_pallas.1} parent=95 // pred_check_branch
        %5830 = sbr.rel (%p5828) target = $region100
      $region99: #{esa_forward_pallas.1} parent=95 // pred_region
        %p5831 = scmp.lt.s32.totalorder %s29, 1
        %s5832 = scalar_select %p5831, %s29, 1
        %s5833 = smul.addr %s5832, 16
        %s5834 = smul.addr %s5833, 8
        %s5835 = scalar_lea.vmem %s17, %s5834
      $region100: #{esa_forward_pallas.1} parent=95 // pred_fallthru
        _
    $region96: #{esa_forward_pallas.1} parent=5 // pred_fallthru
      _
  $region6: #{esa_forward_pallas.1} parent=0 // loop_footer
    %s27 = sadd.s32 1, %s23
  $region7: #{esa_forward_pallas.1} parent=0 // loop_footer_branch
    %22 = sbr.rel target = $region3
  $region8: #{esa_forward_pallas.1} parent=0 // loop_exit
    _

</llo_original>
